<compile_context>
chip_gen: v7x
topology: tpu7x:2x2x1
jax: 0.10.0
libtpu: 0.0.40
codegen_flags: <defaults>
</compile_context>

<pallas_src>
import numpy as np
import jax
import jax.numpy as jnp
from jax.experimental import pallas as pl
from jax.experimental.pallas import tpu as pltpu

NEG_HUGE = -100000.0


# ---------------------------------------------------------------------------
# In-kernel helpers
# ---------------------------------------------------------------------------
def _dot(a, w):
    """MXU matmul: bf16 operands, f32 accumulation."""
    return jnp.dot(a.astype(jnp.bfloat16), w, preferred_element_type=jnp.float32)


def _mlp(h, win, bin_, w1, b1, w2, b2, num_layers):
    """MultiResidualLayer: in_linear -> num_layers x ResidualLayer.
    ResidualLayer(x) = relu(lin2(relu(lin1(x)))) + x."""
    h = _dot(h, win[...]) + bin_[...]
    for l in range(num_layers):            # static unroll (num_layers is small)
        t = jnp.maximum(_dot(h, w1[l]) + b1[l], 0.0)
        t = jnp.maximum(_dot(t, w2[l]) + b2[l], 0.0)
        h = h + t
    return h


# ---------------------------------------------------------------------------
# Kernel 1: batch-folded MLPs (node / parent / left / right / vocab) + root
# logits + vocab logsumexp.  No grid: every MLP runs once over B*rows rows.
# Fold row order is state-major: row = s*(B*num) + b*num + i.
# ---------------------------------------------------------------------------
def make_fold_kernel(num_layers, s_nt, s_pt):
    def kernel(nt_nodes_ref, pt_nodes_ref, nt_state_ref, pt_state_ref,
               w_root_ref,
               nt_win, nt_bin, nt_w1, nt_b1, nt_w2, nt_b2,
               pt_win, pt_bin, pt_w1, pt_b1, pt_w2, pt_b2,
               pa_win, pa_bin, pa_w1, pa_b1, pa_w2, pa_b2,
               lf_win, lf_bin, lf_w1, lf_b1, lf_w2, lf_b2,
               rt_win, rt_bin, rt_w1, rt_b1, rt_w2, rt_b2,
               vo_win, vo_bin, vo_w1, vo_b1, vo_w2, vo_b2, vo_wout, vo_bout,
               parent_ref, left_ref, right_ref, root_ref, hvoc_ref, lse_ref):
        # node-feature MLPs, batch folded over rows (b-major)
        nt_node = _mlp(nt_nodes_ref[...], nt_win, nt_bin, nt_w1, nt_b1,
                       nt_w2, nt_b2, num_layers)              # (B*nt_num, D)
        pt_node = _mlp(pt_nodes_ref[...], pt_win, pt_bin, pt_w1, pt_b1,
                       pt_w2, pt_b2, num_layers)              # (B*pt_num, D)
        # state broadcast in fold (state-major) order: sublane concat of the
        # node rows + host-precomputed state tensor in the same row order.
        nt_emb = jnp.concatenate([nt_node] * s_nt, axis=0) + nt_state_ref[...]
        pt_emb = jnp.concatenate([pt_node] * s_pt, axis=0) + pt_state_ref[...]
        all_emb = jnp.concatenate([nt_emb, pt_emb], axis=0)   # (B*A, D)

        # roots: VPU multiply + lane reduce (no 1-row MXU matvec)
        root_ref[...] = jnp.sum(nt_emb * w_root_ref[...], axis=-1,
                                keepdims=True)                # (B*NT, 1)

        # rule embeddings (consumed by the rules kernel)
        parent_ref[...] = _mlp(nt_emb, pa_win, pa_bin, pa_w1, pa_b1,
                               pa_w2, pa_b2, num_layers)      # (B*NT, D)
        left_ref[...] = _mlp(all_emb, lf_win, lf_bin, lf_w1, lf_b1,
                             lf_w2, lf_b2, num_layers)        # (B*A, D)
        right_ref[...] = _mlp(all_emb, rt_win, rt_bin, rt_w1, rt_b1,
                              rt_w2, rt_b2, num_layers)       # (B*A, D)

        # vocab MLP + logsumexp over V (numerator is a column gather outside)
        hv = _mlp(pt_emb, vo_win, vo_bin, vo_w1, vo_b1, vo_w2, vo_b2,
                  num_layers)                                 # (B*PT, D)
        hvoc_ref[...] = hv
        logits = jnp.dot(hv, vo_wout[...],
                         preferred_element_type=jnp.float32) + vo_bout[...]
        m = jnp.max(logits, axis=-1, keepdims=True)
        lse_ref[...] = m + jnp.log(jnp.sum(jnp.exp(logits - m), axis=-1,
                                           keepdims=True))    # (B*PT, 1)
    return kernel


# ---------------------------------------------------------------------------
# Kernel 2: rules, tiled over (batch, NT tile).  Scores are rank-1 factored
# (sl + sr), the partition function is computed from that factorization with
# only 2*TNT*A exp calls, and the (TNT, A, A) output pass applies the mask.
# ---------------------------------------------------------------------------
def make_rules_kernel(neg_huge, A):
    uniform_val = -float(np.log(float(A) * float(A)))  # fully-masked parents

    def kernel(parent_ref, left_ref, right_ref, mask_ref, rules_ref):
        p = parent_ref[0]                                     # (TNT, D) f32
        l = left_ref[0]                                       # (A, D)
        r = right_ref[0]                                      # (A, D)
        # final score matmuls in f32 (review correctness note on bf16 drift)
        sl = jax.lax.dot_general(p, l, (((1,), (1,)), ((), ())),
                                 preferred_element_type=jnp.float32)  # (TNT,A)
        sr = jax.lax.dot_general(p, r, (((1,), (1,)), ((), ())),
                                 preferred_element_type=jnp.float32)  # (TNT,A)

        allowed = mask_ref[0] != 0                            # (TNT, A, A)
        maskf = allowed.astype(jnp.float32)
        row_any = jnp.max(maskf, axis=2) > 0.0                # (TNT, A)
        col_any = jnp.max(maskf, axis=1) > 0.0                # (TNT, A)

        ml = jnp.max(jnp.where(row_any, sl, neg_huge), axis=-1, keepdims=True)
        mr = jnp.max(jnp.where(col_any, sr, neg_huge), axis=-1, keepdims=True)
        el = jnp.where(row_any, jnp.exp(sl - ml), 0.0)        # (TNT, A)
        er = jnp.where(col_any, jnp.exp(sr - mr), 0.0)        # (TNT, A)

        # z[p] = sum_{i,j allowed} exp(sl[p,i]-ml) * exp(sr[p,j]-mr)
        t = jnp.sum(maskf * er[:, None, :], axis=-1)          # (TNT, A)
        z = jnp.sum(el * t, axis=-1, keepdims=True)           # (TNT, 1)
        dead = z <= 0.0                                       # fully masked
        logz = jnp.log(jnp.where(dead, 1.0, z))
        shift = (ml + mr + logz)[:, :, None]                  # (TNT, 1, 1)

        scores = sl[:, :, None] + sr[:, None, :]              # (TNT, A, A)
        out = jnp.where(allowed, scores - shift, neg_huge)
        out = jnp.where(dead[:, :, None], uniform_val, out)
        rules_ref[0] = out
    return kernel


def _pick_tnt(NT, A, D, budget_bytes=40 * 1024 * 1024):
    """Largest divisor of NT whose double-buffered block footprint fits."""
    best = 1
    for t in range(1, NT + 1):
        if NT % t != 0:
            continue
        per = (2 * (t * A * A * 4 + t * A * A * 1 + t * D * 4)
               + 2 * (2 * A * D * 4))
        if per <= budget_bytes:
            best = t
    return best


# ---------------------------------------------------------------------------
# Weight preparation (bf16 MXU operands for the MLP chains)
# ---------------------------------------------------------------------------
def _prep_mlp(p, with_out=False):
    arrs = (p['win'].astype(jnp.bfloat16), p['bin'],
            p['w1'].astype(jnp.bfloat16), p['b1'],
            p['w2'].astype(jnp.bfloat16), p['b2'])
    if with_out:
        # vocab out-projection stays f32 so the in-kernel logsumexp matches
        # the wrapper-side column-gather numerator.
        arrs = arrs + (p['wout'], p['bout'])
    return arrs


# ---------------------------------------------------------------------------
# Host-side (plain numpy) rule-constraint ALLOW mask (int8, 1 = allowed)
# ---------------------------------------------------------------------------
def get_rules_mask2(B, nt_num, pt_num, nt_spans, pt_spans,
                    src_nt_states, src_pt_states):
    nt = nt_num * src_nt_states
    pt = pt_num * src_pt_states
    A = nt + pt
    nm = np.zeros((B, nt, A, A), np.int8)

    def set_block(b, i, j, k, j_is_pt, k_is_pt):
        j_base = nt if j_is_pt else 0
        k_base = nt if k_is_pt else 0
        j_node = pt_num if j_is_pt else nt_num
        k_node = pt_num if k_is_pt else nt_num
        j_states = src_pt_states if j_is_pt else src_nt_states
        k_states = src_pt_states if k_is_pt else src_nt_states
        for s1 in range(src_nt_states):
            for s2 in range(j_states):
                for s3 in range(k_states):
                    nm[b, s1 * nt_num + i,
                       j_base + s2 * j_node + j,
                       k_base + s3 * k_node + k] = 1

    def span_len(s): return s[1] - s[0] + 1
    def is_parent(p, c): return c[0] >= p[0] and c[1] <= p[1]
    def is_strict_parent(p, c): return is_parent(p, c) and p != c

    def covers(p, c1, c2):
        return (span_len(p) == span_len(c1) + span_len(c2)
                and ((p[0] == c1[0] and p[1] == c2[1])
                     or (p[0] == c2[0] and p[1] == c1[1])))

    for b, (pt_span, nt_span) in enumerate(zip(pt_spans, nt_spans)):
        min_nt_span = min(span_len(s) for s in nt_span)
        for i, parent in enumerate(nt_span):
            if span_len(parent) == min_nt_span:
                set_block(b, i, i, i, False, False)
                for j, child in enumerate(pt_span):
                    if is_strict_parent(parent, child):
                        set_block(b, i, i, j, False, True)
                        set_block(b, i, j, i, True, False)
            if span_len(parent) == 1:
                for j, child in enumerate(pt_span):
                    if parent == child:
                        set_block(b, i, j, i, True, False)
                        set_block(b, i, i, j, False, True)
                        set_block(b, i, j, j, True, True)
            for j, c1 in enumerate(nt_span):
                for k, c2 in enumerate(nt_span):
                    if covers(parent, c1, c2):
                        set_block(b, i, j, k, False, False)
                        set_block(b, i, k, j, False, False)
                for k, c2 in enumerate(pt_span):
                    if covers(parent, c1, c2):
                        set_block(b, i, j, k, False, True)
                        set_block(b, i, k, j, True, False)
            for j, c1 in enumerate(pt_span):
                for k, c2 in enumerate(pt_span):
                    if covers(parent, c1, c2):
                        set_block(b, i, j, k, True, True)
                        set_block(b, i, k, j, True, True)
    return nm


# ---------------------------------------------------------------------------
# Parameter init (deterministic, shapes from the module __init__)
# ---------------------------------------------------------------------------
def init_linear(key, din, dout, scale=0.1):
    kw, kb = jax.random.split(key)
    w = scale * jax.random.normal(kw, (din, dout), jnp.float32)
    b = scale * jax.random.normal(kb, (1, dout), jnp.float32)
    return w, b


def init_mlp(key, in_dim, res_dim, out_dim, num_layers, scale=0.1):
    n_keys = 1 + 2 * num_layers + (1 if out_dim is not None else 0)
    keys = jax.random.split(key, n_keys)
    p = {}
    p['win'], p['bin'] = init_linear(keys[0], in_dim, res_dim, scale)
    w1, b1, w2, b2 = [], [], [], []
    for l in range(num_layers):
        a, bb = init_linear(keys[1 + 2 * l], res_dim, res_dim, scale)
        w1.append(a); b1.append(bb)
        a, bb = init_linear(keys[2 + 2 * l], res_dim, res_dim, scale)
        w2.append(a); b2.append(bb)
    p['w1'] = jnp.stack(w1); p['b1'] = jnp.stack(b1)   # (L, D, D), (L, 1, D)
    p['w2'] = jnp.stack(w2); p['b2'] = jnp.stack(b2)
    if out_dim is not None:
        p['wout'], p['bout'] = init_linear(keys[-1], res_dim, out_dim, scale)
    return p


# ---------------------------------------------------------------------------
# NeuralQCFG forward (= get_params with x given, use_copy=False, tgt states=0)
# ---------------------------------------------------------------------------
def neural_qcfg_forward(cfg, weights, x, lengths, node_features, spans):
    del lengths  # TODO(synk): only needed by the external PCFG inside pass
    B = len(spans)
    L = cfg['num_layers']
    D = cfg['dim']
    s_nt = cfg['src_nt_states']
    s_pt = cfg['src_pt_states']

    # --- host-side span filtering + padding (mirrors the PyTorch loop) -----
    nt_feats, pt_feats, nt_spans, pt_spans = [], [], [], []
    for span, nf in zip(spans, node_features):
        nt_f, pt_f, nt_s, pt_s = [], [], [], []
        for i, s in enumerate(span):
            s_len = s[1] - s[0] + 1
            if cfg['nt_span_range'][0] <= s_len <= cfg['nt_span_range'][1]:
                nt_f.append(nf[i]); nt_s.append(s)
            if cfg['pt_span_range'][0] <= s_len <= cfg['pt_span_range'][1]:
                pt_f.append(nf[i]); pt_s.append(s)
        if len(nt_f) == 0:
            nt_f.append(nf[-1]); nt_s.append(span[-1])
        nt_feats.append(np.stack(nt_f)); pt_feats.append(np.stack(pt_f))
        nt_spans.append(nt_s); pt_spans.append(pt_s)

    nt_num = max(len(f) for f in nt_feats)
    pt_num = max(len(f) for f in pt_feats)
    NT = s_nt * nt_num
    PT = s_pt * pt_num
    A = NT + PT

    def pad_fold(feats, n):
        out = np.zeros((B, n, feats[0].shape[-1]), np.float32)
        for b, f in enumerate(feats):
            out[b, :len(f)] = f
        return jnp.asarray(out.reshape(B * n, -1))        # b-major fold

    nt_nodes = pad_fold(nt_feats, nt_num)                 # (B*nt_num, src_dim)
    pt_nodes = pad_fold(pt_feats, pt_num)                 # (B*pt_num, src_dim)

    # int8 allow-mask (rule_constraint_type == 2)
    allow = jnp.asarray(get_rules_mask2(B, nt_num, pt_num, nt_spans, pt_spans,
                                        s_nt, s_pt))      # (B, NT, A, A)

    # per-item roots adjust: allow each item's own full-sentence (last real) span
    adjust = np.full((B, NT), cfg['neg_huge'], np.float32)
    for b in range(B):
        last = len(nt_spans[b]) - 1
        for s in range(s_nt):
            adjust[b, s * nt_num + last] = 0.0
    adjust = jnp.asarray(adjust)

    # state embeddings in fold (state-major) row order
    nt_state_fold = jnp.repeat(weights['src_nt_emb'], B * nt_num, axis=0)
    pt_state_fold = jnp.repeat(weights['src_pt_emb'], B * pt_num, axis=0)
    w_root_row = weights['w_root'].reshape(1, D)

    nt_mlp = _prep_mlp(weights['src_nt_node_mlp'])
    pt_mlp = _prep_mlp(weights['src_pt_node_mlp'])
    pa_mlp = _prep_mlp(weights['rule_mlp_parent'])
    lf_mlp = _prep_mlp(weights['rule_mlp_left'])
    rt_mlp = _prep_mlp(weights['rule_mlp_right'])
    vo_mlp = _prep_mlp(weights['vocab_out'], with_out=True)

    n_nt_rows = s_nt * B * nt_num
    n_pt_rows = s_pt * B * pt_num
    n_all_rows = n_nt_rows + n_pt_rows

    # --- kernel 1: batch-folded MLPs + root logits + vocab logsumexp -------
    parent_f, left_f, right_f, root_f, hvoc_f, lse_f = pl.pallas_call(
        make_fold_kernel(L, s_nt, s_pt),
        out_shape=(jax.ShapeDtypeStruct((n_nt_rows, D), jnp.float32),
                   jax.ShapeDtypeStruct((n_all_rows, D), jnp.float32),
                   jax.ShapeDtypeStruct((n_all_rows, D), jnp.float32),
                   jax.ShapeDtypeStruct((n_nt_rows, 1), jnp.float32),
                   jax.ShapeDtypeStruct((n_pt_rows, D), jnp.float32),
                   jax.ShapeDtypeStruct((n_pt_rows, 1), jnp.float32)),
    )(nt_nodes, pt_nodes, nt_state_fold, pt_state_fold, w_root_row,
      *nt_mlp, *pt_mlp, *pa_mlp, *lf_mlp, *rt_mlp, *vo_mlp)

    def unfold(xf, s_states, num):
        d = xf.shape[-1]
        return (xf.reshape(s_states, B, num, d)
                .transpose(1, 0, 2, 3).reshape(B, s_states * num, d))

    parent_all = unfold(parent_f, s_nt, nt_num)                   # (B, NT, D)
    left_all = jnp.concatenate(
        [unfold(left_f[:n_nt_rows], s_nt, nt_num),
         unfold(left_f[n_nt_rows:], s_pt, pt_num)], axis=1)       # (B, A, D)
    right_all = jnp.concatenate(
        [unfold(right_f[:n_nt_rows], s_nt, nt_num),
         unfold(right_f[n_nt_rows:], s_pt, pt_num)], axis=1)      # (B, A, D)

    root_logits = unfold(root_f, s_nt, nt_num)[..., 0]            # (B, NT)
    roots = jax.nn.log_softmax(root_logits + adjust, axis=-1)     # (B, NT)

    # terms: numerator via a vocab-column gather (no one-hot f32 matmul, no
    # (B, PT, V) log-prob table round-tripped through HBM).
    hvoc = unfold(hvoc_f, s_pt, pt_num)                           # (B, PT, D)
    lse = unfold(lse_f, s_pt, pt_num)                             # (B, PT, 1)
    xi = jnp.asarray(x, jnp.int32)                                # (B, n)
    wout = weights['vocab_out']['wout']                           # (D, V)
    bout = weights['vocab_out']['bout'][0]                        # (V,)
    w_sel = jnp.transpose(jnp.take(wout, xi, axis=1), (1, 0, 2))  # (B, D, n)
    b_sel = jnp.take(bout, xi, axis=0)                            # (B, n)
    num = jnp.einsum('bpd,bdn->bpn', hvoc, w_sel) + b_sel[:, None, :]
    terms = jnp.transpose(num - lse, (0, 2, 1))                   # (B, n, PT)

    # --- kernel 2: rules, tiled over (batch, NT tile), both axes parallel ---
    TNT = _pick_tnt(NT, A, D)
    rules = pl.pallas_call(
        make_rules_kernel(cfg['neg_huge'], A),
        grid=(B, NT // TNT),
        in_specs=[pl.BlockSpec((1, TNT, D), lambda b, t: (b, t, 0)),
                  pl.BlockSpec((1, A, D), lambda b, t: (b, 0, 0)),
                  pl.BlockSpec((1, A, D), lambda b, t: (b, 0, 0)),
                  pl.BlockSpec((1, TNT, A, A), lambda b, t: (b, t, 0, 0))],
        out_specs=pl.BlockSpec((1, TNT, A, A), lambda b, t: (b, t, 0, 0)),
        out_shape=jax.ShapeDtypeStruct((B, NT, A, A), jnp.float32),
        compiler_params=pltpu.CompilerParams(
            dimension_semantics=("parallel", "parallel"),
            vmem_limit_bytes=48 * 1024 * 1024),
    )(parent_all, left_all, right_all, allow)

    return terms, rules, roots


# ---------------------------------------------------------------------------
if __name__ == "__main__":
    key = jax.random.PRNGKey(0)
    cfg = dict(vocab=64, dim=32, num_layers=3, src_dim=32,
               src_nt_states=2, src_pt_states=2, nt_states=0, pt_states=0,
               neg_huge=NEG_HUGE, nt_span_range=[0, 1000],
               pt_span_range=[0, 1000])

    keys = jax.random.split(key, 12)
    weights = {
        'src_nt_emb': jax.random.normal(keys[0], (cfg['src_nt_states'], cfg['dim']), jnp.float32),
        'src_pt_emb': jax.random.normal(keys[1], (cfg['src_pt_states'], cfg['dim']), jnp.float32),
        'src_nt_node_mlp': init_mlp(keys[2], cfg['src_dim'], cfg['dim'], None, cfg['num_layers']),
        'src_pt_node_mlp': init_mlp(keys[3], cfg['src_dim'], cfg['dim'], None, cfg['num_layers']),
        'rule_mlp_parent': init_mlp(keys[4], cfg['dim'], cfg['dim'], None, cfg['num_layers']),
        'rule_mlp_left':   init_mlp(keys[5], cfg['dim'], cfg['dim'], None, cfg['num_layers']),
        'rule_mlp_right':  init_mlp(keys[6], cfg['dim'], cfg['dim'], None, cfg['num_layers']),
        'vocab_out':       init_mlp(keys[7], cfg['dim'], cfg['dim'], cfg['vocab'], cfg['num_layers']),
        'w_root': 0.1 * jax.random.normal(keys[8], (cfg['dim'], 1), jnp.float32),
    }

    # spans: [start, end, copy_string_or_None]; ragged across the batch
    spans = [
        [(0, 0, None), (1, 1, None), (2, 2, None), (0, 1, None), (0, 2, None)],
        [(0, 0, None), (1, 1, None), (2, 2, None), (0, 2, None)],
    ]
    node_features = [
        np.asarray(jax.random.normal(keys[9], (5, cfg['src_dim']), jnp.float32)),
        np.asarray(jax.random.normal(keys[10], (4, cfg['src_dim']), jnp.float32)),
    ]
    x = jax.random.randint(keys[11], (2, 6), 0, cfg['vocab'], dtype=jnp.int32)
    lengths = [6, 5]

    terms, rules, roots = neural_qcfg_forward(cfg, weights, x, lengths,
                                              node_features, spans)
    jax.block_until_ready((terms, rules, roots))

    nt_num = 5
    NT = cfg['src_nt_states'] * nt_num          # 10
    PT = cfg['src_pt_states'] * nt_num          # 10 (pt_num == 5 after padding)
    A = NT + PT                                 # 20
    assert terms.shape == (2, 6, PT)
    assert rules.shape == (2, NT, A, A)
    assert roots.shape == (2, NT)
    assert bool(jnp.all(jnp.isfinite(roots)))
    assert bool(jnp.all(jnp.isfinite(terms)))
    assert bool(jnp.all(jnp.isfinite(rules)))
    # rule / root distributions normalize (allowed cells are log-softmaxed
    # over the allowed child-pair set; fully-masked parents get a uniform row)
    rsum = jnp.exp(rules).reshape(2, NT, -1).sum(-1)
    assert bool(jnp.all(jnp.abs(rsum - 1.0) < 1e-3))
    rootsum = jnp.exp(roots).sum(-1)
    assert bool(jnp.all(jnp.abs(rootsum - 1.0) < 1e-3))
    print("KERNEL_OK")
</pallas_src>

<mosaic_0001>
module attributes {stable_mosaic.version = 11 : i64} {
  func.func @kernel(%arg0: memref<10x32xf32, #tpu.memory_space<vmem>>, %arg1: memref<10x32xf32, #tpu.memory_space<vmem>>, %arg2: memref<20x32xf32, #tpu.memory_space<vmem>>, %arg3: memref<20x32xf32, #tpu.memory_space<vmem>>, %arg4: memref<1x32xf32, #tpu.memory_space<vmem>>, %arg5: memref<32x32xbf16, #tpu.memory_space<vmem>>, %arg6: memref<1x32xf32, #tpu.memory_space<vmem>>, %arg7: memref<3x32x32xbf16, #tpu.memory_space<vmem>>, %arg8: memref<3x1x32xf32, #tpu.memory_space<vmem>>, %arg9: memref<3x32x32xbf16, #tpu.memory_space<vmem>>, %arg10: memref<3x1x32xf32, #tpu.memory_space<vmem>>, %arg11: memref<32x32xbf16, #tpu.memory_space<vmem>>, %arg12: memref<1x32xf32, #tpu.memory_space<vmem>>, %arg13: memref<3x32x32xbf16, #tpu.memory_space<vmem>>, %arg14: memref<3x1x32xf32, #tpu.memory_space<vmem>>, %arg15: memref<3x32x32xbf16, #tpu.memory_space<vmem>>, %arg16: memref<3x1x32xf32, #tpu.memory_space<vmem>>, %arg17: memref<32x32xbf16, #tpu.memory_space<vmem>>, %arg18: memref<1x32xf32, #tpu.memory_space<vmem>>, %arg19: memref<3x32x32xbf16, #tpu.memory_space<vmem>>, %arg20: memref<3x1x32xf32, #tpu.memory_space<vmem>>, %arg21: memref<3x32x32xbf16, #tpu.memory_space<vmem>>, %arg22: memref<3x1x32xf32, #tpu.memory_space<vmem>>, %arg23: memref<32x32xbf16, #tpu.memory_space<vmem>>, %arg24: memref<1x32xf32, #tpu.memory_space<vmem>>, %arg25: memref<3x32x32xbf16, #tpu.memory_space<vmem>>, %arg26: memref<3x1x32xf32, #tpu.memory_space<vmem>>, %arg27: memref<3x32x32xbf16, #tpu.memory_space<vmem>>, %arg28: memref<3x1x32xf32, #tpu.memory_space<vmem>>, %arg29: memref<32x32xbf16, #tpu.memory_space<vmem>>, %arg30: memref<1x32xf32, #tpu.memory_space<vmem>>, %arg31: memref<3x32x32xbf16, #tpu.memory_space<vmem>>, %arg32: memref<3x1x32xf32, #tpu.memory_space<vmem>>, %arg33: memref<3x32x32xbf16, #tpu.memory_space<vmem>>, %arg34: memref<3x1x32xf32, #tpu.memory_space<vmem>>, %arg35: memref<32x32xbf16, #tpu.memory_space<vmem>>, %arg36: memref<1x32xf32, #tpu.memory_space<vmem>>, %arg37: memref<3x32x32xbf16, #tpu.memory_space<vmem>>, %arg38: memref<3x1x32xf32, #tpu.memory_space<vmem>>, %arg39: memref<3x32x32xbf16, #tpu.memory_space<vmem>>, %arg40: memref<3x1x32xf32, #tpu.memory_space<vmem>>, %arg41: memref<32x64xf32, #tpu.memory_space<vmem>>, %arg42: memref<1x64xf32, #tpu.memory_space<vmem>>, %arg43: memref<20x32xf32, #tpu.memory_space<vmem>>, %arg44: memref<40x32xf32, #tpu.memory_space<vmem>>, %arg45: memref<40x32xf32, #tpu.memory_space<vmem>>, %arg46: memref<20x1xf32, #tpu.memory_space<vmem>>, %arg47: memref<20x32xf32, #tpu.memory_space<vmem>>, %arg48: memref<20x1xf32, #tpu.memory_space<vmem>>) attributes {dimension_semantics = [], scalar_prefetch = 0 : i64, scratch_operands = 0 : i64, tpu.core_type = #tpu.core_type<tc>} {
    %c0 = arith.constant 0 : index
    %c0_0 = arith.constant 0 : index
    %0 = vector.load %arg0[%c0, %c0_0] : memref<10x32xf32, #tpu.memory_space<vmem>>, vector<10x32xf32>
    %c0_1 = arith.constant 0 : index
    %c0_2 = arith.constant 0 : index
    %1 = vector.load %arg5[%c0_1, %c0_2] : memref<32x32xbf16, #tpu.memory_space<vmem>>, vector<32x32xbf16>
    %2 = arith.truncf %0 : vector<10x32xf32> to vector<10x32xbf16>
    %cst = arith.constant dense<0.000000e+00> : vector<10x32xf32>
    %3 = tpu.matmul %2, %1, %cst {dimension_numbers = #tpu.dot_dimension_numbers<[1], [0], [0], [1], [0, 0, 1, 1], [], []>} : vector<10x32xbf16>, vector<32x32xbf16>, vector<10x32xf32> -> vector<10x32xf32>
    %c0_3 = arith.constant 0 : index
    %c0_4 = arith.constant 0 : index
    %4 = vector.load %arg6[%c0_3, %c0_4] : memref<1x32xf32, #tpu.memory_space<vmem>>, vector<1x32xf32>
    %5 = vector.broadcast %4 : vector<1x32xf32> to vector<10x32xf32>
    %6 = arith.addf %3, %5 : vector<10x32xf32>
    %c0_5 = arith.constant 0 : index
    %c0_6 = arith.constant 0 : index
    %c0_7 = arith.constant 0 : index
    %7 = vector.load %arg7[%c0_5, %c0_6, %c0_7] : memref<3x32x32xbf16, #tpu.memory_space<vmem>>, vector<1x32x32xbf16>
    %8 = vector.shape_cast %7 : vector<1x32x32xbf16> to vector<32x32xbf16>
    %9 = arith.truncf %6 : vector<10x32xf32> to vector<10x32xbf16>
    %cst_8 = arith.constant dense<0.000000e+00> : vector<10x32xf32>
    %10 = tpu.matmul %9, %8, %cst_8 {dimension_numbers = #tpu.dot_dimension_numbers<[1], [0], [0], [1], [0, 0, 1, 1], [], []>} : vector<10x32xbf16>, vector<32x32xbf16>, vector<10x32xf32> -> vector<10x32xf32>
    %c0_9 = arith.constant 0 : index
    %c0_10 = arith.constant 0 : index
    %c0_11 = arith.constant 0 : index
    %11 = vector.load %arg8[%c0_9, %c0_10, %c0_11] : memref<3x1x32xf32, #tpu.memory_space<vmem>>, vector<1x1x32xf32>
    %12 = vector.shape_cast %11 : vector<1x1x32xf32> to vector<1x32xf32>
    %13 = vector.broadcast %12 : vector<1x32xf32> to vector<10x32xf32>
    %14 = arith.addf %10, %13 : vector<10x32xf32>
    %cst_12 = arith.constant 0.000000e+00 : f32
    %15 = vector.broadcast %cst_12 : f32 to vector<10x32xf32>
    %16 = arith.maximumf %14, %15 : vector<10x32xf32>
    %c0_13 = arith.constant 0 : index
    %c0_14 = arith.constant 0 : index
    %c0_15 = arith.constant 0 : index
    %17 = vector.load %arg9[%c0_13, %c0_14, %c0_15] : memref<3x32x32xbf16, #tpu.memory_space<vmem>>, vector<1x32x32xbf16>
    %18 = vector.shape_cast %17 : vector<1x32x32xbf16> to vector<32x32xbf16>
    %19 = arith.truncf %16 : vector<10x32xf32> to vector<10x32xbf16>
    %cst_16 = arith.constant dense<0.000000e+00> : vector<10x32xf32>
    %20 = tpu.matmul %19, %18, %cst_16 {dimension_numbers = #tpu.dot_dimension_numbers<[1], [0], [0], [1], [0, 0, 1, 1], [], []>} : vector<10x32xbf16>, vector<32x32xbf16>, vector<10x32xf32> -> vector<10x32xf32>
    %c0_17 = arith.constant 0 : index
    %c0_18 = arith.constant 0 : index
    %c0_19 = arith.constant 0 : index
    %21 = vector.load %arg10[%c0_17, %c0_18, %c0_19] : memref<3x1x32xf32, #tpu.memory_space<vmem>>, vector<1x1x32xf32>
    %22 = vector.shape_cast %21 : vector<1x1x32xf32> to vector<1x32xf32>
    %23 = vector.broadcast %22 : vector<1x32xf32> to vector<10x32xf32>
    %24 = arith.addf %20, %23 : vector<10x32xf32>
    %cst_20 = arith.constant 0.000000e+00 : f32
    %25 = vector.broadcast %cst_20 : f32 to vector<10x32xf32>
    %26 = arith.maximumf %24, %25 : vector<10x32xf32>
    %27 = arith.addf %6, %26 : vector<10x32xf32>
    %c1 = arith.constant 1 : index
    %c0_21 = arith.constant 0 : index
    %c0_22 = arith.constant 0 : index
    %28 = vector.load %arg7[%c1, %c0_21, %c0_22] : memref<3x32x32xbf16, #tpu.memory_space<vmem>>, vector<1x32x32xbf16>
    %29 = vector.shape_cast %28 : vector<1x32x32xbf16> to vector<32x32xbf16>
    %30 = arith.truncf %27 : vector<10x32xf32> to vector<10x32xbf16>
    %cst_23 = arith.constant dense<0.000000e+00> : vector<10x32xf32>
    %31 = tpu.matmul %30, %29, %cst_23 {dimension_numbers = #tpu.dot_dimension_numbers<[1], [0], [0], [1], [0, 0, 1, 1], [], []>} : vector<10x32xbf16>, vector<32x32xbf16>, vector<10x32xf32> -> vector<10x32xf32>
    %c1_24 = arith.constant 1 : index
    %c0_25 = arith.constant 0 : index
    %c0_26 = arith.constant 0 : index
    %32 = vector.load %arg8[%c1_24, %c0_25, %c0_26] : memref<3x1x32xf32, #tpu.memory_space<vmem>>, vector<1x1x32xf32>
    %33 = vector.shape_cast %32 : vector<1x1x32xf32> to vector<1x32xf32>
    %34 = vector.broadcast %33 : vector<1x32xf32> to vector<10x32xf32>
    %35 = arith.addf %31, %34 : vector<10x32xf32>
    %cst_27 = arith.constant 0.000000e+00 : f32
    %36 = vector.broadcast %cst_27 : f32 to vector<10x32xf32>
    %37 = arith.maximumf %35, %36 : vector<10x32xf32>
    %c1_28 = arith.constant 1 : index
    %c0_29 = arith.constant 0 : index
    %c0_30 = arith.constant 0 : index
    %38 = vector.load %arg9[%c1_28, %c0_29, %c0_30] : memref<3x32x32xbf16, #tpu.memory_space<vmem>>, vector<1x32x32xbf16>
    %39 = vector.shape_cast %38 : vector<1x32x32xbf16> to vector<32x32xbf16>
    %40 = arith.truncf %37 : vector<10x32xf32> to vector<10x32xbf16>
    %cst_31 = arith.constant dense<0.000000e+00> : vector<10x32xf32>
    %41 = tpu.matmul %40, %39, %cst_31 {dimension_numbers = #tpu.dot_dimension_numbers<[1], [0], [0], [1], [0, 0, 1, 1], [], []>} : vector<10x32xbf16>, vector<32x32xbf16>, vector<10x32xf32> -> vector<10x32xf32>
    %c1_32 = arith.constant 1 : index
    %c0_33 = arith.constant 0 : index
    %c0_34 = arith.constant 0 : index
    %42 = vector.load %arg10[%c1_32, %c0_33, %c0_34] : memref<3x1x32xf32, #tpu.memory_space<vmem>>, vector<1x1x32xf32>
    %43 = vector.shape_cast %42 : vector<1x1x32xf32> to vector<1x32xf32>
    %44 = vector.broadcast %43 : vector<1x32xf32> to vector<10x32xf32>
    %45 = arith.addf %41, %44 : vector<10x32xf32>
    %cst_35 = arith.constant 0.000000e+00 : f32
    %46 = vector.broadcast %cst_35 : f32 to vector<10x32xf32>
    %47 = arith.maximumf %45, %46 : vector<10x32xf32>
    %48 = arith.addf %27, %47 : vector<10x32xf32>
    %c2 = arith.constant 2 : index
    %c0_36 = arith.constant 0 : index
    %c0_37 = arith.constant 0 : index
    %49 = vector.load %arg7[%c2, %c0_36, %c0_37] : memref<3x32x32xbf16, #tpu.memory_space<vmem>>, vector<1x32x32xbf16>
    %50 = vector.shape_cast %49 : vector<1x32x32xbf16> to vector<32x32xbf16>
    %51 = arith.truncf %48 : vector<10x32xf32> to vector<10x32xbf16>
    %cst_38 = arith.constant dense<0.000000e+00> : vector<10x32xf32>
    %52 = tpu.matmul %51, %50, %cst_38 {dimension_numbers = #tpu.dot_dimension_numbers<[1], [0], [0], [1], [0, 0, 1, 1], [], []>} : vector<10x32xbf16>, vector<32x32xbf16>, vector<10x32xf32> -> vector<10x32xf32>
    %c2_39 = arith.constant 2 : index
    %c0_40 = arith.constant 0 : index
    %c0_41 = arith.constant 0 : index
    %53 = vector.load %arg8[%c2_39, %c0_40, %c0_41] : memref<3x1x32xf32, #tpu.memory_space<vmem>>, vector<1x1x32xf32>
    %54 = vector.shape_cast %53 : vector<1x1x32xf32> to vector<1x32xf32>
    %55 = vector.broadcast %54 : vector<1x32xf32> to vector<10x32xf32>
    %56 = arith.addf %52, %55 : vector<10x32xf32>
    %cst_42 = arith.constant 0.000000e+00 : f32
    %57 = vector.broadcast %cst_42 : f32 to vector<10x32xf32>
    %58 = arith.maximumf %56, %57 : vector<10x32xf32>
    %c2_43 = arith.constant 2 : index
    %c0_44 = arith.constant 0 : index
    %c0_45 = arith.constant 0 : index
    %59 = vector.load %arg9[%c2_43, %c0_44, %c0_45] : memref<3x32x32xbf16, #tpu.memory_space<vmem>>, vector<1x32x32xbf16>
    %60 = vector.shape_cast %59 : vector<1x32x32xbf16> to vector<32x32xbf16>
    %61 = arith.truncf %58 : vector<10x32xf32> to vector<10x32xbf16>
    %cst_46 = arith.constant dense<0.000000e+00> : vector<10x32xf32>
    %62 = tpu.matmul %61, %60, %cst_46 {dimension_numbers = #tpu.dot_dimension_numbers<[1], [0], [0], [1], [0, 0, 1, 1], [], []>} : vector<10x32xbf16>, vector<32x32xbf16>, vector<10x32xf32> -> vector<10x32xf32>
    %c2_47 = arith.constant 2 : index
    %c0_48 = arith.constant 0 : index
    %c0_49 = arith.constant 0 : index
    %63 = vector.load %arg10[%c2_47, %c0_48, %c0_49] : memref<3x1x32xf32, #tpu.memory_space<vmem>>, vector<1x1x32xf32>
    %64 = vector.shape_cast %63 : vector<1x1x32xf32> to vector<1x32xf32>
    %65 = vector.broadcast %64 : vector<1x32xf32> to vector<10x32xf32>
    %66 = arith.addf %62, %65 : vector<10x32xf32>
    %cst_50 = arith.constant 0.000000e+00 : f32
    %67 = vector.broadcast %cst_50 : f32 to vector<10x32xf32>
    %68 = arith.maximumf %66, %67 : vector<10x32xf32>
    %69 = arith.addf %48, %68 : vector<10x32xf32>
    %c0_51 = arith.constant 0 : index
    %c0_52 = arith.constant 0 : index
    %70 = vector.load %arg1[%c0_51, %c0_52] : memref<10x32xf32, #tpu.memory_space<vmem>>, vector<10x32xf32>
    %c0_53 = arith.constant 0 : index
    %c0_54 = arith.constant 0 : index
    %71 = vector.load %arg11[%c0_53, %c0_54] : memref<32x32xbf16, #tpu.memory_space<vmem>>, vector<32x32xbf16>
    %72 = arith.truncf %70 : vector<10x32xf32> to vector<10x32xbf16>
    %cst_55 = arith.constant dense<0.000000e+00> : vector<10x32xf32>
    %73 = tpu.matmul %72, %71, %cst_55 {dimension_numbers = #tpu.dot_dimension_numbers<[1], [0], [0], [1], [0, 0, 1, 1], [], []>} : vector<10x32xbf16>, vector<32x32xbf16>, vector<10x32xf32> -> vector<10x32xf32>
    %c0_56 = arith.constant 0 : index
    %c0_57 = arith.constant 0 : index
    %74 = vector.load %arg12[%c0_56, %c0_57] : memref<1x32xf32, #tpu.memory_space<vmem>>, vector<1x32xf32>
    %75 = vector.broadcast %74 : vector<1x32xf32> to vector<10x32xf32>
    %76 = arith.addf %73, %75 : vector<10x32xf32>
    %c0_58 = arith.constant 0 : index
    %c0_59 = arith.constant 0 : index
    %c0_60 = arith.constant 0 : index
    %77 = vector.load %arg13[%c0_58, %c0_59, %c0_60] : memref<3x32x32xbf16, #tpu.memory_space<vmem>>, vector<1x32x32xbf16>
    %78 = vector.shape_cast %77 : vector<1x32x32xbf16> to vector<32x32xbf16>
    %79 = arith.truncf %76 : vector<10x32xf32> to vector<10x32xbf16>
    %cst_61 = arith.constant dense<0.000000e+00> : vector<10x32xf32>
    %80 = tpu.matmul %79, %78, %cst_61 {dimension_numbers = #tpu.dot_dimension_numbers<[1], [0], [0], [1], [0, 0, 1, 1], [], []>} : vector<10x32xbf16>, vector<32x32xbf16>, vector<10x32xf32> -> vector<10x32xf32>
    %c0_62 = arith.constant 0 : index
    %c0_63 = arith.constant 0 : index
    %c0_64 = arith.constant 0 : index
    %81 = vector.load %arg14[%c0_62, %c0_63, %c0_64] : memref<3x1x32xf32, #tpu.memory_space<vmem>>, vector<1x1x32xf32>
    %82 = vector.shape_cast %81 : vector<1x1x32xf32> to vector<1x32xf32>
    %83 = vector.broadcast %82 : vector<1x32xf32> to vector<10x32xf32>
    %84 = arith.addf %80, %83 : vector<10x32xf32>
    %cst_65 = arith.constant 0.000000e+00 : f32
    %85 = vector.broadcast %cst_65 : f32 to vector<10x32xf32>
    %86 = arith.maximumf %84, %85 : vector<10x32xf32>
    %c0_66 = arith.constant 0 : index
    %c0_67 = arith.constant 0 : index
    %c0_68 = arith.constant 0 : index
    %87 = vector.load %arg15[%c0_66, %c0_67, %c0_68] : memref<3x32x32xbf16, #tpu.memory_space<vmem>>, vector<1x32x32xbf16>
    %88 = vector.shape_cast %87 : vector<1x32x32xbf16> to vector<32x32xbf16>
    %89 = arith.truncf %86 : vector<10x32xf32> to vector<10x32xbf16>
    %cst_69 = arith.constant dense<0.000000e+00> : vector<10x32xf32>
    %90 = tpu.matmul %89, %88, %cst_69 {dimension_numbers = #tpu.dot_dimension_numbers<[1], [0], [0], [1], [0, 0, 1, 1], [], []>} : vector<10x32xbf16>, vector<32x32xbf16>, vector<10x32xf32> -> vector<10x32xf32>
    %c0_70 = arith.constant 0 : index
    %c0_71 = arith.constant 0 : index
    %c0_72 = arith.constant 0 : index
    %91 = vector.load %arg16[%c0_70, %c0_71, %c0_72] : memref<3x1x32xf32, #tpu.memory_space<vmem>>, vector<1x1x32xf32>
    %92 = vector.shape_cast %91 : vector<1x1x32xf32> to vector<1x32xf32>
    %93 = vector.broadcast %92 : vector<1x32xf32> to vector<10x32xf32>
    %94 = arith.addf %90, %93 : vector<10x32xf32>
    %cst_73 = arith.constant 0.000000e+00 : f32
    %95 = vector.broadcast %cst_73 : f32 to vector<10x32xf32>
    %96 = arith.maximumf %94, %95 : vector<10x32xf32>
    %97 = arith.addf %76, %96 : vector<10x32xf32>
    %c1_74 = arith.constant 1 : index
    %c0_75 = arith.constant 0 : index
    %c0_76 = arith.constant 0 : index
    %98 = vector.load %arg13[%c1_74, %c0_75, %c0_76] : memref<3x32x32xbf16, #tpu.memory_space<vmem>>, vector<1x32x32xbf16>
    %99 = vector.shape_cast %98 : vector<1x32x32xbf16> to vector<32x32xbf16>
    %100 = arith.truncf %97 : vector<10x32xf32> to vector<10x32xbf16>
    %cst_77 = arith.constant dense<0.000000e+00> : vector<10x32xf32>
    %101 = tpu.matmul %100, %99, %cst_77 {dimension_numbers = #tpu.dot_dimension_numbers<[1], [0], [0], [1], [0, 0, 1, 1], [], []>} : vector<10x32xbf16>, vector<32x32xbf16>, vector<10x32xf32> -> vector<10x32xf32>
    %c1_78 = arith.constant 1 : index
    %c0_79 = arith.constant 0 : index
    %c0_80 = arith.constant 0 : index
    %102 = vector.load %arg14[%c1_78, %c0_79, %c0_80] : memref<3x1x32xf32, #tpu.memory_space<vmem>>, vector<1x1x32xf32>
    %103 = vector.shape_cast %102 : vector<1x1x32xf32> to vector<1x32xf32>
    %104 = vector.broadcast %103 : vector<1x32xf32> to vector<10x32xf32>
    %105 = arith.addf %101, %104 : vector<10x32xf32>
    %cst_81 = arith.constant 0.000000e+00 : f32
    %106 = vector.broadcast %cst_81 : f32 to vector<10x32xf32>
    %107 = arith.maximumf %105, %106 : vector<10x32xf32>
    %c1_82 = arith.constant 1 : index
    %c0_83 = arith.constant 0 : index
    %c0_84 = arith.constant 0 : index
    %108 = vector.load %arg15[%c1_82, %c0_83, %c0_84] : memref<3x32x32xbf16, #tpu.memory_space<vmem>>, vector<1x32x32xbf16>
    %109 = vector.shape_cast %108 : vector<1x32x32xbf16> to vector<32x32xbf16>
    %110 = arith.truncf %107 : vector<10x32xf32> to vector<10x32xbf16>
    %cst_85 = arith.constant dense<0.000000e+00> : vector<10x32xf32>
    %111 = tpu.matmul %110, %109, %cst_85 {dimension_numbers = #tpu.dot_dimension_numbers<[1], [0], [0], [1], [0, 0, 1, 1], [], []>} : vector<10x32xbf16>, vector<32x32xbf16>, vector<10x32xf32> -> vector<10x32xf32>
    %c1_86 = arith.constant 1 : index
    %c0_87 = arith.constant 0 : index
    %c0_88 = arith.constant 0 : index
    %112 = vector.load %arg16[%c1_86, %c0_87, %c0_88] : memref<3x1x32xf32, #tpu.memory_space<vmem>>, vector<1x1x32xf32>
    %113 = vector.shape_cast %112 : vector<1x1x32xf32> to vector<1x32xf32>
    %114 = vector.broadcast %113 : vector<1x32xf32> to vector<10x32xf32>
    %115 = arith.addf %111, %114 : vector<10x32xf32>
    %cst_89 = arith.constant 0.000000e+00 : f32
    %116 = vector.broadcast %cst_89 : f32 to vector<10x32xf32>
    %117 = arith.maximumf %115, %116 : vector<10x32xf32>
    %118 = arith.addf %97, %117 : vector<10x32xf32>
    %c2_90 = arith.constant 2 : index
    %c0_91 = arith.constant 0 : index
    %c0_92 = arith.constant 0 : index
    %119 = vector.load %arg13[%c2_90, %c0_91, %c0_92] : memref<3x32x32xbf16, #tpu.memory_space<vmem>>, vector<1x32x32xbf16>
    %120 = vector.shape_cast %119 : vector<1x32x32xbf16> to vector<32x32xbf16>
    %121 = arith.truncf %118 : vector<10x32xf32> to vector<10x32xbf16>
    %cst_93 = arith.constant dense<0.000000e+00> : vector<10x32xf32>
    %122 = tpu.matmul %121, %120, %cst_93 {dimension_numbers = #tpu.dot_dimension_numbers<[1], [0], [0], [1], [0, 0, 1, 1], [], []>} : vector<10x32xbf16>, vector<32x32xbf16>, vector<10x32xf32> -> vector<10x32xf32>
    %c2_94 = arith.constant 2 : index
    %c0_95 = arith.constant 0 : index
    %c0_96 = arith.constant 0 : index
    %123 = vector.load %arg14[%c2_94, %c0_95, %c0_96] : memref<3x1x32xf32, #tpu.memory_space<vmem>>, vector<1x1x32xf32>
    %124 = vector.shape_cast %123 : vector<1x1x32xf32> to vector<1x32xf32>
    %125 = vector.broadcast %124 : vector<1x32xf32> to vector<10x32xf32>
    %126 = arith.addf %122, %125 : vector<10x32xf32>
    %cst_97 = arith.constant 0.000000e+00 : f32
    %127 = vector.broadcast %cst_97 : f32 to vector<10x32xf32>
    %128 = arith.maximumf %126, %127 : vector<10x32xf32>
    %c2_98 = arith.constant 2 : index
    %c0_99 = arith.constant 0 : index
    %c0_100 = arith.constant 0 : index
    %129 = vector.load %arg15[%c2_98, %c0_99, %c0_100] : memref<3x32x32xbf16, #tpu.memory_space<vmem>>, vector<1x32x32xbf16>
    %130 = vector.shape_cast %129 : vector<1x32x32xbf16> to vector<32x32xbf16>
    %131 = arith.truncf %128 : vector<10x32xf32> to vector<10x32xbf16>
    %cst_101 = arith.constant dense<0.000000e+00> : vector<10x32xf32>
    %132 = tpu.matmul %131, %130, %cst_101 {dimension_numbers = #tpu.dot_dimension_numbers<[1], [0], [0], [1], [0, 0, 1, 1], [], []>} : vector<10x32xbf16>, vector<32x32xbf16>, vector<10x32xf32> -> vector<10x32xf32>
    %c2_102 = arith.constant 2 : index
    %c0_103 = arith.constant 0 : index
    %c0_104 = arith.constant 0 : index
    %133 = vector.load %arg16[%c2_102, %c0_103, %c0_104] : memref<3x1x32xf32, #tpu.memory_space<vmem>>, vector<1x1x32xf32>
    %134 = vector.shape_cast %133 : vector<1x1x32xf32> to vector<1x32xf32>
    %135 = vector.broadcast %134 : vector<1x32xf32> to vector<10x32xf32>
    %136 = arith.addf %132, %135 : vector<10x32xf32>
    %cst_105 = arith.constant 0.000000e+00 : f32
    %137 = vector.broadcast %cst_105 : f32 to vector<10x32xf32>
    %138 = arith.maximumf %136, %137 : vector<10x32xf32>
    %139 = arith.addf %118, %138 : vector<10x32xf32>
    %140 = tpu.concatenate %69, %69 in 0 : vector<10x32xf32>, vector<10x32xf32> -> vector<20x32xf32>
    %c0_106 = arith.constant 0 : index
    %c0_107 = arith.constant 0 : index
    %141 = vector.load %arg2[%c0_106, %c0_107] : memref<20x32xf32, #tpu.memory_space<vmem>>, vector<20x32xf32>
    %142 = arith.addf %140, %141 : vector<20x32xf32>
    %143 = tpu.concatenate %139, %139 in 0 : vector<10x32xf32>, vector<10x32xf32> -> vector<20x32xf32>
    %c0_108 = arith.constant 0 : index
    %c0_109 = arith.constant 0 : index
    %144 = vector.load %arg3[%c0_108, %c0_109] : memref<20x32xf32, #tpu.memory_space<vmem>>, vector<20x32xf32>
    %145 = arith.addf %143, %144 : vector<20x32xf32>
    %146 = tpu.concatenate %142, %145 in 0 : vector<20x32xf32>, vector<20x32xf32> -> vector<40x32xf32>
    %c0_110 = arith.constant 0 : index
    %c0_111 = arith.constant 0 : index
    %147 = vector.load %arg4[%c0_110, %c0_111] : memref<1x32xf32, #tpu.memory_space<vmem>>, vector<1x32xf32>
    %148 = vector.broadcast %147 : vector<1x32xf32> to vector<20x32xf32>
    %149 = arith.mulf %142, %148 : vector<20x32xf32>
    %cst_112 = arith.constant dense<0.000000e+00> : vector<20xf32>
    %150 = vector.multi_reduction <add>, %149, %cst_112 [1] : vector<20x32xf32> to vector<20xf32>
    %151 = vector.shape_cast %150 : vector<20xf32> to vector<20x1xf32>
    %c0_113 = arith.constant 0 : index
    %c0_114 = arith.constant 0 : index
    %152 = vector.load %arg46[%c0_113, %c0_114] : memref<20x1xf32, #tpu.memory_space<vmem>>, vector<20x1xf32>
    tpu.vector_store %arg46[%c0_113, %c0_114], %151 {strides = array<i32>} : memref<20x1xf32, #tpu.memory_space<vmem>>, vector<20x1xf32>,
    %c0_115 = arith.constant 0 : index
    %c0_116 = arith.constant 0 : index
    %153 = vector.load %arg17[%c0_115, %c0_116] : memref<32x32xbf16, #tpu.memory_space<vmem>>, vector<32x32xbf16>
    %154 = arith.truncf %142 : vector<20x32xf32> to vector<20x32xbf16>
    %cst_117 = arith.constant dense<0.000000e+00> : vector<20x32xf32>
    %155 = tpu.matmul %154, %153, %cst_117 {dimension_numbers = #tpu.dot_dimension_numbers<[1], [0], [0], [1], [0, 0, 1, 1], [], []>} : vector<20x32xbf16>, vector<32x32xbf16>, vector<20x32xf32> -> vector<20x32xf32>
    %c0_118 = arith.constant 0 : index
    %c0_119 = arith.constant 0 : index
    %156 = vector.load %arg18[%c0_118, %c0_119] : memref<1x32xf32, #tpu.memory_space<vmem>>, vector<1x32xf32>
    %157 = vector.broadcast %156 : vector<1x32xf32> to vector<20x32xf32>
    %158 = arith.addf %155, %157 : vector<20x32xf32>
    %c0_120 = arith.constant 0 : index
    %c0_121 = arith.constant 0 : index
    %c0_122 = arith.constant 0 : index
    %159 = vector.load %arg19[%c0_120, %c0_121, %c0_122] : memref<3x32x32xbf16, #tpu.memory_space<vmem>>, vector<1x32x32xbf16>
    %160 = vector.shape_cast %159 : vector<1x32x32xbf16> to vector<32x32xbf16>
    %161 = arith.truncf %158 : vector<20x32xf32> to vector<20x32xbf16>
    %cst_123 = arith.constant dense<0.000000e+00> : vector<20x32xf32>
    %162 = tpu.matmul %161, %160, %cst_123 {dimension_numbers = #tpu.dot_dimension_numbers<[1], [0], [0], [1], [0, 0, 1, 1], [], []>} : vector<20x32xbf16>, vector<32x32xbf16>, vector<20x32xf32> -> vector<20x32xf32>
    %c0_124 = arith.constant 0 : index
    %c0_125 = arith.constant 0 : index
    %c0_126 = arith.constant 0 : index
    %163 = vector.load %arg20[%c0_124, %c0_125, %c0_126] : memref<3x1x32xf32, #tpu.memory_space<vmem>>, vector<1x1x32xf32>
    %164 = vector.shape_cast %163 : vector<1x1x32xf32> to vector<1x32xf32>
    %165 = vector.broadcast %164 : vector<1x32xf32> to vector<20x32xf32>
    %166 = arith.addf %162, %165 : vector<20x32xf32>
    %cst_127 = arith.constant 0.000000e+00 : f32
    %167 = vector.broadcast %cst_127 : f32 to vector<20x32xf32>
    %168 = arith.maximumf %166, %167 : vector<20x32xf32>
    %c0_128 = arith.constant 0 : index
    %c0_129 = arith.constant 0 : index
    %c0_130 = arith.constant 0 : index
    %169 = vector.load %arg21[%c0_128, %c0_129, %c0_130] : memref<3x32x32xbf16, #tpu.memory_space<vmem>>, vector<1x32x32xbf16>
    %170 = vector.shape_cast %169 : vector<1x32x32xbf16> to vector<32x32xbf16>
    %171 = arith.truncf %168 : vector<20x32xf32> to vector<20x32xbf16>
    %cst_131 = arith.constant dense<0.000000e+00> : vector<20x32xf32>
    %172 = tpu.matmul %171, %170, %cst_131 {dimension_numbers = #tpu.dot_dimension_numbers<[1], [0], [0], [1], [0, 0, 1, 1], [], []>} : vector<20x32xbf16>, vector<32x32xbf16>, vector<20x32xf32> -> vector<20x32xf32>
    %c0_132 = arith.constant 0 : index
    %c0_133 = arith.constant 0 : index
    %c0_134 = arith.constant 0 : index
    %173 = vector.load %arg22[%c0_132, %c0_133, %c0_134] : memref<3x1x32xf32, #tpu.memory_space<vmem>>, vector<1x1x32xf32>
    %174 = vector.shape_cast %173 : vector<1x1x32xf32> to vector<1x32xf32>
    %175 = vector.broadcast %174 : vector<1x32xf32> to vector<20x32xf32>
    %176 = arith.addf %172, %175 : vector<20x32xf32>
    %cst_135 = arith.constant 0.000000e+00 : f32
    %177 = vector.broadcast %cst_135 : f32 to vector<20x32xf32>
    %178 = arith.maximumf %176, %177 : vector<20x32xf32>
    %179 = arith.addf %158, %178 : vector<20x32xf32>
    %c1_136 = arith.constant 1 : index
    %c0_137 = arith.constant 0 : index
    %c0_138 = arith.constant 0 : index
    %180 = vector.load %arg19[%c1_136, %c0_137, %c0_138] : memref<3x32x32xbf16, #tpu.memory_space<vmem>>, vector<1x32x32xbf16>
    %181 = vector.shape_cast %180 : vector<1x32x32xbf16> to vector<32x32xbf16>
    %182 = arith.truncf %179 : vector<20x32xf32> to vector<20x32xbf16>
    %cst_139 = arith.constant dense<0.000000e+00> : vector<20x32xf32>
    %183 = tpu.matmul %182, %181, %cst_139 {dimension_numbers = #tpu.dot_dimension_numbers<[1], [0], [0], [1], [0, 0, 1, 1], [], []>} : vector<20x32xbf16>, vector<32x32xbf16>, vector<20x32xf32> -> vector<20x32xf32>
    %c1_140 = arith.constant 1 : index
    %c0_141 = arith.constant 0 : index
    %c0_142 = arith.constant 0 : index
    %184 = vector.load %arg20[%c1_140, %c0_141, %c0_142] : memref<3x1x32xf32, #tpu.memory_space<vmem>>, vector<1x1x32xf32>
    %185 = vector.shape_cast %184 : vector<1x1x32xf32> to vector<1x32xf32>
    %186 = vector.broadcast %185 : vector<1x32xf32> to vector<20x32xf32>
    %187 = arith.addf %183, %186 : vector<20x32xf32>
    %cst_143 = arith.constant 0.000000e+00 : f32
    %188 = vector.broadcast %cst_143 : f32 to vector<20x32xf32>
    %189 = arith.maximumf %187, %188 : vector<20x32xf32>
    %c1_144 = arith.constant 1 : index
    %c0_145 = arith.constant 0 : index
    %c0_146 = arith.constant 0 : index
    %190 = vector.load %arg21[%c1_144, %c0_145, %c0_146] : memref<3x32x32xbf16, #tpu.memory_space<vmem>>, vector<1x32x32xbf16>
    %191 = vector.shape_cast %190 : vector<1x32x32xbf16> to vector<32x32xbf16>
    %192 = arith.truncf %189 : vector<20x32xf32> to vector<20x32xbf16>
    %cst_147 = arith.constant dense<0.000000e+00> : vector<20x32xf32>
    %193 = tpu.matmul %192, %191, %cst_147 {dimension_numbers = #tpu.dot_dimension_numbers<[1], [0], [0], [1], [0, 0, 1, 1], [], []>} : vector<20x32xbf16>, vector<32x32xbf16>, vector<20x32xf32> -> vector<20x32xf32>
    %c1_148 = arith.constant 1 : index
    %c0_149 = arith.constant 0 : index
    %c0_150 = arith.constant 0 : index
    %194 = vector.load %arg22[%c1_148, %c0_149, %c0_150] : memref<3x1x32xf32, #tpu.memory_space<vmem>>, vector<1x1x32xf32>
    %195 = vector.shape_cast %194 : vector<1x1x32xf32> to vector<1x32xf32>
    %196 = vector.broadcast %195 : vector<1x32xf32> to vector<20x32xf32>
    %197 = arith.addf %193, %196 : vector<20x32xf32>
    %cst_151 = arith.constant 0.000000e+00 : f32
    %198 = vector.broadcast %cst_151 : f32 to vector<20x32xf32>
    %199 = arith.maximumf %197, %198 : vector<20x32xf32>
    %200 = arith.addf %179, %199 : vector<20x32xf32>
    %c2_152 = arith.constant 2 : index
    %c0_153 = arith.constant 0 : index
    %c0_154 = arith.constant 0 : index
    %201 = vector.load %arg19[%c2_152, %c0_153, %c0_154] : memref<3x32x32xbf16, #tpu.memory_space<vmem>>, vector<1x32x32xbf16>
    %202 = vector.shape_cast %201 : vector<1x32x32xbf16> to vector<32x32xbf16>
    %203 = arith.truncf %200 : vector<20x32xf32> to vector<20x32xbf16>
    %cst_155 = arith.constant dense<0.000000e+00> : vector<20x32xf32>
    %204 = tpu.matmul %203, %202, %cst_155 {dimension_numbers = #tpu.dot_dimension_numbers<[1], [0], [0], [1], [0, 0, 1, 1], [], []>} : vector<20x32xbf16>, vector<32x32xbf16>, vector<20x32xf32> -> vector<20x32xf32>
    %c2_156 = arith.constant 2 : index
    %c0_157 = arith.constant 0 : index
    %c0_158 = arith.constant 0 : index
    %205 = vector.load %arg20[%c2_156, %c0_157, %c0_158] : memref<3x1x32xf32, #tpu.memory_space<vmem>>, vector<1x1x32xf32>
    %206 = vector.shape_cast %205 : vector<1x1x32xf32> to vector<1x32xf32>
    %207 = vector.broadcast %206 : vector<1x32xf32> to vector<20x32xf32>
    %208 = arith.addf %204, %207 : vector<20x32xf32>
    %cst_159 = arith.constant 0.000000e+00 : f32
    %209 = vector.broadcast %cst_159 : f32 to vector<20x32xf32>
    %210 = arith.maximumf %208, %209 : vector<20x32xf32>
    %c2_160 = arith.constant 2 : index
    %c0_161 = arith.constant 0 : index
    %c0_162 = arith.constant 0 : index
    %211 = vector.load %arg21[%c2_160, %c0_161, %c0_162] : memref<3x32x32xbf16, #tpu.memory_space<vmem>>, vector<1x32x32xbf16>
    %212 = vector.shape_cast %211 : vector<1x32x32xbf16> to vector<32x32xbf16>
    %213 = arith.truncf %210 : vector<20x32xf32> to vector<20x32xbf16>
    %cst_163 = arith.constant dense<0.000000e+00> : vector<20x32xf32>
    %214 = tpu.matmul %213, %212, %cst_163 {dimension_numbers = #tpu.dot_dimension_numbers<[1], [0], [0], [1], [0, 0, 1, 1], [], []>} : vector<20x32xbf16>, vector<32x32xbf16>, vector<20x32xf32> -> vector<20x32xf32>
    %c2_164 = arith.constant 2 : index
    %c0_165 = arith.constant 0 : index
    %c0_166 = arith.constant 0 : index
    %215 = vector.load %arg22[%c2_164, %c0_165, %c0_166] : memref<3x1x32xf32, #tpu.memory_space<vmem>>, vector<1x1x32xf32>
    %216 = vector.shape_cast %215 : vector<1x1x32xf32> to vector<1x32xf32>
    %217 = vector.broadcast %216 : vector<1x32xf32> to vector<20x32xf32>
    %218 = arith.addf %214, %217 : vector<20x32xf32>
    %cst_167 = arith.constant 0.000000e+00 : f32
    %219 = vector.broadcast %cst_167 : f32 to vector<20x32xf32>
    %220 = arith.maximumf %218, %219 : vector<20x32xf32>
    %221 = arith.addf %200, %220 : vector<20x32xf32>
    %c0_168 = arith.constant 0 : index
    %c0_169 = arith.constant 0 : index
    %222 = vector.load %arg43[%c0_168, %c0_169] : memref<20x32xf32, #tpu.memory_space<vmem>>, vector<20x32xf32>
    tpu.vector_store %arg43[%c0_168, %c0_169], %221 {strides = array<i32>} : memref<20x32xf32, #tpu.memory_space<vmem>>, vector<20x32xf32>,
    %c0_170 = arith.constant 0 : index
    %c0_171 = arith.constant 0 : index
    %223 = vector.load %arg23[%c0_170, %c0_171] : memref<32x32xbf16, #tpu.memory_space<vmem>>, vector<32x32xbf16>
    %224 = arith.truncf %146 : vector<40x32xf32> to vector<40x32xbf16>
    %cst_172 = arith.constant dense<0.000000e+00> : vector<40x32xf32>
    %225 = tpu.matmul %224, %223, %cst_172 {dimension_numbers = #tpu.dot_dimension_numbers<[1], [0], [0], [1], [0, 0, 1, 1], [], []>} : vector<40x32xbf16>, vector<32x32xbf16>, vector<40x32xf32> -> vector<40x32xf32>
    %c0_173 = arith.constant 0 : index
    %c0_174 = arith.constant 0 : index
    %226 = vector.load %arg24[%c0_173, %c0_174] : memref<1x32xf32, #tpu.memory_space<vmem>>, vector<1x32xf32>
    %227 = vector.broadcast %226 : vector<1x32xf32> to vector<40x32xf32>
    %228 = arith.addf %225, %227 : vector<40x32xf32>
    %c0_175 = arith.constant 0 : index
    %c0_176 = arith.constant 0 : index
    %c0_177 = arith.constant 0 : index
    %229 = vector.load %arg25[%c0_175, %c0_176, %c0_177] : memref<3x32x32xbf16, #tpu.memory_space<vmem>>, vector<1x32x32xbf16>
    %230 = vector.shape_cast %229 : vector<1x32x32xbf16> to vector<32x32xbf16>
    %231 = arith.truncf %228 : vector<40x32xf32> to vector<40x32xbf16>
    %cst_178 = arith.constant dense<0.000000e+00> : vector<40x32xf32>
    %232 = tpu.matmul %231, %230, %cst_178 {dimension_numbers = #tpu.dot_dimension_numbers<[1], [0], [0], [1], [0, 0, 1, 1], [], []>} : vector<40x32xbf16>, vector<32x32xbf16>, vector<40x32xf32> -> vector<40x32xf32>
    %c0_179 = arith.constant 0 : index
    %c0_180 = arith.constant 0 : index
    %c0_181 = arith.constant 0 : index
    %233 = vector.load %arg26[%c0_179, %c0_180, %c0_181] : memref<3x1x32xf32, #tpu.memory_space<vmem>>, vector<1x1x32xf32>
    %234 = vector.shape_cast %233 : vector<1x1x32xf32> to vector<1x32xf32>
    %235 = vector.broadcast %234 : vector<1x32xf32> to vector<40x32xf32>
    %236 = arith.addf %232, %235 : vector<40x32xf32>
    %cst_182 = arith.constant 0.000000e+00 : f32
    %237 = vector.broadcast %cst_182 : f32 to vector<40x32xf32>
    %238 = arith.maximumf %236, %237 : vector<40x32xf32>
    %c0_183 = arith.constant 0 : index
    %c0_184 = arith.constant 0 : index
    %c0_185 = arith.constant 0 : index
    %239 = vector.load %arg27[%c0_183, %c0_184, %c0_185] : memref<3x32x32xbf16, #tpu.memory_space<vmem>>, vector<1x32x32xbf16>
    %240 = vector.shape_cast %239 : vector<1x32x32xbf16> to vector<32x32xbf16>
    %241 = arith.truncf %238 : vector<40x32xf32> to vector<40x32xbf16>
    %cst_186 = arith.constant dense<0.000000e+00> : vector<40x32xf32>
    %242 = tpu.matmul %241, %240, %cst_186 {dimension_numbers = #tpu.dot_dimension_numbers<[1], [0], [0], [1], [0, 0, 1, 1], [], []>} : vector<40x32xbf16>, vector<32x32xbf16>, vector<40x32xf32> -> vector<40x32xf32>
    %c0_187 = arith.constant 0 : index
    %c0_188 = arith.constant 0 : index
    %c0_189 = arith.constant 0 : index
    %243 = vector.load %arg28[%c0_187, %c0_188, %c0_189] : memref<3x1x32xf32, #tpu.memory_space<vmem>>, vector<1x1x32xf32>
    %244 = vector.shape_cast %243 : vector<1x1x32xf32> to vector<1x32xf32>
    %245 = vector.broadcast %244 : vector<1x32xf32> to vector<40x32xf32>
    %246 = arith.addf %242, %245 : vector<40x32xf32>
    %cst_190 = arith.constant 0.000000e+00 : f32
    %247 = vector.broadcast %cst_190 : f32 to vector<40x32xf32>
    %248 = arith.maximumf %246, %247 : vector<40x32xf32>
    %249 = arith.addf %228, %248 : vector<40x32xf32>
    %c1_191 = arith.constant 1 : index
    %c0_192 = arith.constant 0 : index
    %c0_193 = arith.constant 0 : index
    %250 = vector.load %arg25[%c1_191, %c0_192, %c0_193] : memref<3x32x32xbf16, #tpu.memory_space<vmem>>, vector<1x32x32xbf16>
    %251 = vector.shape_cast %250 : vector<1x32x32xbf16> to vector<32x32xbf16>
    %252 = arith.truncf %249 : vector<40x32xf32> to vector<40x32xbf16>
    %cst_194 = arith.constant dense<0.000000e+00> : vector<40x32xf32>
    %253 = tpu.matmul %252, %251, %cst_194 {dimension_numbers = #tpu.dot_dimension_numbers<[1], [0], [0], [1], [0, 0, 1, 1], [], []>} : vector<40x32xbf16>, vector<32x32xbf16>, vector<40x32xf32> -> vector<40x32xf32>
    %c1_195 = arith.constant 1 : index
    %c0_196 = arith.constant 0 : index
    %c0_197 = arith.constant 0 : index
    %254 = vector.load %arg26[%c1_195, %c0_196, %c0_197] : memref<3x1x32xf32, #tpu.memory_space<vmem>>, vector<1x1x32xf32>
    %255 = vector.shape_cast %254 : vector<1x1x32xf32> to vector<1x32xf32>
    %256 = vector.broadcast %255 : vector<1x32xf32> to vector<40x32xf32>
    %257 = arith.addf %253, %256 : vector<40x32xf32>
    %cst_198 = arith.constant 0.000000e+00 : f32
    %258 = vector.broadcast %cst_198 : f32 to vector<40x32xf32>
    %259 = arith.maximumf %257, %258 : vector<40x32xf32>
    %c1_199 = arith.constant 1 : index
    %c0_200 = arith.constant 0 : index
    %c0_201 = arith.constant 0 : index
    %260 = vector.load %arg27[%c1_199, %c0_200, %c0_201] : memref<3x32x32xbf16, #tpu.memory_space<vmem>>, vector<1x32x32xbf16>
    %261 = vector.shape_cast %260 : vector<1x32x32xbf16> to vector<32x32xbf16>
    %262 = arith.truncf %259 : vector<40x32xf32> to vector<40x32xbf16>
    %cst_202 = arith.constant dense<0.000000e+00> : vector<40x32xf32>
    %263 = tpu.matmul %262, %261, %cst_202 {dimension_numbers = #tpu.dot_dimension_numbers<[1], [0], [0], [1], [0, 0, 1, 1], [], []>} : vector<40x32xbf16>, vector<32x32xbf16>, vector<40x32xf32> -> vector<40x32xf32>
    %c1_203 = arith.constant 1 : index
    %c0_204 = arith.constant 0 : index
    %c0_205 = arith.constant 0 : index
    %264 = vector.load %arg28[%c1_203, %c0_204, %c0_205] : memref<3x1x32xf32, #tpu.memory_space<vmem>>, vector<1x1x32xf32>
    %265 = vector.shape_cast %264 : vector<1x1x32xf32> to vector<1x32xf32>
    %266 = vector.broadcast %265 : vector<1x32xf32> to vector<40x32xf32>
    %267 = arith.addf %263, %266 : vector<40x32xf32>
    %cst_206 = arith.constant 0.000000e+00 : f32
    %268 = vector.broadcast %cst_206 : f32 to vector<40x32xf32>
    %269 = arith.maximumf %267, %268 : vector<40x32xf32>
    %270 = arith.addf %249, %269 : vector<40x32xf32>
    %c2_207 = arith.constant 2 : index
    %c0_208 = arith.constant 0 : index
    %c0_209 = arith.constant 0 : index
    %271 = vector.load %arg25[%c2_207, %c0_208, %c0_209] : memref<3x32x32xbf16, #tpu.memory_space<vmem>>, vector<1x32x32xbf16>
    %272 = vector.shape_cast %271 : vector<1x32x32xbf16> to vector<32x32xbf16>
    %273 = arith.truncf %270 : vector<40x32xf32> to vector<40x32xbf16>
    %cst_210 = arith.constant dense<0.000000e+00> : vector<40x32xf32>
    %274 = tpu.matmul %273, %272, %cst_210 {dimension_numbers = #tpu.dot_dimension_numbers<[1], [0], [0], [1], [0, 0, 1, 1], [], []>} : vector<40x32xbf16>, vector<32x32xbf16>, vector<40x32xf32> -> vector<40x32xf32>
    %c2_211 = arith.constant 2 : index
    %c0_212 = arith.constant 0 : index
    %c0_213 = arith.constant 0 : index
    %275 = vector.load %arg26[%c2_211, %c0_212, %c0_213] : memref<3x1x32xf32, #tpu.memory_space<vmem>>, vector<1x1x32xf32>
    %276 = vector.shape_cast %275 : vector<1x1x32xf32> to vector<1x32xf32>
    %277 = vector.broadcast %276 : vector<1x32xf32> to vector<40x32xf32>
    %278 = arith.addf %274, %277 : vector<40x32xf32>
    %cst_214 = arith.constant 0.000000e+00 : f32
    %279 = vector.broadcast %cst_214 : f32 to vector<40x32xf32>
    %280 = arith.maximumf %278, %279 : vector<40x32xf32>
    %c2_215 = arith.constant 2 : index
    %c0_216 = arith.constant 0 : index
    %c0_217 = arith.constant 0 : index
    %281 = vector.load %arg27[%c2_215, %c0_216, %c0_217] : memref<3x32x32xbf16, #tpu.memory_space<vmem>>, vector<1x32x32xbf16>
    %282 = vector.shape_cast %281 : vector<1x32x32xbf16> to vector<32x32xbf16>
    %283 = arith.truncf %280 : vector<40x32xf32> to vector<40x32xbf16>
    %cst_218 = arith.constant dense<0.000000e+00> : vector<40x32xf32>
    %284 = tpu.matmul %283, %282, %cst_218 {dimension_numbers = #tpu.dot_dimension_numbers<[1], [0], [0], [1], [0, 0, 1, 1], [], []>} : vector<40x32xbf16>, vector<32x32xbf16>, vector<40x32xf32> -> vector<40x32xf32>
    %c2_219 = arith.constant 2 : index
    %c0_220 = arith.constant 0 : index
    %c0_221 = arith.constant 0 : index
    %285 = vector.load %arg28[%c2_219, %c0_220, %c0_221] : memref<3x1x32xf32, #tpu.memory_space<vmem>>, vector<1x1x32xf32>
    %286 = vector.shape_cast %285 : vector<1x1x32xf32> to vector<1x32xf32>
    %287 = vector.broadcast %286 : vector<1x32xf32> to vector<40x32xf32>
    %288 = arith.addf %284, %287 : vector<40x32xf32>
    %cst_222 = arith.constant 0.000000e+00 : f32
    %289 = vector.broadcast %cst_222 : f32 to vector<40x32xf32>
    %290 = arith.maximumf %288, %289 : vector<40x32xf32>
    %291 = arith.addf %270, %290 : vector<40x32xf32>
    %c0_223 = arith.constant 0 : index
    %c0_224 = arith.constant 0 : index
    %292 = vector.load %arg44[%c0_223, %c0_224] : memref<40x32xf32, #tpu.memory_space<vmem>>, vector<40x32xf32>
    tpu.vector_store %arg44[%c0_223, %c0_224], %291 {strides = array<i32>} : memref<40x32xf32, #tpu.memory_space<vmem>>, vector<40x32xf32>,
    %c0_225 = arith.constant 0 : index
    %c0_226 = arith.constant 0 : index
    %293 = vector.load %arg29[%c0_225, %c0_226] : memref<32x32xbf16, #tpu.memory_space<vmem>>, vector<32x32xbf16>
    %294 = arith.truncf %146 : vector<40x32xf32> to vector<40x32xbf16>
    %cst_227 = arith.constant dense<0.000000e+00> : vector<40x32xf32>
    %295 = tpu.matmul %294, %293, %cst_227 {dimension_numbers = #tpu.dot_dimension_numbers<[1], [0], [0], [1], [0, 0, 1, 1], [], []>} : vector<40x32xbf16>, vector<32x32xbf16>, vector<40x32xf32> -> vector<40x32xf32>
    %c0_228 = arith.constant 0 : index
    %c0_229 = arith.constant 0 : index
    %296 = vector.load %arg30[%c0_228, %c0_229] : memref<1x32xf32, #tpu.memory_space<vmem>>, vector<1x32xf32>
    %297 = vector.broadcast %296 : vector<1x32xf32> to vector<40x32xf32>
    %298 = arith.addf %295, %297 : vector<40x32xf32>
    %c0_230 = arith.constant 0 : index
    %c0_231 = arith.constant 0 : index
    %c0_232 = arith.constant 0 : index
    %299 = vector.load %arg31[%c0_230, %c0_231, %c0_232] : memref<3x32x32xbf16, #tpu.memory_space<vmem>>, vector<1x32x32xbf16>
    %300 = vector.shape_cast %299 : vector<1x32x32xbf16> to vector<32x32xbf16>
    %301 = arith.truncf %298 : vector<40x32xf32> to vector<40x32xbf16>
    %cst_233 = arith.constant dense<0.000000e+00> : vector<40x32xf32>
    %302 = tpu.matmul %301, %300, %cst_233 {dimension_numbers = #tpu.dot_dimension_numbers<[1], [0], [0], [1], [0, 0, 1, 1], [], []>} : vector<40x32xbf16>, vector<32x32xbf16>, vector<40x32xf32> -> vector<40x32xf32>
    %c0_234 = arith.constant 0 : index
    %c0_235 = arith.constant 0 : index
    %c0_236 = arith.constant 0 : index
    %303 = vector.load %arg32[%c0_234, %c0_235, %c0_236] : memref<3x1x32xf32, #tpu.memory_space<vmem>>, vector<1x1x32xf32>
    %304 = vector.shape_cast %303 : vector<1x1x32xf32> to vector<1x32xf32>
    %305 = vector.broadcast %304 : vector<1x32xf32> to vector<40x32xf32>
    %306 = arith.addf %302, %305 : vector<40x32xf32>
    %cst_237 = arith.constant 0.000000e+00 : f32
    %307 = vector.broadcast %cst_237 : f32 to vector<40x32xf32>
    %308 = arith.maximumf %306, %307 : vector<40x32xf32>
    %c0_238 = arith.constant 0 : index
    %c0_239 = arith.constant 0 : index
    %c0_240 = arith.constant 0 : index
    %309 = vector.load %arg33[%c0_238, %c0_239, %c0_240] : memref<3x32x32xbf16, #tpu.memory_space<vmem>>, vector<1x32x32xbf16>
    %310 = vector.shape_cast %309 : vector<1x32x32xbf16> to vector<32x32xbf16>
    %311 = arith.truncf %308 : vector<40x32xf32> to vector<40x32xbf16>
    %cst_241 = arith.constant dense<0.000000e+00> : vector<40x32xf32>
    %312 = tpu.matmul %311, %310, %cst_241 {dimension_numbers = #tpu.dot_dimension_numbers<[1], [0], [0], [1], [0, 0, 1, 1], [], []>} : vector<40x32xbf16>, vector<32x32xbf16>, vector<40x32xf32> -> vector<40x32xf32>
    %c0_242 = arith.constant 0 : index
    %c0_243 = arith.constant 0 : index
    %c0_244 = arith.constant 0 : index
    %313 = vector.load %arg34[%c0_242, %c0_243, %c0_244] : memref<3x1x32xf32, #tpu.memory_space<vmem>>, vector<1x1x32xf32>
    %314 = vector.shape_cast %313 : vector<1x1x32xf32> to vector<1x32xf32>
    %315 = vector.broadcast %314 : vector<1x32xf32> to vector<40x32xf32>
    %316 = arith.addf %312, %315 : vector<40x32xf32>
    %cst_245 = arith.constant 0.000000e+00 : f32
    %317 = vector.broadcast %cst_245 : f32 to vector<40x32xf32>
    %318 = arith.maximumf %316, %317 : vector<40x32xf32>
    %319 = arith.addf %298, %318 : vector<40x32xf32>
    %c1_246 = arith.constant 1 : index
    %c0_247 = arith.constant 0 : index
    %c0_248 = arith.constant 0 : index
    %320 = vector.load %arg31[%c1_246, %c0_247, %c0_248] : memref<3x32x32xbf16, #tpu.memory_space<vmem>>, vector<1x32x32xbf16>
    %321 = vector.shape_cast %320 : vector<1x32x32xbf16> to vector<32x32xbf16>
    %322 = arith.truncf %319 : vector<40x32xf32> to vector<40x32xbf16>
    %cst_249 = arith.constant dense<0.000000e+00> : vector<40x32xf32>
    %323 = tpu.matmul %322, %321, %cst_249 {dimension_numbers = #tpu.dot_dimension_numbers<[1], [0], [0], [1], [0, 0, 1, 1], [], []>} : vector<40x32xbf16>, vector<32x32xbf16>, vector<40x32xf32> -> vector<40x32xf32>
    %c1_250 = arith.constant 1 : index
    %c0_251 = arith.constant 0 : index
    %c0_252 = arith.constant 0 : index
    %324 = vector.load %arg32[%c1_250, %c0_251, %c0_252] : memref<3x1x32xf32, #tpu.memory_space<vmem>>, vector<1x1x32xf32>
    %325 = vector.shape_cast %324 : vector<1x1x32xf32> to vector<1x32xf32>
    %326 = vector.broadcast %325 : vector<1x32xf32> to vector<40x32xf32>
    %327 = arith.addf %323, %326 : vector<40x32xf32>
    %cst_253 = arith.constant 0.000000e+00 : f32
    %328 = vector.broadcast %cst_253 : f32 to vector<40x32xf32>
    %329 = arith.maximumf %327, %328 : vector<40x32xf32>
    %c1_254 = arith.constant 1 : index
    %c0_255 = arith.constant 0 : index
    %c0_256 = arith.constant 0 : index
    %330 = vector.load %arg33[%c1_254, %c0_255, %c0_256] : memref<3x32x32xbf16, #tpu.memory_space<vmem>>, vector<1x32x32xbf16>
    %331 = vector.shape_cast %330 : vector<1x32x32xbf16> to vector<32x32xbf16>
    %332 = arith.truncf %329 : vector<40x32xf32> to vector<40x32xbf16>
    %cst_257 = arith.constant dense<0.000000e+00> : vector<40x32xf32>
    %333 = tpu.matmul %332, %331, %cst_257 {dimension_numbers = #tpu.dot_dimension_numbers<[1], [0], [0], [1], [0, 0, 1, 1], [], []>} : vector<40x32xbf16>, vector<32x32xbf16>, vector<40x32xf32> -> vector<40x32xf32>
    %c1_258 = arith.constant 1 : index
    %c0_259 = arith.constant 0 : index
    %c0_260 = arith.constant 0 : index
    %334 = vector.load %arg34[%c1_258, %c0_259, %c0_260] : memref<3x1x32xf32, #tpu.memory_space<vmem>>, vector<1x1x32xf32>
    %335 = vector.shape_cast %334 : vector<1x1x32xf32> to vector<1x32xf32>
    %336 = vector.broadcast %335 : vector<1x32xf32> to vector<40x32xf32>
    %337 = arith.addf %333, %336 : vector<40x32xf32>
    %cst_261 = arith.constant 0.000000e+00 : f32
    %338 = vector.broadcast %cst_261 : f32 to vector<40x32xf32>
    %339 = arith.maximumf %337, %338 : vector<40x32xf32>
    %340 = arith.addf %319, %339 : vector<40x32xf32>
    %c2_262 = arith.constant 2 : index
    %c0_263 = arith.constant 0 : index
    %c0_264 = arith.constant 0 : index
    %341 = vector.load %arg31[%c2_262, %c0_263, %c0_264] : memref<3x32x32xbf16, #tpu.memory_space<vmem>>, vector<1x32x32xbf16>
    %342 = vector.shape_cast %341 : vector<1x32x32xbf16> to vector<32x32xbf16>
    %343 = arith.truncf %340 : vector<40x32xf32> to vector<40x32xbf16>
    %cst_265 = arith.constant dense<0.000000e+00> : vector<40x32xf32>
    %344 = tpu.matmul %343, %342, %cst_265 {dimension_numbers = #tpu.dot_dimension_numbers<[1], [0], [0], [1], [0, 0, 1, 1], [], []>} : vector<40x32xbf16>, vector<32x32xbf16>, vector<40x32xf32> -> vector<40x32xf32>
    %c2_266 = arith.constant 2 : index
    %c0_267 = arith.constant 0 : index
    %c0_268 = arith.constant 0 : index
    %345 = vector.load %arg32[%c2_266, %c0_267, %c0_268] : memref<3x1x32xf32, #tpu.memory_space<vmem>>, vector<1x1x32xf32>
    %346 = vector.shape_cast %345 : vector<1x1x32xf32> to vector<1x32xf32>
    %347 = vector.broadcast %346 : vector<1x32xf32> to vector<40x32xf32>
    %348 = arith.addf %344, %347 : vector<40x32xf32>
    %cst_269 = arith.constant 0.000000e+00 : f32
    %349 = vector.broadcast %cst_269 : f32 to vector<40x32xf32>
    %350 = arith.maximumf %348, %349 : vector<40x32xf32>
    %c2_270 = arith.constant 2 : index
    %c0_271 = arith.constant 0 : index
    %c0_272 = arith.constant 0 : index
    %351 = vector.load %arg33[%c2_270, %c0_271, %c0_272] : memref<3x32x32xbf16, #tpu.memory_space<vmem>>, vector<1x32x32xbf16>
    %352 = vector.shape_cast %351 : vector<1x32x32xbf16> to vector<32x32xbf16>
    %353 = arith.truncf %350 : vector<40x32xf32> to vector<40x32xbf16>
    %cst_273 = arith.constant dense<0.000000e+00> : vector<40x32xf32>
    %354 = tpu.matmul %353, %352, %cst_273 {dimension_numbers = #tpu.dot_dimension_numbers<[1], [0], [0], [1], [0, 0, 1, 1], [], []>} : vector<40x32xbf16>, vector<32x32xbf16>, vector<40x32xf32> -> vector<40x32xf32>
    %c2_274 = arith.constant 2 : index
    %c0_275 = arith.constant 0 : index
    %c0_276 = arith.constant 0 : index
    %355 = vector.load %arg34[%c2_274, %c0_275, %c0_276] : memref<3x1x32xf32, #tpu.memory_space<vmem>>, vector<1x1x32xf32>
    %356 = vector.shape_cast %355 : vector<1x1x32xf32> to vector<1x32xf32>
    %357 = vector.broadcast %356 : vector<1x32xf32> to vector<40x32xf32>
    %358 = arith.addf %354, %357 : vector<40x32xf32>
    %cst_277 = arith.constant 0.000000e+00 : f32
    %359 = vector.broadcast %cst_277 : f32 to vector<40x32xf32>
    %360 = arith.maximumf %358, %359 : vector<40x32xf32>
    %361 = arith.addf %340, %360 : vector<40x32xf32>
    %c0_278 = arith.constant 0 : index
    %c0_279 = arith.constant 0 : index
    %362 = vector.load %arg45[%c0_278, %c0_279] : memref<40x32xf32, #tpu.memory_space<vmem>>, vector<40x32xf32>
    tpu.vector_store %arg45[%c0_278, %c0_279], %361 {strides = array<i32>} : memref<40x32xf32, #tpu.memory_space<vmem>>, vector<40x32xf32>,
    %c0_280 = arith.constant 0 : index
    %c0_281 = arith.constant 0 : index
    %363 = vector.load %arg35[%c0_280, %c0_281] : memref<32x32xbf16, #tpu.memory_space<vmem>>, vector<32x32xbf16>
    %364 = arith.truncf %145 : vector<20x32xf32> to vector<20x32xbf16>
    %cst_282 = arith.constant dense<0.000000e+00> : vector<20x32xf32>
    %365 = tpu.matmul %364, %363, %cst_282 {dimension_numbers = #tpu.dot_dimension_numbers<[1], [0], [0], [1], [0, 0, 1, 1], [], []>} : vector<20x32xbf16>, vector<32x32xbf16>, vector<20x32xf32> -> vector<20x32xf32>
    %c0_283 = arith.constant 0 : index
    %c0_284 = arith.constant 0 : index
    %366 = vector.load %arg36[%c0_283, %c0_284] : memref<1x32xf32, #tpu.memory_space<vmem>>, vector<1x32xf32>
    %367 = vector.broadcast %366 : vector<1x32xf32> to vector<20x32xf32>
    %368 = arith.addf %365, %367 : vector<20x32xf32>
    %c0_285 = arith.constant 0 : index
    %c0_286 = arith.constant 0 : index
    %c0_287 = arith.constant 0 : index
    %369 = vector.load %arg37[%c0_285, %c0_286, %c0_287] : memref<3x32x32xbf16, #tpu.memory_space<vmem>>, vector<1x32x32xbf16>
    %370 = vector.shape_cast %369 : vector<1x32x32xbf16> to vector<32x32xbf16>
    %371 = arith.truncf %368 : vector<20x32xf32> to vector<20x32xbf16>
    %cst_288 = arith.constant dense<0.000000e+00> : vector<20x32xf32>
    %372 = tpu.matmul %371, %370, %cst_288 {dimension_numbers = #tpu.dot_dimension_numbers<[1], [0], [0], [1], [0, 0, 1, 1], [], []>} : vector<20x32xbf16>, vector<32x32xbf16>, vector<20x32xf32> -> vector<20x32xf32>
    %c0_289 = arith.constant 0 : index
    %c0_290 = arith.constant 0 : index
    %c0_291 = arith.constant 0 : index
    %373 = vector.load %arg38[%c0_289, %c0_290, %c0_291] : memref<3x1x32xf32, #tpu.memory_space<vmem>>, vector<1x1x32xf32>
    %374 = vector.shape_cast %373 : vector<1x1x32xf32> to vector<1x32xf32>
    %375 = vector.broadcast %374 : vector<1x32xf32> to vector<20x32xf32>
    %376 = arith.addf %372, %375 : vector<20x32xf32>
    %cst_292 = arith.constant 0.000000e+00 : f32
    %377 = vector.broadcast %cst_292 : f32 to vector<20x32xf32>
    %378 = arith.maximumf %376, %377 : vector<20x32xf32>
    %c0_293 = arith.constant 0 : index
    %c0_294 = arith.constant 0 : index
    %c0_295 = arith.constant 0 : index
    %379 = vector.load %arg39[%c0_293, %c0_294, %c0_295] : memref<3x32x32xbf16, #tpu.memory_space<vmem>>, vector<1x32x32xbf16>
    %380 = vector.shape_cast %379 : vector<1x32x32xbf16> to vector<32x32xbf16>
    %381 = arith.truncf %378 : vector<20x32xf32> to vector<20x32xbf16>
    %cst_296 = arith.constant dense<0.000000e+00> : vector<20x32xf32>
    %382 = tpu.matmul %381, %380, %cst_296 {dimension_numbers = #tpu.dot_dimension_numbers<[1], [0], [0], [1], [0, 0, 1, 1], [], []>} : vector<20x32xbf16>, vector<32x32xbf16>, vector<20x32xf32> -> vector<20x32xf32>
    %c0_297 = arith.constant 0 : index
    %c0_298 = arith.constant 0 : index
    %c0_299 = arith.constant 0 : index
    %383 = vector.load %arg40[%c0_297, %c0_298, %c0_299] : memref<3x1x32xf32, #tpu.memory_space<vmem>>, vector<1x1x32xf32>
    %384 = vector.shape_cast %383 : vector<1x1x32xf32> to vector<1x32xf32>
    %385 = vector.broadcast %384 : vector<1x32xf32> to vector<20x32xf32>
    %386 = arith.addf %382, %385 : vector<20x32xf32>
    %cst_300 = arith.constant 0.000000e+00 : f32
    %387 = vector.broadcast %cst_300 : f32 to vector<20x32xf32>
    %388 = arith.maximumf %386, %387 : vector<20x32xf32>
    %389 = arith.addf %368, %388 : vector<20x32xf32>
    %c1_301 = arith.constant 1 : index
    %c0_302 = arith.constant 0 : index
    %c0_303 = arith.constant 0 : index
    %390 = vector.load %arg37[%c1_301, %c0_302, %c0_303] : memref<3x32x32xbf16, #tpu.memory_space<vmem>>, vector<1x32x32xbf16>
    %391 = vector.shape_cast %390 : vector<1x32x32xbf16> to vector<32x32xbf16>
    %392 = arith.truncf %389 : vector<20x32xf32> to vector<20x32xbf16>
    %cst_304 = arith.constant dense<0.000000e+00> : vector<20x32xf32>
    %393 = tpu.matmul %392, %391, %cst_304 {dimension_numbers = #tpu.dot_dimension_numbers<[1], [0], [0], [1], [0, 0, 1, 1], [], []>} : vector<20x32xbf16>, vector<32x32xbf16>, vector<20x32xf32> -> vector<20x32xf32>
    %c1_305 = arith.constant 1 : index
    %c0_306 = arith.constant 0 : index
    %c0_307 = arith.constant 0 : index
    %394 = vector.load %arg38[%c1_305, %c0_306, %c0_307] : memref<3x1x32xf32, #tpu.memory_space<vmem>>, vector<1x1x32xf32>
    %395 = vector.shape_cast %394 : vector<1x1x32xf32> to vector<1x32xf32>
    %396 = vector.broadcast %395 : vector<1x32xf32> to vector<20x32xf32>
    %397 = arith.addf %393, %396 : vector<20x32xf32>
    %cst_308 = arith.constant 0.000000e+00 : f32
    %398 = vector.broadcast %cst_308 : f32 to vector<20x32xf32>
    %399 = arith.maximumf %397, %398 : vector<20x32xf32>
    %c1_309 = arith.constant 1 : index
    %c0_310 = arith.constant 0 : index
    %c0_311 = arith.constant 0 : index
    %400 = vector.load %arg39[%c1_309, %c0_310, %c0_311] : memref<3x32x32xbf16, #tpu.memory_space<vmem>>, vector<1x32x32xbf16>
    %401 = vector.shape_cast %400 : vector<1x32x32xbf16> to vector<32x32xbf16>
    %402 = arith.truncf %399 : vector<20x32xf32> to vector<20x32xbf16>
    %cst_312 = arith.constant dense<0.000000e+00> : vector<20x32xf32>
    %403 = tpu.matmul %402, %401, %cst_312 {dimension_numbers = #tpu.dot_dimension_numbers<[1], [0], [0], [1], [0, 0, 1, 1], [], []>} : vector<20x32xbf16>, vector<32x32xbf16>, vector<20x32xf32> -> vector<20x32xf32>
    %c1_313 = arith.constant 1 : index
    %c0_314 = arith.constant 0 : index
    %c0_315 = arith.constant 0 : index
    %404 = vector.load %arg40[%c1_313, %c0_314, %c0_315] : memref<3x1x32xf32, #tpu.memory_space<vmem>>, vector<1x1x32xf32>
    %405 = vector.shape_cast %404 : vector<1x1x32xf32> to vector<1x32xf32>
    %406 = vector.broadcast %405 : vector<1x32xf32> to vector<20x32xf32>
    %407 = arith.addf %403, %406 : vector<20x32xf32>
    %cst_316 = arith.constant 0.000000e+00 : f32
    %408 = vector.broadcast %cst_316 : f32 to vector<20x32xf32>
    %409 = arith.maximumf %407, %408 : vector<20x32xf32>
    %410 = arith.addf %389, %409 : vector<20x32xf32>
    %c2_317 = arith.constant 2 : index
    %c0_318 = arith.constant 0 : index
    %c0_319 = arith.constant 0 : index
    %411 = vector.load %arg37[%c2_317, %c0_318, %c0_319] : memref<3x32x32xbf16, #tpu.memory_space<vmem>>, vector<1x32x32xbf16>
    %412 = vector.shape_cast %411 : vector<1x32x32xbf16> to vector<32x32xbf16>
    %413 = arith.truncf %410 : vector<20x32xf32> to vector<20x32xbf16>
    %cst_320 = arith.constant dense<0.000000e+00> : vector<20x32xf32>
    %414 = tpu.matmul %413, %412, %cst_320 {dimension_numbers = #tpu.dot_dimension_numbers<[1], [0], [0], [1], [0, 0, 1, 1], [], []>} : vector<20x32xbf16>, vector<32x32xbf16>, vector<20x32xf32> -> vector<20x32xf32>
    %c2_321 = arith.constant 2 : index
    %c0_322 = arith.constant 0 : index
    %c0_323 = arith.constant 0 : index
    %415 = vector.load %arg38[%c2_321, %c0_322, %c0_323] : memref<3x1x32xf32, #tpu.memory_space<vmem>>, vector<1x1x32xf32>
    %416 = vector.shape_cast %415 : vector<1x1x32xf32> to vector<1x32xf32>
    %417 = vector.broadcast %416 : vector<1x32xf32> to vector<20x32xf32>
    %418 = arith.addf %414, %417 : vector<20x32xf32>
    %cst_324 = arith.constant 0.000000e+00 : f32
    %419 = vector.broadcast %cst_324 : f32 to vector<20x32xf32>
    %420 = arith.maximumf %418, %419 : vector<20x32xf32>
    %c2_325 = arith.constant 2 : index
    %c0_326 = arith.constant 0 : index
    %c0_327 = arith.constant 0 : index
    %421 = vector.load %arg39[%c2_325, %c0_326, %c0_327] : memref<3x32x32xbf16, #tpu.memory_space<vmem>>, vector<1x32x32xbf16>
    %422 = vector.shape_cast %421 : vector<1x32x32xbf16> to vector<32x32xbf16>
    %423 = arith.truncf %420 : vector<20x32xf32> to vector<20x32xbf16>
    %cst_328 = arith.constant dense<0.000000e+00> : vector<20x32xf32>
    %424 = tpu.matmul %423, %422, %cst_328 {dimension_numbers = #tpu.dot_dimension_numbers<[1], [0], [0], [1], [0, 0, 1, 1], [], []>} : vector<20x32xbf16>, vector<32x32xbf16>, vector<20x32xf32> -> vector<20x32xf32>
    %c2_329 = arith.constant 2 : index
    %c0_330 = arith.constant 0 : index
    %c0_331 = arith.constant 0 : index
    %425 = vector.load %arg40[%c2_329, %c0_330, %c0_331] : memref<3x1x32xf32, #tpu.memory_space<vmem>>, vector<1x1x32xf32>
    %426 = vector.shape_cast %425 : vector<1x1x32xf32> to vector<1x32xf32>
    %427 = vector.broadcast %426 : vector<1x32xf32> to vector<20x32xf32>
    %428 = arith.addf %424, %427 : vector<20x32xf32>
    %cst_332 = arith.constant 0.000000e+00 : f32
    %429 = vector.broadcast %cst_332 : f32 to vector<20x32xf32>
    %430 = arith.maximumf %428, %429 : vector<20x32xf32>
    %431 = arith.addf %410, %430 : vector<20x32xf32>
    %c0_333 = arith.constant 0 : index
    %c0_334 = arith.constant 0 : index
    %432 = vector.load %arg47[%c0_333, %c0_334] : memref<20x32xf32, #tpu.memory_space<vmem>>, vector<20x32xf32>
    tpu.vector_store %arg47[%c0_333, %c0_334], %431 {strides = array<i32>} : memref<20x32xf32, #tpu.memory_space<vmem>>, vector<20x32xf32>,
    %c0_335 = arith.constant 0 : index
    %c0_336 = arith.constant 0 : index
    %433 = vector.load %arg41[%c0_335, %c0_336] : memref<32x64xf32, #tpu.memory_space<vmem>>, vector<32x64xf32>
    %cst_337 = arith.constant dense<0.000000e+00> : vector<20x64xf32>
    %434 = tpu.matmul %431, %433, %cst_337 {dimension_numbers = #tpu.dot_dimension_numbers<[1], [0], [0], [1], [0, 0, 1, 1], [], []>} : vector<20x32xf32>, vector<32x64xf32>, vector<20x64xf32> -> vector<20x64xf32>
    %c0_338 = arith.constant 0 : index
    %c0_339 = arith.constant 0 : index
    %435 = vector.load %arg42[%c0_338, %c0_339] : memref<1x64xf32, #tpu.memory_space<vmem>>, vector<1x64xf32>
    %436 = vector.broadcast %435 : vector<1x64xf32> to vector<20x64xf32>
    %437 = arith.addf %434, %436 : vector<20x64xf32>
    %cst_340 = arith.constant dense<0xFF800000> : vector<20xf32>
    %438 = vector.multi_reduction <maximumf>, %437, %cst_340 [1] : vector<20x64xf32> to vector<20xf32>
    %439 = vector.shape_cast %438 : vector<20xf32> to vector<20x1xf32>
    %440 = vector.broadcast %439 : vector<20x1xf32> to vector<20x64xf32>
    %441 = arith.subf %437, %440 : vector<20x64xf32>
    %442 = math.exp %441 : vector<20x64xf32>
    %cst_341 = arith.constant dense<0.000000e+00> : vector<20xf32>
    %443 = vector.multi_reduction <add>, %442, %cst_341 [1] : vector<20x64xf32> to vector<20xf32>
    %444 = vector.shape_cast %443 : vector<20xf32> to vector<20x1xf32>
    %445 = math.log %444 : vector<20x1xf32>
    %446 = arith.addf %439, %445 : vector<20x1xf32>
    %c0_342 = arith.constant 0 : index
    %c0_343 = arith.constant 0 : index
    %447 = vector.load %arg48[%c0_342, %c0_343] : memref<20x1xf32, #tpu.memory_space<vmem>>, vector<20x1xf32>
    tpu.vector_store %arg48[%c0_342, %c0_343], %446 {strides = array<i32>} : memref<20x1xf32, #tpu.memory_space<vmem>>, vector<20x1xf32>,
    return
  }
}

</mosaic_0001>

<llo_original>
// kernel: tpu_custom_call.1
$region0: #{tpu_custom_call.1}
  #allocation0 [shape = 'u32[]', space=smem, size = 0x4, offset = 0x4, fixed_abs, tag = 'smem constant byte address 0x4 - core index']
  #allocation1 [shape = 'u32[144,128]{1,0:T(1,128)}', space=vmem, size = 0x12000, scoped, tag = 'internal scratch']
  %s0 = inlined_call_operand.smem [shape: u32[49], index: -1, kind: input, shape index: {}]
  %s1 = sld [smem:[%s0]]
  %s2 = scalar_lea.smem %s0, 1
  %s3 = sld [smem:[%s2]]
  %s4 = scalar_lea.smem %s0, 2
  %s5 = sld [smem:[%s4]]
  %s6 = scalar_lea.smem %s0, 3
  %s7 = sld [smem:[%s6]]
  %s8 = scalar_lea.smem %s0, 4
  %s9 = sld [smem:[%s8]]
  %s10 = scalar_lea.smem %s0, 5
  %s11 = sld [smem:[%s10]]
  %s12 = scalar_lea.smem %s0, 6
  %s13 = sld [smem:[%s12]]
  %s14 = scalar_lea.smem %s0, 7
  %s15 = sld [smem:[%s14]]
  %s16 = scalar_lea.smem %s0, 8
  %s17 = sld [smem:[%s16]]
  %s18 = scalar_lea.smem %s0, 9
  %s19 = sld [smem:[%s18]]
  %s20 = scalar_lea.smem %s0, 10
  %s21 = sld [smem:[%s20]]
  %s22 = scalar_lea.smem %s0, 11
  %s23 = sld [smem:[%s22]]
  %s24 = scalar_lea.smem %s0, 12
  %s25 = sld [smem:[%s24]]
  %s26 = scalar_lea.smem %s0, 13
  %s27 = sld [smem:[%s26]]
  %s28 = scalar_lea.smem %s0, 14
  %s29 = sld [smem:[%s28]]
  %s30 = scalar_lea.smem %s0, 15
  %s31 = sld [smem:[%s30]]
  %s32 = scalar_lea.smem %s0, 16
  %s33 = sld [smem:[%s32]]
  %s34 = scalar_lea.smem %s0, 17
  %s35 = sld [smem:[%s34]]
  %s36 = scalar_lea.smem %s0, 18
  %s37 = sld [smem:[%s36]]
  %s38 = scalar_lea.smem %s0, 19
  %s39 = sld [smem:[%s38]]
  %s40 = scalar_lea.smem %s0, 20
  %s41 = sld [smem:[%s40]]
  %s42 = scalar_lea.smem %s0, 21
  %s43 = sld [smem:[%s42]]
  %s44 = scalar_lea.smem %s0, 22
  %s45 = sld [smem:[%s44]]
  %s46 = scalar_lea.smem %s0, 23
  %s47 = sld [smem:[%s46]]
  %s48 = scalar_lea.smem %s0, 24
  %s49 = sld [smem:[%s48]]
  %s50 = scalar_lea.smem %s0, 25
  %s51 = sld [smem:[%s50]]
  %s52 = scalar_lea.smem %s0, 26
  %s53 = sld [smem:[%s52]]
  %s54 = scalar_lea.smem %s0, 27
  %s55 = sld [smem:[%s54]]
  %s56 = scalar_lea.smem %s0, 28
  %s57 = sld [smem:[%s56]]
  %s58 = scalar_lea.smem %s0, 29
  %s59 = sld [smem:[%s58]]
  %s60 = scalar_lea.smem %s0, 30
  %s61 = sld [smem:[%s60]]
  %s62 = scalar_lea.smem %s0, 31
  %s63 = sld [smem:[%s62]]
  %s64 = scalar_lea.smem %s0, 32
  %s65 = sld [smem:[%s64]]
  %s66 = scalar_lea.smem %s0, 33
  %s67 = sld [smem:[%s66]]
  %s68 = scalar_lea.smem %s0, 34
  %s69 = sld [smem:[%s68]]
  %s70 = scalar_lea.smem %s0, 35
  %s71 = sld [smem:[%s70]]
  %s72 = scalar_lea.smem %s0, 36
  %s73 = sld [smem:[%s72]]
  %s74 = scalar_lea.smem %s0, 37
  %s75 = sld [smem:[%s74]]
  %s76 = scalar_lea.smem %s0, 38
  %s77 = sld [smem:[%s76]]
  %s78 = scalar_lea.smem %s0, 39
  %s79 = sld [smem:[%s78]]
  %s80 = scalar_lea.smem %s0, 40
  %s81 = sld [smem:[%s80]]
  %s82 = scalar_lea.smem %s0, 41
  %s83 = sld [smem:[%s82]]
  %s84 = scalar_lea.smem %s0, 42
  %s85 = sld [smem:[%s84]]
  %s86 = scalar_lea.smem %s0, 43
  %s87 = sld [smem:[%s86]]
  %s88 = scalar_lea.smem %s0, 44
  %s89 = sld [smem:[%s88]]
  %s90 = scalar_lea.smem %s0, 45
  %s91 = sld [smem:[%s90]]
  %s92 = scalar_lea.smem %s0, 46
  %s93 = sld [smem:[%s92]]
  %s94 = scalar_lea.smem %s0, 47
  %s95 = sld [smem:[%s94]]
  %s96 = scalar_lea.smem %s0, 48
  %s97 = sld [smem:[%s96]]
  %98 = xla_tuple %s87, %s89, %s91, %s93, %s95, %s97
  %s99 = sld [smem:[#allocation0]]
  $region370: #{tpu_custom_call.1} parent=0
    _
  %s101 = ssub.s32 1, %s99
  %s102 = scalar_select 0, %s101, %s99
  $region1: #{tpu_custom_call.1} parent=0
    #allocation2 [shape = 'u8[8192]{0}', space=vmem, size = 0x2000, scoped, tag = 'input window, operand 0, single buffered']
    #allocation3 [shape = 's32[1]{0}', space=sflag, size = 0x4, scoped, tag = 'scoped memory for tpu_custom_call.1']
    #allocation4 [shape = 's32[1]{0}', space=sflag, size = 0x4, scoped, tag = 'scoped memory for tpu_custom_call.1']
    #allocation5 [shape = 'u8[8192]{0}', space=vmem, size = 0x2000, scoped, tag = 'input window, operand 1, single buffered']
    #allocation6 [shape = 's32[1]{0}', space=sflag, size = 0x4, scoped, tag = 'scoped memory for tpu_custom_call.1']
    #allocation7 [shape = 'u8[12288]{0}', space=vmem, size = 0x3000, scoped, tag = 'input window, operand 2, single buffered']
    #allocation8 [shape = 'u8[12288]{0}', space=vmem, size = 0x3000, scoped, tag = 'input window, operand 3, single buffered']
    #allocation9 [shape = 's32[1]{0}', space=sflag, size = 0x4, scoped, tag = 'scoped memory for tpu_custom_call.1']
    #allocation10 [shape = 'u8[512]{0}', space=vmem, size = 0x400, scoped, tag = 'input window, operand 4, single buffered']
    #allocation11 [shape = 'u8[8192]{0}', space=vmem, size = 0x2000, scoped, tag = 'input window, operand 5, single buffered']
    #allocation12 [shape = 's32[1]{0}', space=sflag, size = 0x4, scoped, tag = 'scoped memory for tpu_custom_call.1']
    #allocation13 [shape = 'u8[512]{0}', space=vmem, size = 0x400, scoped, tag = 'input window, operand 6, single buffered']
    #allocation14 [shape = 'u8[24576]{0}', space=vmem, size = 0x6000, scoped, tag = 'input window, operand 7, single buffered']
    #allocation15 [shape = 's32[1]{0}', space=sflag, size = 0x4, scoped, tag = 'scoped memory for tpu_custom_call.1']
    #allocation16 [shape = 'u8[1536]{0}', space=vmem, size = 0x800, scoped, tag = 'input window, operand 8, single buffered']
    #allocation17 [shape = 'u8[24576]{0}', space=vmem, size = 0x6000, scoped, tag = 'input window, operand 9, single buffered']
    #allocation18 [shape = 's32[1]{0}', space=sflag, size = 0x4, scoped, tag = 'scoped memory for tpu_custom_call.1']
    #allocation19 [shape = 'u8[1536]{0}', space=vmem, size = 0x800, scoped, tag = 'input window, operand 10, single buffered']
    #allocation20 [shape = 'u8[8192]{0}', space=vmem, size = 0x2000, scoped, tag = 'input window, operand 11, single buffered']
    #allocation21 [shape = 's32[1]{0}', space=sflag, size = 0x4, scoped, tag = 'scoped memory for tpu_custom_call.1']
    #allocation22 [shape = 'u8[512]{0}', space=vmem, size = 0x400, scoped, tag = 'input window, operand 12, single buffered']
    #allocation23 [shape = 'u8[1536]{0}', space=vmem, size = 0x800, scoped, tag = 'input window, operand 14, single buffered']
    #allocation24 [shape = 's32[1]{0}', space=sflag, size = 0x4, scoped, tag = 'scoped memory for tpu_custom_call.1']
    #allocation25 [shape = 'u8[24576]{0}', space=vmem, size = 0x6000, scoped, tag = 'input window, operand 15, single buffered']
    #allocation26 [shape = 'u8[1536]{0}', space=vmem, size = 0x800, scoped, tag = 'input window, operand 16, single buffered']
    #allocation27 [shape = 's32[1]{0}', space=sflag, size = 0x4, scoped, tag = 'scoped memory for tpu_custom_call.1']
    #allocation28 [shape = 'u8[8192]{0}', space=vmem, size = 0x2000, scoped, tag = 'input window, operand 17, single buffered']
    #allocation29 [shape = 'u8[512]{0}', space=vmem, size = 0x400, scoped, tag = 'input window, operand 18, single buffered']
    #allocation30 [shape = 's32[1]{0}', space=sflag, size = 0x4, scoped, tag = 'scoped memory for tpu_custom_call.1']
    #allocation31 [shape = 'u8[24576]{0}', space=vmem, size = 0x6000, scoped, tag = 'input window, operand 19, single buffered']
    #allocation32 [shape = 'u8[1536]{0}', space=vmem, size = 0x800, scoped, tag = 'input window, operand 20, single buffered']
    #allocation33 [shape = 's32[1]{0}', space=sflag, size = 0x4, scoped, tag = 'scoped memory for tpu_custom_call.1']
    #allocation34 [shape = 'u8[24576]{0}', space=vmem, size = 0x6000, scoped, tag = 'input window, operand 21, single buffered']
    #allocation35 [shape = 'u8[1536]{0}', space=vmem, size = 0x800, scoped, tag = 'input window, operand 22, single buffered']
    #allocation36 [shape = 's32[1]{0}', space=sflag, size = 0x4, scoped, tag = 'scoped memory for tpu_custom_call.1']
    #allocation37 [shape = 'u8[8192]{0}', space=vmem, size = 0x2000, scoped, tag = 'input window, operand 23, single buffered']
    #allocation38 [shape = 'u8[512]{0}', space=vmem, size = 0x400, scoped, tag = 'input window, operand 24, single buffered']
    #allocation39 [shape = 's32[1]{0}', space=sflag, size = 0x4, scoped, tag = 'scoped memory for tpu_custom_call.1']
    #allocation40 [shape = 'u8[24576]{0}', space=vmem, size = 0x6000, scoped, tag = 'input window, operand 25, single buffered']
    #allocation41 [shape = 'u8[1536]{0}', space=vmem, size = 0x800, scoped, tag = 'input window, operand 26, single buffered']
    #allocation42 [shape = 's32[1]{0}', space=sflag, size = 0x4, scoped, tag = 'scoped memory for tpu_custom_call.1']
    #allocation43 [shape = 'u8[8192]{0}', space=vmem, size = 0x2000, scoped, tag = 'input window, operand 29, single buffered']
    #allocation44 [shape = 'u8[512]{0}', space=vmem, size = 0x400, scoped, tag = 'input window, operand 30, single buffered']
    #allocation45 [shape = 's32[1]{0}', space=sflag, size = 0x4, scoped, tag = 'scoped memory for tpu_custom_call.1']
    #allocation46 [shape = 'u8[24576]{0}', space=vmem, size = 0x6000, scoped, tag = 'input window, operand 31, single buffered']
    #allocation47 [shape = 'u8[1536]{0}', space=vmem, size = 0x800, scoped, tag = 'input window, operand 32, single buffered']
    #allocation48 [shape = 's32[1]{0}', space=sflag, size = 0x4, scoped, tag = 'scoped memory for tpu_custom_call.1']
    #allocation49 [shape = 'u8[24576]{0}', space=vmem, size = 0x6000, scoped, tag = 'input window, operand 33, single buffered']
    #allocation50 [shape = 'u8[1536]{0}', space=vmem, size = 0x800, scoped, tag = 'input window, operand 34, single buffered']
    #allocation51 [shape = 's32[1]{0}', space=sflag, size = 0x4, scoped, tag = 'scoped memory for tpu_custom_call.1']
    #allocation52 [shape = 'u8[8192]{0}', space=vmem, size = 0x2000, scoped, tag = 'input window, operand 35, single buffered']
    #allocation53 [shape = 'u8[512]{0}', space=vmem, size = 0x400, scoped, tag = 'input window, operand 36, single buffered']
    #allocation54 [shape = 's32[1]{0}', space=sflag, size = 0x4, scoped, tag = 'scoped memory for tpu_custom_call.1']
    #allocation55 [shape = 'u8[24576]{0}', space=vmem, size = 0x6000, scoped, tag = 'input window, operand 37, single buffered']
    #allocation56 [shape = 'u8[1536]{0}', space=vmem, size = 0x800, scoped, tag = 'input window, operand 38, single buffered']
    #allocation57 [shape = 's32[1]{0}', space=sflag, size = 0x4, scoped, tag = 'scoped memory for tpu_custom_call.1']
    #allocation58 [shape = 'u8[16384]{0}', space=vmem, size = 0x4000, scoped, tag = 'input window, operand 41, single buffered']
    #allocation59 [shape = 'u8[12288]{0}', space=vmem, size = 0x3000, scoped, tag = 'output window, operand 0, single buffered']
    #allocation60 [shape = 'u8[12288]{0}', space=vmem, size = 0x3000, scoped, tag = 'output window, operand 4, single buffered']
    #allocation61 [shape = 's32[1]{0}', space=sflag, size = 0x4, scoped, tag = 'scoped memory for tpu_custom_call.1']
    %103 = vsyncpa [#allocation3], 0
    %104 = vsyncpa [#allocation6], 0
    %105 = vsyncpa [#allocation9], 0
    %106 = vsyncpa [#allocation12], 0
    %107 = vsyncpa [#allocation15], 0
    %108 = vsyncpa [#allocation18], 0
    %109 = vsyncpa [#allocation21], 0
    %110 = vsyncpa [#allocation24], 0
    %111 = vsyncpa [#allocation27], 0
    %112 = vsyncpa [#allocation30], 0
    %113 = vsyncpa [#allocation33], 0
    %114 = vsyncpa [#allocation36], 0
    %115 = vsyncpa [#allocation39], 0
    %116 = vsyncpa [#allocation42], 0
    %117 = vsyncpa [#allocation45], 0
    %118 = vsyncpa [#allocation48], 0
    %119 = vsyncpa [#allocation51], 0
    %120 = vsyncpa [#allocation54], 0
    %121 = vsyncpa [#allocation57], 0
    %122 = vsyncpa [#allocation4], 0
    %123 = vsyncpa [#allocation61], 0
    // Predicated region
    $region2: #{tpu_custom_call.1} parent=1 // pred_check
      _
    $region3: #{tpu_custom_call.1} parent=1 // pred_check_branch
      %125 = sbr.rel (0) target = $region5
    $region4: #{tpu_custom_call.1} parent=1 // pred_region
      %s127 = ssub.s32 256, 256
      %128 = vsyncadd [#allocation3], %s127
      %s129 = sshll.u32 [#allocation2], 4
      %s130 = int_to_ptr.vmem [resolvable:$true] %s129
      %135 = dma.hbm_to_vmem [thread:$0]  %s1, 256, %s130, [#allocation3], 128, 128, 8
    $region5: #{tpu_custom_call.1} parent=1 // pred_fallthru
      _
    // Predicated region
    $region6: #{tpu_custom_call.1} parent=1 // pred_check
      _
    $region7: #{tpu_custom_call.1} parent=1 // pred_check_branch
      %137 = sbr.rel (0) target = $region9
    $region8: #{tpu_custom_call.1} parent=1 // pred_region
      %s139 = ssub.s32 256, 256
      %140 = vsyncadd [#allocation6], %s139
      %s141 = sshll.u32 [#allocation5], 4
      %s142 = int_to_ptr.vmem [resolvable:$true] %s141
      %147 = dma.hbm_to_vmem [thread:$0]  %s3, 256, %s142, [#allocation6], 128, 128, 8
    $region9: #{tpu_custom_call.1} parent=1 // pred_fallthru
      _
    // Predicated region
    $region10: #{tpu_custom_call.1} parent=1 // pred_check
      _
    $region11: #{tpu_custom_call.1} parent=1 // pred_check_branch
      %149 = sbr.rel (0) target = $region13
    $region12: #{tpu_custom_call.1} parent=1 // pred_region
      %s151 = ssub.s32 384, 384
      %152 = vsyncadd [#allocation6], %s151
      %s153 = sshll.u32 [#allocation7], 4
      %s154 = int_to_ptr.vmem [resolvable:$true] %s153
      %159 = dma.hbm_to_vmem [thread:$0]  %s5, 384, %s154, [#allocation6], 128, 128, 8
    $region13: #{tpu_custom_call.1} parent=1 // pred_fallthru
      _
    // Predicated region
    $region14: #{tpu_custom_call.1} parent=1 // pred_check
      _
    $region15: #{tpu_custom_call.1} parent=1 // pred_check_branch
      %161 = sbr.rel (0) target = $region17
    $region16: #{tpu_custom_call.1} parent=1 // pred_region
      %s163 = ssub.s32 384, 384
      %164 = vsyncadd [#allocation9], %s163
      %s165 = sshll.u32 [#allocation8], 4
      %s166 = int_to_ptr.vmem [resolvable:$true] %s165
      %171 = dma.hbm_to_vmem [thread:$0]  %s7, 384, %s166, [#allocation9], 128, 128, 8
    $region17: #{tpu_custom_call.1} parent=1 // pred_fallthru
      _
    // Predicated region
    $region18: #{tpu_custom_call.1} parent=1 // pred_check
      _
    $region19: #{tpu_custom_call.1} parent=1 // pred_check_branch
      %173 = sbr.rel (0) target = $region21
    $region20: #{tpu_custom_call.1} parent=1 // pred_region
      %s175 = ssub.s32 16, 16
      %176 = vsyncadd [#allocation9], %s175
      %s178 = sshll.u32 [#allocation10], 4
      %s179 = int_to_ptr.vmem [resolvable:$true] %s178
      %181 = dma.hbm_to_vmem [thread:$0]  %s9, 16, %s179, [#allocation9]
    $region21: #{tpu_custom_call.1} parent=1 // pred_fallthru
      _
    // Predicated region
    $region22: #{tpu_custom_call.1} parent=1 // pred_check
      _
    $region23: #{tpu_custom_call.1} parent=1 // pred_check_branch
      %183 = sbr.rel (0) target = $region25
    $region24: #{tpu_custom_call.1} parent=1 // pred_region
      %s185 = ssub.s32 256, 256
      %186 = vsyncadd [#allocation12], %s185
      %s187 = sshll.u32 [#allocation11], 4
      %s188 = int_to_ptr.vmem [resolvable:$true] %s187
      %193 = dma.hbm_to_vmem [thread:$0]  %s11, 256, %s188, [#allocation12], 64, 64, 4
    $region25: #{tpu_custom_call.1} parent=1 // pred_fallthru
      _
    // Predicated region
    $region26: #{tpu_custom_call.1} parent=1 // pred_check
      _
    $region27: #{tpu_custom_call.1} parent=1 // pred_check_branch
      %195 = sbr.rel (0) target = $region29
    $region28: #{tpu_custom_call.1} parent=1 // pred_region
      %s197 = ssub.s32 16, 16
      %198 = vsyncadd [#allocation12], %s197
      %s200 = sshll.u32 [#allocation13], 4
      %s201 = int_to_ptr.vmem [resolvable:$true] %s200
      %203 = dma.hbm_to_vmem [thread:$0]  %s13, 16, %s201, [#allocation12]
    $region29: #{tpu_custom_call.1} parent=1 // pred_fallthru
      _
    // Predicated region
    $region30: #{tpu_custom_call.1} parent=1 // pred_check
      _
    $region31: #{tpu_custom_call.1} parent=1 // pred_check_branch
      %205 = sbr.rel (0) target = $region33
    $region32: #{tpu_custom_call.1} parent=1 // pred_region
      %s207 = ssub.s32 768, 768
      %208 = vsyncadd [#allocation15], %s207
      %s209 = sshll.u32 [#allocation14], 4
      %s210 = int_to_ptr.vmem [resolvable:$true] %s209
      %215 = dma.hbm_to_vmem [thread:$0]  %s15, 768, %s210, [#allocation15], 64, 64, 4
    $region33: #{tpu_custom_call.1} parent=1 // pred_fallthru
      _
    // Predicated region
    $region34: #{tpu_custom_call.1} parent=1 // pred_check
      _
    $region35: #{tpu_custom_call.1} parent=1 // pred_check_branch
      %217 = sbr.rel (0) target = $region37
    $region36: #{tpu_custom_call.1} parent=1 // pred_region
      %s219 = ssub.s32 48, 48
      %220 = vsyncadd [#allocation15], %s219
      %s221 = sshll.u32 [#allocation16], 4
      %s222 = int_to_ptr.vmem [resolvable:$true] %s221
      %227 = dma.hbm_to_vmem [thread:$0]  %s17, 48, %s222, [#allocation15], 16, 16, 1
    $region37: #{tpu_custom_call.1} parent=1 // pred_fallthru
      _
    // Predicated region
    $region38: #{tpu_custom_call.1} parent=1 // pred_check
      _
    $region39: #{tpu_custom_call.1} parent=1 // pred_check_branch
      %229 = sbr.rel (0) target = $region41
    $region40: #{tpu_custom_call.1} parent=1 // pred_region
      %s231 = ssub.s32 768, 768
      %232 = vsyncadd [#allocation18], %s231
      %s233 = sshll.u32 [#allocation17], 4
      %s234 = int_to_ptr.vmem [resolvable:$true] %s233
      %239 = dma.hbm_to_vmem [thread:$0]  %s19, 768, %s234, [#allocation18], 64, 64, 4
    $region41: #{tpu_custom_call.1} parent=1 // pred_fallthru
      _
    // Predicated region
    $region42: #{tpu_custom_call.1} parent=1 // pred_check
      _
    $region43: #{tpu_custom_call.1} parent=1 // pred_check_branch
      %241 = sbr.rel (0) target = $region45
    $region44: #{tpu_custom_call.1} parent=1 // pred_region
      %s243 = ssub.s32 48, 48
      %244 = vsyncadd [#allocation18], %s243
      %s245 = sshll.u32 [#allocation19], 4
      %s246 = int_to_ptr.vmem [resolvable:$true] %s245
      %251 = dma.hbm_to_vmem [thread:$0]  %s21, 48, %s246, [#allocation18], 16, 16, 1
    $region45: #{tpu_custom_call.1} parent=1 // pred_fallthru
      _
    // Predicated region
    $region46: #{tpu_custom_call.1} parent=1 // pred_check
      _
    $region47: #{tpu_custom_call.1} parent=1 // pred_check_branch
      %253 = sbr.rel (0) target = $region49
    $region48: #{tpu_custom_call.1} parent=1 // pred_region
      %s255 = ssub.s32 256, 256
      %256 = vsyncadd [#allocation21], %s255
      %s257 = sshll.u32 [#allocation20], 4
      %s258 = int_to_ptr.vmem [resolvable:$true] %s257
      %263 = dma.hbm_to_vmem [thread:$0]  %s23, 256, %s258, [#allocation21], 64, 64, 4
    $region49: #{tpu_custom_call.1} parent=1 // pred_fallthru
      _
    // Predicated region
    $region50: #{tpu_custom_call.1} parent=1 // pred_check
      _
    $region51: #{tpu_custom_call.1} parent=1 // pred_check_branch
      %265 = sbr.rel (0) target = $region53
    $region52: #{tpu_custom_call.1} parent=1 // pred_region
      %s267 = ssub.s32 16, 16
      %268 = vsyncadd [#allocation21], %s267
      %s270 = sshll.u32 [#allocation22], 4
      %s271 = int_to_ptr.vmem [resolvable:$true] %s270
      %273 = dma.hbm_to_vmem [thread:$0]  %s25, 16, %s271, [#allocation21]
    $region53: #{tpu_custom_call.1} parent=1 // pred_fallthru
      _
    // Predicated region
    $region54: #{tpu_custom_call.1} parent=1 // pred_check
      _
    $region55: #{tpu_custom_call.1} parent=1 // pred_check_branch
      %275 = sbr.rel (0) target = $region57
    $region56: #{tpu_custom_call.1} parent=1 // pred_region
      _
    $region57: #{tpu_custom_call.1} parent=1 // pred_fallthru
      _
    // Predicated region
    $region58: #{tpu_custom_call.1} parent=1 // pred_check
      _
    $region59: #{tpu_custom_call.1} parent=1 // pred_check_branch
      %277 = sbr.rel (0) target = $region61
    $region60: #{tpu_custom_call.1} parent=1 // pred_region
      %s279 = ssub.s32 48, 48
      %280 = vsyncadd [#allocation24], %s279
      %s281 = sshll.u32 [#allocation23], 4
      %s282 = int_to_ptr.vmem [resolvable:$true] %s281
      %287 = dma.hbm_to_vmem [thread:$0]  %s29, 48, %s282, [#allocation24], 16, 16, 1
    $region61: #{tpu_custom_call.1} parent=1 // pred_fallthru
      _
    // Predicated region
    $region62: #{tpu_custom_call.1} parent=1 // pred_check
      _
    $region63: #{tpu_custom_call.1} parent=1 // pred_check_branch
      %289 = sbr.rel (0) target = $region65
    $region64: #{tpu_custom_call.1} parent=1 // pred_region
      %s291 = ssub.s32 768, 768
      %292 = vsyncadd [#allocation24], %s291
      %s293 = sshll.u32 [#allocation25], 4
      %s294 = int_to_ptr.vmem [resolvable:$true] %s293
      %299 = dma.hbm_to_vmem [thread:$0]  %s31, 768, %s294, [#allocation24], 64, 64, 4
    $region65: #{tpu_custom_call.1} parent=1 // pred_fallthru
      _
    // Predicated region
    $region66: #{tpu_custom_call.1} parent=1 // pred_check
      _
    $region67: #{tpu_custom_call.1} parent=1 // pred_check_branch
      %301 = sbr.rel (0) target = $region69
    $region68: #{tpu_custom_call.1} parent=1 // pred_region
      %s303 = ssub.s32 48, 48
      %304 = vsyncadd [#allocation27], %s303
      %s305 = sshll.u32 [#allocation26], 4
      %s306 = int_to_ptr.vmem [resolvable:$true] %s305
      %311 = dma.hbm_to_vmem [thread:$0]  %s33, 48, %s306, [#allocation27], 16, 16, 1
    $region69: #{tpu_custom_call.1} parent=1 // pred_fallthru
      _
    // Predicated region
    $region70: #{tpu_custom_call.1} parent=1 // pred_check
      _
    $region71: #{tpu_custom_call.1} parent=1 // pred_check_branch
      %313 = sbr.rel (0) target = $region73
    $region72: #{tpu_custom_call.1} parent=1 // pred_region
      %s315 = ssub.s32 256, 256
      %316 = vsyncadd [#allocation27], %s315
      %s317 = sshll.u32 [#allocation28], 4
      %s318 = int_to_ptr.vmem [resolvable:$true] %s317
      %323 = dma.hbm_to_vmem [thread:$0]  %s35, 256, %s318, [#allocation27], 64, 64, 4
    $region73: #{tpu_custom_call.1} parent=1 // pred_fallthru
      _
    // Predicated region
    $region74: #{tpu_custom_call.1} parent=1 // pred_check
      _
    $region75: #{tpu_custom_call.1} parent=1 // pred_check_branch
      %325 = sbr.rel (0) target = $region77
    $region76: #{tpu_custom_call.1} parent=1 // pred_region
      %s327 = ssub.s32 16, 16
      %328 = vsyncadd [#allocation30], %s327
      %s330 = sshll.u32 [#allocation29], 4
      %s331 = int_to_ptr.vmem [resolvable:$true] %s330
      %333 = dma.hbm_to_vmem [thread:$0]  %s37, 16, %s331, [#allocation30]
    $region77: #{tpu_custom_call.1} parent=1 // pred_fallthru
      _
    // Predicated region
    $region78: #{tpu_custom_call.1} parent=1 // pred_check
      _
    $region79: #{tpu_custom_call.1} parent=1 // pred_check_branch
      %335 = sbr.rel (0) target = $region81
    $region80: #{tpu_custom_call.1} parent=1 // pred_region
      %s337 = ssub.s32 768, 768
      %338 = vsyncadd [#allocation30], %s337
      %s339 = sshll.u32 [#allocation31], 4
      %s340 = int_to_ptr.vmem [resolvable:$true] %s339
      %345 = dma.hbm_to_vmem [thread:$0]  %s39, 768, %s340, [#allocation30], 64, 64, 4
    $region81: #{tpu_custom_call.1} parent=1 // pred_fallthru
      _
    // Predicated region
    $region82: #{tpu_custom_call.1} parent=1 // pred_check
      _
    $region83: #{tpu_custom_call.1} parent=1 // pred_check_branch
      %347 = sbr.rel (0) target = $region85
    $region84: #{tpu_custom_call.1} parent=1 // pred_region
      %s349 = ssub.s32 48, 48
      %350 = vsyncadd [#allocation33], %s349
      %s351 = sshll.u32 [#allocation32], 4
      %s352 = int_to_ptr.vmem [resolvable:$true] %s351
      %357 = dma.hbm_to_vmem [thread:$0]  %s41, 48, %s352, [#allocation33], 16, 16, 1
    $region85: #{tpu_custom_call.1} parent=1 // pred_fallthru
      _
    // Predicated region
    $region86: #{tpu_custom_call.1} parent=1 // pred_check
      _
    $region87: #{tpu_custom_call.1} parent=1 // pred_check_branch
      %359 = sbr.rel (0) target = $region89
    $region88: #{tpu_custom_call.1} parent=1 // pred_region
      %s361 = ssub.s32 768, 768
      %362 = vsyncadd [#allocation33], %s361
      %s363 = sshll.u32 [#allocation34], 4
      %s364 = int_to_ptr.vmem [resolvable:$true] %s363
      %369 = dma.hbm_to_vmem [thread:$0]  %s43, 768, %s364, [#allocation33], 64, 64, 4
    $region89: #{tpu_custom_call.1} parent=1 // pred_fallthru
      _
    // Predicated region
    $region90: #{tpu_custom_call.1} parent=1 // pred_check
      _
    $region91: #{tpu_custom_call.1} parent=1 // pred_check_branch
      %371 = sbr.rel (0) target = $region93
    $region92: #{tpu_custom_call.1} parent=1 // pred_region
      %s373 = ssub.s32 48, 48
      %374 = vsyncadd [#allocation36], %s373
      %s375 = sshll.u32 [#allocation35], 4
      %s376 = int_to_ptr.vmem [resolvable:$true] %s375
      %381 = dma.hbm_to_vmem [thread:$0]  %s45, 48, %s376, [#allocation36], 16, 16, 1
    $region93: #{tpu_custom_call.1} parent=1 // pred_fallthru
      _
    // Predicated region
    $region94: #{tpu_custom_call.1} parent=1 // pred_check
      _
    $region95: #{tpu_custom_call.1} parent=1 // pred_check_branch
      %383 = sbr.rel (0) target = $region97
    $region96: #{tpu_custom_call.1} parent=1 // pred_region
      %s385 = ssub.s32 256, 256
      %386 = vsyncadd [#allocation36], %s385
      %s387 = sshll.u32 [#allocation37], 4
      %s388 = int_to_ptr.vmem [resolvable:$true] %s387
      %393 = dma.hbm_to_vmem [thread:$0]  %s47, 256, %s388, [#allocation36], 64, 64, 4
    $region97: #{tpu_custom_call.1} parent=1 // pred_fallthru
      _
    // Predicated region
    $region98: #{tpu_custom_call.1} parent=1 // pred_check
      _
    $region99: #{tpu_custom_call.1} parent=1 // pred_check_branch
      %395 = sbr.rel (0) target = $region101
    $region100: #{tpu_custom_call.1} parent=1 // pred_region
      %s397 = ssub.s32 16, 16
      %398 = vsyncadd [#allocation39], %s397
      %s400 = sshll.u32 [#allocation38], 4
      %s401 = int_to_ptr.vmem [resolvable:$true] %s400
      %403 = dma.hbm_to_vmem [thread:$0]  %s49, 16, %s401, [#allocation39]
    $region101: #{tpu_custom_call.1} parent=1 // pred_fallthru
      _
    // Predicated region
    $region102: #{tpu_custom_call.1} parent=1 // pred_check
      _
    $region103: #{tpu_custom_call.1} parent=1 // pred_check_branch
      %405 = sbr.rel (0) target = $region105
    $region104: #{tpu_custom_call.1} parent=1 // pred_region
      %s407 = ssub.s32 768, 768
      %408 = vsyncadd [#allocation39], %s407
      %s409 = sshll.u32 [#allocation40], 4
      %s410 = int_to_ptr.vmem [resolvable:$true] %s409
      %415 = dma.hbm_to_vmem [thread:$0]  %s51, 768, %s410, [#allocation39], 64, 64, 4
    $region105: #{tpu_custom_call.1} parent=1 // pred_fallthru
      _
    // Predicated region
    $region106: #{tpu_custom_call.1} parent=1 // pred_check
      _
    $region107: #{tpu_custom_call.1} parent=1 // pred_check_branch
      %417 = sbr.rel (0) target = $region109
    $region108: #{tpu_custom_call.1} parent=1 // pred_region
      %s419 = ssub.s32 48, 48
      %420 = vsyncadd [#allocation42], %s419
      %s421 = sshll.u32 [#allocation41], 4
      %s422 = int_to_ptr.vmem [resolvable:$true] %s421
      %427 = dma.hbm_to_vmem [thread:$0]  %s53, 48, %s422, [#allocation42], 16, 16, 1
    $region109: #{tpu_custom_call.1} parent=1 // pred_fallthru
      _
    // Predicated region
    $region110: #{tpu_custom_call.1} parent=1 // pred_check
      _
    $region111: #{tpu_custom_call.1} parent=1 // pred_check_branch
      %429 = sbr.rel (0) target = $region113
    $region112: #{tpu_custom_call.1} parent=1 // pred_region
      _
    $region113: #{tpu_custom_call.1} parent=1 // pred_fallthru
      _
    // Predicated region
    $region114: #{tpu_custom_call.1} parent=1 // pred_check
      _
    $region115: #{tpu_custom_call.1} parent=1 // pred_check_branch
      %431 = sbr.rel (0) target = $region117
    $region116: #{tpu_custom_call.1} parent=1 // pred_region
      _
    $region117: #{tpu_custom_call.1} parent=1 // pred_fallthru
      _
    // Predicated region
    $region118: #{tpu_custom_call.1} parent=1 // pred_check
      _
    $region119: #{tpu_custom_call.1} parent=1 // pred_check_branch
      %433 = sbr.rel (0) target = $region121
    $region120: #{tpu_custom_call.1} parent=1 // pred_region
      %s435 = ssub.s32 256, 256
      %436 = vsyncadd [#allocation42], %s435
      %s437 = sshll.u32 [#allocation43], 4
      %s438 = int_to_ptr.vmem [resolvable:$true] %s437
      %443 = dma.hbm_to_vmem [thread:$0]  %s59, 256, %s438, [#allocation42], 64, 64, 4
    $region121: #{tpu_custom_call.1} parent=1 // pred_fallthru
      _
    // Predicated region
    $region122: #{tpu_custom_call.1} parent=1 // pred_check
      _
    $region123: #{tpu_custom_call.1} parent=1 // pred_check_branch
      %445 = sbr.rel (0) target = $region125
    $region124: #{tpu_custom_call.1} parent=1 // pred_region
      %s447 = ssub.s32 16, 16
      %448 = vsyncadd [#allocation45], %s447
      %s450 = sshll.u32 [#allocation44], 4
      %s451 = int_to_ptr.vmem [resolvable:$true] %s450
      %453 = dma.hbm_to_vmem [thread:$0]  %s61, 16, %s451, [#allocation45]
    $region125: #{tpu_custom_call.1} parent=1 // pred_fallthru
      _
    // Predicated region
    $region126: #{tpu_custom_call.1} parent=1 // pred_check
      _
    $region127: #{tpu_custom_call.1} parent=1 // pred_check_branch
      %455 = sbr.rel (0) target = $region129
    $region128: #{tpu_custom_call.1} parent=1 // pred_region
      %s457 = ssub.s32 768, 768
      %458 = vsyncadd [#allocation45], %s457
      %s459 = sshll.u32 [#allocation46], 4
      %s460 = int_to_ptr.vmem [resolvable:$true] %s459
      %465 = dma.hbm_to_vmem [thread:$0]  %s63, 768, %s460, [#allocation45], 64, 64, 4
    $region129: #{tpu_custom_call.1} parent=1 // pred_fallthru
      _
    // Predicated region
    $region130: #{tpu_custom_call.1} parent=1 // pred_check
      _
    $region131: #{tpu_custom_call.1} parent=1 // pred_check_branch
      %467 = sbr.rel (0) target = $region133
    $region132: #{tpu_custom_call.1} parent=1 // pred_region
      %s469 = ssub.s32 48, 48
      %470 = vsyncadd [#allocation48], %s469
      %s471 = sshll.u32 [#allocation47], 4
      %s472 = int_to_ptr.vmem [resolvable:$true] %s471
      %477 = dma.hbm_to_vmem [thread:$0]  %s65, 48, %s472, [#allocation48], 16, 16, 1
    $region133: #{tpu_custom_call.1} parent=1 // pred_fallthru
      _
    // Predicated region
    $region134: #{tpu_custom_call.1} parent=1 // pred_check
      _
    $region135: #{tpu_custom_call.1} parent=1 // pred_check_branch
      %479 = sbr.rel (0) target = $region137
    $region136: #{tpu_custom_call.1} parent=1 // pred_region
      %s481 = ssub.s32 768, 768
      %482 = vsyncadd [#allocation48], %s481
      %s483 = sshll.u32 [#allocation49], 4
      %s484 = int_to_ptr.vmem [resolvable:$true] %s483
      %489 = dma.hbm_to_vmem [thread:$0]  %s67, 768, %s484, [#allocation48], 64, 64, 4
    $region137: #{tpu_custom_call.1} parent=1 // pred_fallthru
      _
    // Predicated region
    $region138: #{tpu_custom_call.1} parent=1 // pred_check
      _
    $region139: #{tpu_custom_call.1} parent=1 // pred_check_branch
      %491 = sbr.rel (0) target = $region141
    $region140: #{tpu_custom_call.1} parent=1 // pred_region
      %s493 = ssub.s32 48, 48
      %494 = vsyncadd [#allocation51], %s493
      %s495 = sshll.u32 [#allocation50], 4
      %s496 = int_to_ptr.vmem [resolvable:$true] %s495
      %501 = dma.hbm_to_vmem [thread:$0]  %s69, 48, %s496, [#allocation51], 16, 16, 1
    $region141: #{tpu_custom_call.1} parent=1 // pred_fallthru
      _
    // Predicated region
    $region142: #{tpu_custom_call.1} parent=1 // pred_check
      _
    $region143: #{tpu_custom_call.1} parent=1 // pred_check_branch
      %503 = sbr.rel (0) target = $region145
    $region144: #{tpu_custom_call.1} parent=1 // pred_region
      %s505 = ssub.s32 256, 256
      %506 = vsyncadd [#allocation51], %s505
      %s507 = sshll.u32 [#allocation52], 4
      %s508 = int_to_ptr.vmem [resolvable:$true] %s507
      %513 = dma.hbm_to_vmem [thread:$0]  %s71, 256, %s508, [#allocation51], 64, 64, 4
    $region145: #{tpu_custom_call.1} parent=1 // pred_fallthru
      _
    // Predicated region
    $region146: #{tpu_custom_call.1} parent=1 // pred_check
      _
    $region147: #{tpu_custom_call.1} parent=1 // pred_check_branch
      %515 = sbr.rel (0) target = $region149
    $region148: #{tpu_custom_call.1} parent=1 // pred_region
      %s517 = ssub.s32 16, 16
      %518 = vsyncadd [#allocation54], %s517
      %s520 = sshll.u32 [#allocation53], 4
      %s521 = int_to_ptr.vmem [resolvable:$true] %s520
      %523 = dma.hbm_to_vmem [thread:$0]  %s73, 16, %s521, [#allocation54]
    $region149: #{tpu_custom_call.1} parent=1 // pred_fallthru
      _
    // Predicated region
    $region150: #{tpu_custom_call.1} parent=1 // pred_check
      _
    $region151: #{tpu_custom_call.1} parent=1 // pred_check_branch
      %525 = sbr.rel (0) target = $region153
    $region152: #{tpu_custom_call.1} parent=1 // pred_region
      %s527 = ssub.s32 768, 768
      %528 = vsyncadd [#allocation54], %s527
      %s529 = sshll.u32 [#allocation55], 4
      %s530 = int_to_ptr.vmem [resolvable:$true] %s529
      %535 = dma.hbm_to_vmem [thread:$0]  %s75, 768, %s530, [#allocation54], 64, 64, 4
    $region153: #{tpu_custom_call.1} parent=1 // pred_fallthru
      _
    // Predicated region
    $region154: #{tpu_custom_call.1} parent=1 // pred_check
      _
    $region155: #{tpu_custom_call.1} parent=1 // pred_check_branch
      %537 = sbr.rel (0) target = $region157
    $region156: #{tpu_custom_call.1} parent=1 // pred_region
      %s539 = ssub.s32 48, 48
      %540 = vsyncadd [#allocation57], %s539
      %s541 = sshll.u32 [#allocation56], 4
      %s542 = int_to_ptr.vmem [resolvable:$true] %s541
      %547 = dma.hbm_to_vmem [thread:$0]  %s77, 48, %s542, [#allocation57], 16, 16, 1
    $region157: #{tpu_custom_call.1} parent=1 // pred_fallthru
      _
    // Predicated region
    $region158: #{tpu_custom_call.1} parent=1 // pred_check
      _
    $region159: #{tpu_custom_call.1} parent=1 // pred_check_branch
      %549 = sbr.rel (0) target = $region161
    $region160: #{tpu_custom_call.1} parent=1 // pred_region
      _
    $region161: #{tpu_custom_call.1} parent=1 // pred_fallthru
      _
    // Predicated region
    $region162: #{tpu_custom_call.1} parent=1 // pred_check
      _
    $region163: #{tpu_custom_call.1} parent=1 // pred_check_branch
      %551 = sbr.rel (0) target = $region165
    $region164: #{tpu_custom_call.1} parent=1 // pred_region
      _
    $region165: #{tpu_custom_call.1} parent=1 // pred_fallthru
      _
    // Predicated region
    $region166: #{tpu_custom_call.1} parent=1 // pred_check
      _
    $region167: #{tpu_custom_call.1} parent=1 // pred_check_branch
      %553 = sbr.rel (0) target = $region169
    $region168: #{tpu_custom_call.1} parent=1 // pred_region
      %s555 = ssub.s32 512, 512
      %556 = vsyncadd [#allocation57], %s555
      %s557 = sshll.u32 [#allocation58], 4
      %s558 = int_to_ptr.vmem [resolvable:$true] %s557
      %563 = dma.hbm_to_vmem [thread:$0]  %s83, 512, %s558, [#allocation57], 128, 128, 8
    $region169: #{tpu_custom_call.1} parent=1 // pred_fallthru
      _
    // Predicated region
    $region170: #{tpu_custom_call.1} parent=1 // pred_check
      _
    $region171: #{tpu_custom_call.1} parent=1 // pred_check_branch
      %565 = sbr.rel (0) target = $region173
    $region172: #{tpu_custom_call.1} parent=1 // pred_region
      _
    $region173: #{tpu_custom_call.1} parent=1 // pred_fallthru
      _
    // Predicated region
    $region174: #{tpu_custom_call.1} parent=1 // pred_check
      _
    $region175: #{tpu_custom_call.1} parent=1 // pred_check_branch
      %567 = sbr.rel (0) target = $region177
    $region176: #{tpu_custom_call.1} parent=1 // pred_region
      %568 = dma.done [#allocation3], 256
    $region177: #{tpu_custom_call.1} parent=1 // pred_fallthru
      _
    // Predicated region
    $region178: #{tpu_custom_call.1} parent=1 // pred_check
      _
    $region179: #{tpu_custom_call.1} parent=1 // pred_check_branch
      %570 = sbr.rel (0) target = $region181
    $region180: #{tpu_custom_call.1} parent=1 // pred_region
      %571 = dma.done [#allocation6], 256
    $region181: #{tpu_custom_call.1} parent=1 // pred_fallthru
      _
    // Predicated region
    $region182: #{tpu_custom_call.1} parent=1 // pred_check
      _
    $region183: #{tpu_custom_call.1} parent=1 // pred_check_branch
      %573 = sbr.rel (0) target = $region185
    $region184: #{tpu_custom_call.1} parent=1 // pred_region
      %574 = dma.done [#allocation6], 384
    $region185: #{tpu_custom_call.1} parent=1 // pred_fallthru
      _
    // Predicated region
    $region186: #{tpu_custom_call.1} parent=1 // pred_check
      _
    $region187: #{tpu_custom_call.1} parent=1 // pred_check_branch
      %576 = sbr.rel (0) target = $region189
    $region188: #{tpu_custom_call.1} parent=1 // pred_region
      %577 = dma.done [#allocation9], 384
    $region189: #{tpu_custom_call.1} parent=1 // pred_fallthru
      _
    // Predicated region
    $region190: #{tpu_custom_call.1} parent=1 // pred_check
      _
    $region191: #{tpu_custom_call.1} parent=1 // pred_check_branch
      %579 = sbr.rel (0) target = $region193
    $region192: #{tpu_custom_call.1} parent=1 // pred_region
      %580 = dma.done [#allocation9], 16
    $region193: #{tpu_custom_call.1} parent=1 // pred_fallthru
      _
    // Predicated region
    $region194: #{tpu_custom_call.1} parent=1 // pred_check
      _
    $region195: #{tpu_custom_call.1} parent=1 // pred_check_branch
      %582 = sbr.rel (0) target = $region197
    $region196: #{tpu_custom_call.1} parent=1 // pred_region
      %583 = dma.done [#allocation12], 256
    $region197: #{tpu_custom_call.1} parent=1 // pred_fallthru
      _
    // Predicated region
    $region198: #{tpu_custom_call.1} parent=1 // pred_check
      _
    $region199: #{tpu_custom_call.1} parent=1 // pred_check_branch
      %585 = sbr.rel (0) target = $region201
    $region200: #{tpu_custom_call.1} parent=1 // pred_region
      %586 = dma.done [#allocation12], 16
    $region201: #{tpu_custom_call.1} parent=1 // pred_fallthru
      _
    // Predicated region
    $region202: #{tpu_custom_call.1} parent=1 // pred_check
      _
    $region203: #{tpu_custom_call.1} parent=1 // pred_check_branch
      %588 = sbr.rel (0) target = $region205
    $region204: #{tpu_custom_call.1} parent=1 // pred_region
      %589 = dma.done [#allocation15], 768
    $region205: #{tpu_custom_call.1} parent=1 // pred_fallthru
      _
    // Predicated region
    $region206: #{tpu_custom_call.1} parent=1 // pred_check
      _
    $region207: #{tpu_custom_call.1} parent=1 // pred_check_branch
      %591 = sbr.rel (0) target = $region209
    $region208: #{tpu_custom_call.1} parent=1 // pred_region
      %592 = dma.done [#allocation15], 48
    $region209: #{tpu_custom_call.1} parent=1 // pred_fallthru
      _
    // Predicated region
    $region210: #{tpu_custom_call.1} parent=1 // pred_check
      _
    $region211: #{tpu_custom_call.1} parent=1 // pred_check_branch
      %594 = sbr.rel (0) target = $region213
    $region212: #{tpu_custom_call.1} parent=1 // pred_region
      %595 = dma.done [#allocation18], 768
    $region213: #{tpu_custom_call.1} parent=1 // pred_fallthru
      _
    // Predicated region
    $region214: #{tpu_custom_call.1} parent=1 // pred_check
      _
    $region215: #{tpu_custom_call.1} parent=1 // pred_check_branch
      %597 = sbr.rel (0) target = $region217
    $region216: #{tpu_custom_call.1} parent=1 // pred_region
      %598 = dma.done [#allocation18], 48
    $region217: #{tpu_custom_call.1} parent=1 // pred_fallthru
      _
    // Predicated region
    $region218: #{tpu_custom_call.1} parent=1 // pred_check
      _
    $region219: #{tpu_custom_call.1} parent=1 // pred_check_branch
      %600 = sbr.rel (0) target = $region221
    $region220: #{tpu_custom_call.1} parent=1 // pred_region
      %601 = dma.done [#allocation21], 256
    $region221: #{tpu_custom_call.1} parent=1 // pred_fallthru
      _
    // Predicated region
    $region222: #{tpu_custom_call.1} parent=1 // pred_check
      _
    $region223: #{tpu_custom_call.1} parent=1 // pred_check_branch
      %603 = sbr.rel (0) target = $region225
    $region224: #{tpu_custom_call.1} parent=1 // pred_region
      %604 = dma.done [#allocation21], 16
    $region225: #{tpu_custom_call.1} parent=1 // pred_fallthru
      _
    // Predicated region
    $region226: #{tpu_custom_call.1} parent=1 // pred_check
      _
    $region227: #{tpu_custom_call.1} parent=1 // pred_check_branch
      %606 = sbr.rel (0) target = $region229
    $region228: #{tpu_custom_call.1} parent=1 // pred_region
      %607 = dma.done [#allocation24], 48
    $region229: #{tpu_custom_call.1} parent=1 // pred_fallthru
      _
    // Predicated region
    $region230: #{tpu_custom_call.1} parent=1 // pred_check
      _
    $region231: #{tpu_custom_call.1} parent=1 // pred_check_branch
      %609 = sbr.rel (0) target = $region233
    $region232: #{tpu_custom_call.1} parent=1 // pred_region
      %610 = dma.done [#allocation24], 768
    $region233: #{tpu_custom_call.1} parent=1 // pred_fallthru
      _
    // Predicated region
    $region234: #{tpu_custom_call.1} parent=1 // pred_check
      _
    $region235: #{tpu_custom_call.1} parent=1 // pred_check_branch
      %612 = sbr.rel (0) target = $region237
    $region236: #{tpu_custom_call.1} parent=1 // pred_region
      %613 = dma.done [#allocation27], 48
    $region237: #{tpu_custom_call.1} parent=1 // pred_fallthru
      _
    // Predicated region
    $region238: #{tpu_custom_call.1} parent=1 // pred_check
      _
    $region239: #{tpu_custom_call.1} parent=1 // pred_check_branch
      %615 = sbr.rel (0) target = $region241
    $region240: #{tpu_custom_call.1} parent=1 // pred_region
      %616 = dma.done [#allocation27], 256
    $region241: #{tpu_custom_call.1} parent=1 // pred_fallthru
      _
    // Predicated region
    $region242: #{tpu_custom_call.1} parent=1 // pred_check
      _
    $region243: #{tpu_custom_call.1} parent=1 // pred_check_branch
      %618 = sbr.rel (0) target = $region245
    $region244: #{tpu_custom_call.1} parent=1 // pred_region
      %619 = dma.done [#allocation30], 16
    $region245: #{tpu_custom_call.1} parent=1 // pred_fallthru
      _
    // Predicated region
    $region246: #{tpu_custom_call.1} parent=1 // pred_check
      _
    $region247: #{tpu_custom_call.1} parent=1 // pred_check_branch
      %621 = sbr.rel (0) target = $region249
    $region248: #{tpu_custom_call.1} parent=1 // pred_region
      %622 = dma.done [#allocation30], 768
    $region249: #{tpu_custom_call.1} parent=1 // pred_fallthru
      _
    // Predicated region
    $region250: #{tpu_custom_call.1} parent=1 // pred_check
      _
    $region251: #{tpu_custom_call.1} parent=1 // pred_check_branch
      %624 = sbr.rel (0) target = $region253
    $region252: #{tpu_custom_call.1} parent=1 // pred_region
      %625 = dma.done [#allocation33], 48
    $region253: #{tpu_custom_call.1} parent=1 // pred_fallthru
      _
    // Predicated region
    $region254: #{tpu_custom_call.1} parent=1 // pred_check
      _
    $region255: #{tpu_custom_call.1} parent=1 // pred_check_branch
      %627 = sbr.rel (0) target = $region257
    $region256: #{tpu_custom_call.1} parent=1 // pred_region
      %628 = dma.done [#allocation33], 768
    $region257: #{tpu_custom_call.1} parent=1 // pred_fallthru
      _
    // Predicated region
    $region258: #{tpu_custom_call.1} parent=1 // pred_check
      _
    $region259: #{tpu_custom_call.1} parent=1 // pred_check_branch
      %630 = sbr.rel (0) target = $region261
    $region260: #{tpu_custom_call.1} parent=1 // pred_region
      %631 = dma.done [#allocation36], 48
    $region261: #{tpu_custom_call.1} parent=1 // pred_fallthru
      _
    // Predicated region
    $region262: #{tpu_custom_call.1} parent=1 // pred_check
      _
    $region263: #{tpu_custom_call.1} parent=1 // pred_check_branch
      %633 = sbr.rel (0) target = $region265
    $region264: #{tpu_custom_call.1} parent=1 // pred_region
      %634 = dma.done [#allocation36], 256
    $region265: #{tpu_custom_call.1} parent=1 // pred_fallthru
      _
    // Predicated region
    $region266: #{tpu_custom_call.1} parent=1 // pred_check
      _
    $region267: #{tpu_custom_call.1} parent=1 // pred_check_branch
      %636 = sbr.rel (0) target = $region269
    $region268: #{tpu_custom_call.1} parent=1 // pred_region
      %637 = dma.done [#allocation39], 16
    $region269: #{tpu_custom_call.1} parent=1 // pred_fallthru
      _
    // Predicated region
    $region270: #{tpu_custom_call.1} parent=1 // pred_check
      _
    $region271: #{tpu_custom_call.1} parent=1 // pred_check_branch
      %639 = sbr.rel (0) target = $region273
    $region272: #{tpu_custom_call.1} parent=1 // pred_region
      %640 = dma.done [#allocation39], 768
    $region273: #{tpu_custom_call.1} parent=1 // pred_fallthru
      _
    // Predicated region
    $region274: #{tpu_custom_call.1} parent=1 // pred_check
      _
    $region275: #{tpu_custom_call.1} parent=1 // pred_check_branch
      %642 = sbr.rel (0) target = $region277
    $region276: #{tpu_custom_call.1} parent=1 // pred_region
      %643 = dma.done [#allocation42], 48
    $region277: #{tpu_custom_call.1} parent=1 // pred_fallthru
      _
    // Predicated region
    $region278: #{tpu_custom_call.1} parent=1 // pred_check
      _
    $region279: #{tpu_custom_call.1} parent=1 // pred_check_branch
      %645 = sbr.rel (0) target = $region281
    $region280: #{tpu_custom_call.1} parent=1 // pred_region
      %646 = dma.done [#allocation42], 256
    $region281: #{tpu_custom_call.1} parent=1 // pred_fallthru
      _
    // Predicated region
    $region282: #{tpu_custom_call.1} parent=1 // pred_check
      _
    $region283: #{tpu_custom_call.1} parent=1 // pred_check_branch
      %648 = sbr.rel (0) target = $region285
    $region284: #{tpu_custom_call.1} parent=1 // pred_region
      %649 = dma.done [#allocation45], 16
    $region285: #{tpu_custom_call.1} parent=1 // pred_fallthru
      _
    // Predicated region
    $region286: #{tpu_custom_call.1} parent=1 // pred_check
      _
    $region287: #{tpu_custom_call.1} parent=1 // pred_check_branch
      %651 = sbr.rel (0) target = $region289
    $region288: #{tpu_custom_call.1} parent=1 // pred_region
      %652 = dma.done [#allocation45], 768
    $region289: #{tpu_custom_call.1} parent=1 // pred_fallthru
      _
    // Predicated region
    $region290: #{tpu_custom_call.1} parent=1 // pred_check
      _
    $region291: #{tpu_custom_call.1} parent=1 // pred_check_branch
      %654 = sbr.rel (0) target = $region293
    $region292: #{tpu_custom_call.1} parent=1 // pred_region
      %655 = dma.done [#allocation48], 48
    $region293: #{tpu_custom_call.1} parent=1 // pred_fallthru
      _
    // Predicated region
    $region294: #{tpu_custom_call.1} parent=1 // pred_check
      _
    $region295: #{tpu_custom_call.1} parent=1 // pred_check_branch
      %657 = sbr.rel (0) target = $region297
    $region296: #{tpu_custom_call.1} parent=1 // pred_region
      %658 = dma.done [#allocation48], 768
    $region297: #{tpu_custom_call.1} parent=1 // pred_fallthru
      _
    // Predicated region
    $region298: #{tpu_custom_call.1} parent=1 // pred_check
      _
    $region299: #{tpu_custom_call.1} parent=1 // pred_check_branch
      %660 = sbr.rel (0) target = $region301
    $region300: #{tpu_custom_call.1} parent=1 // pred_region
      %661 = dma.done [#allocation51], 48
    $region301: #{tpu_custom_call.1} parent=1 // pred_fallthru
      _
    // Predicated region
    $region302: #{tpu_custom_call.1} parent=1 // pred_check
      _
    $region303: #{tpu_custom_call.1} parent=1 // pred_check_branch
      %663 = sbr.rel (0) target = $region305
    $region304: #{tpu_custom_call.1} parent=1 // pred_region
      %664 = dma.done [#allocation51], 256
    $region305: #{tpu_custom_call.1} parent=1 // pred_fallthru
      _
    // Predicated region
    $region306: #{tpu_custom_call.1} parent=1 // pred_check
      _
    $region307: #{tpu_custom_call.1} parent=1 // pred_check_branch
      %666 = sbr.rel (0) target = $region309
    $region308: #{tpu_custom_call.1} parent=1 // pred_region
      %667 = dma.done [#allocation54], 16
    $region309: #{tpu_custom_call.1} parent=1 // pred_fallthru
      _
    // Predicated region
    $region310: #{tpu_custom_call.1} parent=1 // pred_check
      _
    $region311: #{tpu_custom_call.1} parent=1 // pred_check_branch
      %669 = sbr.rel (0) target = $region313
    $region312: #{tpu_custom_call.1} parent=1 // pred_region
      %670 = dma.done [#allocation54], 768
    $region313: #{tpu_custom_call.1} parent=1 // pred_fallthru
      _
    // Predicated region
    $region314: #{tpu_custom_call.1} parent=1 // pred_check
      _
    $region315: #{tpu_custom_call.1} parent=1 // pred_check_branch
      %672 = sbr.rel (0) target = $region317
    $region316: #{tpu_custom_call.1} parent=1 // pred_region
      %673 = dma.done [#allocation57], 48
    $region317: #{tpu_custom_call.1} parent=1 // pred_fallthru
      _
    // Predicated region
    $region318: #{tpu_custom_call.1} parent=1 // pred_check
      _
    $region319: #{tpu_custom_call.1} parent=1 // pred_check_branch
      %675 = sbr.rel (0) target = $region321
    $region320: #{tpu_custom_call.1} parent=1 // pred_region
      %676 = dma.done [#allocation57], 512
    $region321: #{tpu_custom_call.1} parent=1 // pred_fallthru
      _
    %v678 = vld [vmem:[#allocation2] sm:$0xff]
    %v679 = vld [vmem:[#allocation2 + $0x8] sm:$0x3]
    %v680 = vld [vmem:[#allocation11] sm:$0xf]
    %v681 = vld [vmem:[#allocation11 + $0x4] sm:$0xf]
    %v682 = vld [vmem:[#allocation11 + $0x8] sm:$0xf]
    %v683 = vld [vmem:[#allocation11 + $0xc] sm:$0xf]
    %v684 = vpack.c.bf16 %v679, %v678
    %v685 = vld [vmem:[#allocation13] sm:$0x1]
    %v687 = vlaneseq
    %v688 = vshrl.u32 %v687, 7
    %v689 = vsub.s32 0, %v688
    %v690 = vrot.slane %v685, %v689
    %v696 = vunpack.c.l.b16 %v680
    %v697 = vunpack.c.l.b16 %v681
    %v698 = vunpack.c.l.b16 %v682
    %v699 = vunpack.c.l.b16 %v683
    %v700 = vpack.c.b16 %v697, %v696
    %v701 = vpack.c.b16 %v699, %v698
    %vm704 = vcmask 261120
    %v706 = vsel %vm704, %v684, 0
    %708 = vmatprep.subr.bf16.mxu0 0
    %709 = vmatpush1.bf16.msra.mxu0 %v700
    %710 = vmatprep.subr.bf16.mxu0 0
    %711 = vmatpush1.bf16.msra.mxu0 %v701
    %712 = vmatprep.subr.bf16.mxu0 0
    %713 = vmatpush1.bf16.msra.mxu0 0
    %714 = vmatprep.subr.bf16.mxu0 0
    %715 = vmatpush1.bf16.msra.mxu0 0
    %716 = vmatprep.subr.bf16.mxu0 0
    %717 = vmatpush1.bf16.msra.mxu0 0
    %718 = vmatprep.subr.bf16.mxu0 0
    %719 = vmatpush1.bf16.msra.mxu0 0
    %720 = vmatprep.subr.bf16.mxu0 0
    %721 = vmatpush1.bf16.msra.mxu0 0
    %722 = vmatprep.subr.bf16.mxu0 0
    %723 = vmatpush1.bf16.msra.mxu0 0
    %724 = vmatprep.subr.bf16.mxu0 0
    %725 = vmatpush1.bf16.msra.mxu0 0
    %726 = vmatprep.subr.bf16.mxu0 0
    %727 = vmatpush1.bf16.msra.mxu0 0
    %728 = vmatprep.subr.bf16.mxu0 0
    %729 = vmatpush1.bf16.msra.mxu0 0
    %730 = vmatprep.subr.bf16.mxu0 0
    %731 = vmatpush1.bf16.msra.mxu0 0
    %732 = vmatprep.subr.bf16.mxu0 0
    %733 = vmatpush1.bf16.msra.mxu0 0
    %734 = vmatprep.subr.bf16.mxu0 0
    %735 = vmatpush1.bf16.msra.mxu0 0
    %736 = vmatprep.subr.bf16.mxu0 0
    %737 = vmatpush1.bf16.msra.mxu0 0
    %738 = vmatprep.subr.bf16.mxu0 0
    %739 = vmatpush1.bf16.msra.mxu0 0
    %740 = vmatprep.mubr.bf16.mxu0 0
    %741 = vmatmul.mubr.bf16.gmra.mrb[0].mxu0 %v706
    %v742 = vpop.f32.mrb[0].mxu0
    %v743 = vadd.f32 %v690, %v742
    %v744 = vpop.f32.mrb[0].mxu0
    %v745 = vpop.f32.mrb[0].mxu0
    %v746 = vadd.f32 %v690, %v745
    %v747 = vpop.f32.mrb[0].mxu0
    %748 = vdwg.mxu0
    %v749 = vld [vmem:[#allocation14] sm:$0xf]
    %v750 = vld [vmem:[#allocation14 + $0x4] sm:$0xf]
    %v751 = vld [vmem:[#allocation14 + $0x8] sm:$0xf]
    %v752 = vld [vmem:[#allocation14 + $0xc] sm:$0xf]
    %v753 = vpack.c.bf16 %v746, %v743
    %v754 = vld [vmem:[#allocation16] sm:$0x1]
    %v756 = vlaneseq
    %v757 = vshrl.u32 %v756, 7
    %v758 = vsub.s32 0, %v757
    %v759 = vrot.slane %v754, %v758
    %v765 = vunpack.c.l.b16 %v749
    %v766 = vunpack.c.l.b16 %v750
    %v767 = vunpack.c.l.b16 %v751
    %v768 = vunpack.c.l.b16 %v752
    %v769 = vpack.c.b16 %v766, %v765
    %v770 = vpack.c.b16 %v768, %v767
    %v774 = vsel %vm704, %v753, 0
    %776 = vmatprep.subr.bf16.mxu0 0
    %777 = vmatpush1.bf16.msra.mxu0 %v769
    %778 = vmatprep.subr.bf16.mxu0 0
    %779 = vmatpush1.bf16.msra.mxu0 %v770
    %780 = vmatprep.subr.bf16.mxu0 0
    %781 = vmatpush1.bf16.msra.mxu0 0
    %782 = vmatprep.subr.bf16.mxu0 0
    %783 = vmatpush1.bf16.msra.mxu0 0
    %784 = vmatprep.subr.bf16.mxu0 0
    %785 = vmatpush1.bf16.msra.mxu0 0
    %786 = vmatprep.subr.bf16.mxu0 0
    %787 = vmatpush1.bf16.msra.mxu0 0
    %788 = vmatprep.subr.bf16.mxu0 0
    %789 = vmatpush1.bf16.msra.mxu0 0
    %790 = vmatprep.subr.bf16.mxu0 0
    %791 = vmatpush1.bf16.msra.mxu0 0
    %792 = vmatprep.subr.bf16.mxu0 0
    %793 = vmatpush1.bf16.msra.mxu0 0
    %794 = vmatprep.subr.bf16.mxu0 0
    %795 = vmatpush1.bf16.msra.mxu0 0
    %796 = vmatprep.subr.bf16.mxu0 0
    %797 = vmatpush1.bf16.msra.mxu0 0
    %798 = vmatprep.subr.bf16.mxu0 0
    %799 = vmatpush1.bf16.msra.mxu0 0
    %800 = vmatprep.subr.bf16.mxu0 0
    %801 = vmatpush1.bf16.msra.mxu0 0
    %802 = vmatprep.subr.bf16.mxu0 0
    %803 = vmatpush1.bf16.msra.mxu0 0
    %804 = vmatprep.subr.bf16.mxu0 0
    %805 = vmatpush1.bf16.msra.mxu0 0
    %806 = vmatprep.subr.bf16.mxu0 0
    %807 = vmatpush1.bf16.msra.mxu0 0
    %808 = vmatprep.mubr.bf16.mxu0 0
    %809 = vmatmul.mubr.bf16.gmra.mrb[0].mxu0 %v774
    %v810 = vpop.f32.mrb[0].mxu0
    %v811 = vadd.f32 %v759, %v810
    %v812 = vpop.f32.mrb[0].mxu0
    %v813 = vpop.f32.mrb[0].mxu0
    %v814 = vadd.f32 %v759, %v813
    %v815 = vpop.f32.mrb[0].mxu0
    %816 = vdwg.mxu0
    %v817 = vmax.f32 %v811, 0.0
    %v818 = vmax.f32 %v814, 0.0
    %v819 = vld [vmem:[#allocation17] sm:$0xf]
    %v820 = vld [vmem:[#allocation17 + $0x4] sm:$0xf]
    %v821 = vld [vmem:[#allocation17 + $0x8] sm:$0xf]
    %v822 = vld [vmem:[#allocation17 + $0xc] sm:$0xf]
    %v823 = vpack.c.bf16 %v818, %v817
    %v824 = vld [vmem:[#allocation19] sm:$0x1]
    %v826 = vlaneseq
    %v827 = vshrl.u32 %v826, 7
    %v828 = vsub.s32 0, %v827
    %v829 = vrot.slane %v824, %v828
    %v835 = vunpack.c.l.b16 %v819
    %v836 = vunpack.c.l.b16 %v820
    %v837 = vunpack.c.l.b16 %v821
    %v838 = vunpack.c.l.b16 %v822
    %v839 = vpack.c.b16 %v836, %v835
    %v840 = vpack.c.b16 %v838, %v837
    %v844 = vsel %vm704, %v823, 0
    %846 = vmatprep.subr.bf16.mxu0 0
    %847 = vmatpush1.bf16.msra.mxu0 %v839
    %848 = vmatprep.subr.bf16.mxu0 0
    %849 = vmatpush1.bf16.msra.mxu0 %v840
    %850 = vmatprep.subr.bf16.mxu0 0
    %851 = vmatpush1.bf16.msra.mxu0 0
    %852 = vmatprep.subr.bf16.mxu0 0
    %853 = vmatpush1.bf16.msra.mxu0 0
    %854 = vmatprep.subr.bf16.mxu0 0
    %855 = vmatpush1.bf16.msra.mxu0 0
    %856 = vmatprep.subr.bf16.mxu0 0
    %857 = vmatpush1.bf16.msra.mxu0 0
    %858 = vmatprep.subr.bf16.mxu0 0
    %859 = vmatpush1.bf16.msra.mxu0 0
    %860 = vmatprep.subr.bf16.mxu0 0
    %861 = vmatpush1.bf16.msra.mxu0 0
    %862 = vmatprep.subr.bf16.mxu0 0
    %863 = vmatpush1.bf16.msra.mxu0 0
    %864 = vmatprep.subr.bf16.mxu0 0
    %865 = vmatpush1.bf16.msra.mxu0 0
    %866 = vmatprep.subr.bf16.mxu0 0
    %867 = vmatpush1.bf16.msra.mxu0 0
    %868 = vmatprep.subr.bf16.mxu0 0
    %869 = vmatpush1.bf16.msra.mxu0 0
    %870 = vmatprep.subr.bf16.mxu0 0
    %871 = vmatpush1.bf16.msra.mxu0 0
    %872 = vmatprep.subr.bf16.mxu0 0
    %873 = vmatpush1.bf16.msra.mxu0 0
    %874 = vmatprep.subr.bf16.mxu0 0
    %875 = vmatpush1.bf16.msra.mxu0 0
    %876 = vmatprep.subr.bf16.mxu0 0
    %877 = vmatpush1.bf16.msra.mxu0 0
    %878 = vmatprep.mubr.bf16.mxu0 0
    %879 = vmatmul.mubr.bf16.gmra.mrb[0].mxu0 %v844
    %v880 = vpop.f32.mrb[0].mxu0
    %v881 = vadd.f32 %v829, %v880
    %v882 = vpop.f32.mrb[0].mxu0
    %v883 = vpop.f32.mrb[0].mxu0
    %v884 = vadd.f32 %v829, %v883
    %v885 = vpop.f32.mrb[0].mxu0
    %886 = vdwg.mxu0
    %v887 = vmax.f32 %v881, 0.0
    %v888 = vmax.f32 %v884, 0.0
    %v889 = vadd.f32 %v743, %v887
    %v890 = vadd.f32 %v746, %v888
    %s891 = scalar_lea.vmem [#allocation14], 16
    %v892 = vld [vmem:[%s891] sm:$0xf]
    %v893 = vld [vmem:[%s891 + $0x4] sm:$0xf]
    %v894 = vld [vmem:[%s891 + $0x8] sm:$0xf]
    %v895 = vld [vmem:[%s891 + $0xc] sm:$0xf]
    %v896 = vpack.c.bf16 %v890, %v889
    %s897 = scalar_lea.vmem [#allocation16], 1
    %v898 = vld [vmem:[%s897] sm:$0x1]
    %v900 = vlaneseq
    %v901 = vshrl.u32 %v900, 7
    %v902 = vsub.s32 0, %v901
    %v903 = vrot.slane %v898, %v902
    %v909 = vunpack.c.l.b16 %v892
    %v910 = vunpack.c.l.b16 %v893
    %v911 = vunpack.c.l.b16 %v894
    %v912 = vunpack.c.l.b16 %v895
    %v913 = vpack.c.b16 %v910, %v909
    %v914 = vpack.c.b16 %v912, %v911
    %v918 = vsel %vm704, %v896, 0
    %920 = vmatprep.subr.bf16.mxu0 0
    %921 = vmatpush1.bf16.msra.mxu0 %v913
    %922 = vmatprep.subr.bf16.mxu0 0
    %923 = vmatpush1.bf16.msra.mxu0 %v914
    %924 = vmatprep.subr.bf16.mxu0 0
    %925 = vmatpush1.bf16.msra.mxu0 0
    %926 = vmatprep.subr.bf16.mxu0 0
    %927 = vmatpush1.bf16.msra.mxu0 0
    %928 = vmatprep.subr.bf16.mxu0 0
    %929 = vmatpush1.bf16.msra.mxu0 0
    %930 = vmatprep.subr.bf16.mxu0 0
    %931 = vmatpush1.bf16.msra.mxu0 0
    %932 = vmatprep.subr.bf16.mxu0 0
    %933 = vmatpush1.bf16.msra.mxu0 0
    %934 = vmatprep.subr.bf16.mxu0 0
    %935 = vmatpush1.bf16.msra.mxu0 0
    %936 = vmatprep.subr.bf16.mxu0 0
    %937 = vmatpush1.bf16.msra.mxu0 0
    %938 = vmatprep.subr.bf16.mxu0 0
    %939 = vmatpush1.bf16.msra.mxu0 0
    %940 = vmatprep.subr.bf16.mxu0 0
    %941 = vmatpush1.bf16.msra.mxu0 0
    %942 = vmatprep.subr.bf16.mxu0 0
    %943 = vmatpush1.bf16.msra.mxu0 0
    %944 = vmatprep.subr.bf16.mxu0 0
    %945 = vmatpush1.bf16.msra.mxu0 0
    %946 = vmatprep.subr.bf16.mxu0 0
    %947 = vmatpush1.bf16.msra.mxu0 0
    %948 = vmatprep.subr.bf16.mxu0 0
    %949 = vmatpush1.bf16.msra.mxu0 0
    %950 = vmatprep.subr.bf16.mxu0 0
    %951 = vmatpush1.bf16.msra.mxu0 0
    %952 = vmatprep.mubr.bf16.mxu0 0
    %953 = vmatmul.mubr.bf16.gmra.mrb[0].mxu0 %v918
    %v954 = vpop.f32.mrb[0].mxu0
    %v955 = vadd.f32 %v903, %v954
    %v956 = vpop.f32.mrb[0].mxu0
    %v957 = vpop.f32.mrb[0].mxu0
    %v958 = vadd.f32 %v903, %v957
    %v959 = vpop.f32.mrb[0].mxu0
    %960 = vdwg.mxu0
    %v961 = vmax.f32 %v955, 0.0
    %v962 = vmax.f32 %v958, 0.0
    %s963 = scalar_lea.vmem [#allocation17], 16
    %v964 = vld [vmem:[%s963] sm:$0xf]
    %v965 = vld [vmem:[%s963 + $0x4] sm:$0xf]
    %v966 = vld [vmem:[%s963 + $0x8] sm:$0xf]
    %v967 = vld [vmem:[%s963 + $0xc] sm:$0xf]
    %v968 = vpack.c.bf16 %v962, %v961
    %s969 = scalar_lea.vmem [#allocation19], 1
    %v970 = vld [vmem:[%s969] sm:$0x1]
    %v972 = vlaneseq
    %v973 = vshrl.u32 %v972, 7
    %v974 = vsub.s32 0, %v973
    %v975 = vrot.slane %v970, %v974
    %v981 = vunpack.c.l.b16 %v964
    %v982 = vunpack.c.l.b16 %v965
    %v983 = vunpack.c.l.b16 %v966
    %v984 = vunpack.c.l.b16 %v967
    %v985 = vpack.c.b16 %v982, %v981
    %v986 = vpack.c.b16 %v984, %v983
    %v990 = vsel %vm704, %v968, 0
    %992 = vmatprep.subr.bf16.mxu0 0
    %993 = vmatpush1.bf16.msra.mxu0 %v985
    %994 = vmatprep.subr.bf16.mxu0 0
    %995 = vmatpush1.bf16.msra.mxu0 %v986
    %996 = vmatprep.subr.bf16.mxu0 0
    %997 = vmatpush1.bf16.msra.mxu0 0
    %998 = vmatprep.subr.bf16.mxu0 0
    %999 = vmatpush1.bf16.msra.mxu0 0
    %1000 = vmatprep.subr.bf16.mxu0 0
    %1001 = vmatpush1.bf16.msra.mxu0 0
    %1002 = vmatprep.subr.bf16.mxu0 0
    %1003 = vmatpush1.bf16.msra.mxu0 0
    %1004 = vmatprep.subr.bf16.mxu0 0
    %1005 = vmatpush1.bf16.msra.mxu0 0
    %1006 = vmatprep.subr.bf16.mxu0 0
    %1007 = vmatpush1.bf16.msra.mxu0 0
    %1008 = vmatprep.subr.bf16.mxu0 0
    %1009 = vmatpush1.bf16.msra.mxu0 0
    %1010 = vmatprep.subr.bf16.mxu0 0
    %1011 = vmatpush1.bf16.msra.mxu0 0
    %1012 = vmatprep.subr.bf16.mxu0 0
    %1013 = vmatpush1.bf16.msra.mxu0 0
    %1014 = vmatprep.subr.bf16.mxu0 0
    %1015 = vmatpush1.bf16.msra.mxu0 0
    %1016 = vmatprep.subr.bf16.mxu0 0
    %1017 = vmatpush1.bf16.msra.mxu0 0
    %1018 = vmatprep.subr.bf16.mxu0 0
    %1019 = vmatpush1.bf16.msra.mxu0 0
    %1020 = vmatprep.subr.bf16.mxu0 0
    %1021 = vmatpush1.bf16.msra.mxu0 0
    %1022 = vmatprep.subr.bf16.mxu0 0
    %1023 = vmatpush1.bf16.msra.mxu0 0
    %1024 = vmatprep.mubr.bf16.mxu0 0
    %1025 = vmatmul.mubr.bf16.gmra.mrb[0].mxu0 %v990
    %v1026 = vpop.f32.mrb[0].mxu0
    %v1027 = vadd.f32 %v975, %v1026
    %v1028 = vpop.f32.mrb[0].mxu0
    %v1029 = vpop.f32.mrb[0].mxu0
    %v1030 = vadd.f32 %v975, %v1029
    %v1031 = vpop.f32.mrb[0].mxu0
    %1032 = vdwg.mxu0
    %v1033 = vmax.f32 %v1027, 0.0
    %v1034 = vmax.f32 %v1030, 0.0
    %v1035 = vadd.f32 %v889, %v1033
    %v1036 = vadd.f32 %v890, %v1034
    %s1037 = scalar_lea.vmem [#allocation14], 32
    %v1038 = vld [vmem:[%s1037] sm:$0xf]
    %v1039 = vld [vmem:[%s1037 + $0x4] sm:$0xf]
    %v1040 = vld [vmem:[%s1037 + $0x8] sm:$0xf]
    %v1041 = vld [vmem:[%s1037 + $0xc] sm:$0xf]
    %v1042 = vpack.c.bf16 %v1036, %v1035
    %s1043 = scalar_lea.vmem [#allocation16], 2
    %v1044 = vld [vmem:[%s1043] sm:$0x1]
    %v1046 = vlaneseq
    %v1047 = vshrl.u32 %v1046, 7
    %v1048 = vsub.s32 0, %v1047
    %v1049 = vrot.slane %v1044, %v1048
    %v1055 = vunpack.c.l.b16 %v1038
    %v1056 = vunpack.c.l.b16 %v1039
    %v1057 = vunpack.c.l.b16 %v1040
    %v1058 = vunpack.c.l.b16 %v1041
    %v1059 = vpack.c.b16 %v1056, %v1055
    %v1060 = vpack.c.b16 %v1058, %v1057
    %v1064 = vsel %vm704, %v1042, 0
    %1066 = vmatprep.subr.bf16.mxu0 0
    %1067 = vmatpush1.bf16.msra.mxu0 %v1059
    %1068 = vmatprep.subr.bf16.mxu0 0
    %1069 = vmatpush1.bf16.msra.mxu0 %v1060
    %1070 = vmatprep.subr.bf16.mxu0 0
    %1071 = vmatpush1.bf16.msra.mxu0 0
    %1072 = vmatprep.subr.bf16.mxu0 0
    %1073 = vmatpush1.bf16.msra.mxu0 0
    %1074 = vmatprep.subr.bf16.mxu0 0
    %1075 = vmatpush1.bf16.msra.mxu0 0
    %1076 = vmatprep.subr.bf16.mxu0 0
    %1077 = vmatpush1.bf16.msra.mxu0 0
    %1078 = vmatprep.subr.bf16.mxu0 0
    %1079 = vmatpush1.bf16.msra.mxu0 0
    %1080 = vmatprep.subr.bf16.mxu0 0
    %1081 = vmatpush1.bf16.msra.mxu0 0
    %1082 = vmatprep.subr.bf16.mxu0 0
    %1083 = vmatpush1.bf16.msra.mxu0 0
    %1084 = vmatprep.subr.bf16.mxu0 0
    %1085 = vmatpush1.bf16.msra.mxu0 0
    %1086 = vmatprep.subr.bf16.mxu0 0
    %1087 = vmatpush1.bf16.msra.mxu0 0
    %1088 = vmatprep.subr.bf16.mxu0 0
    %1089 = vmatpush1.bf16.msra.mxu0 0
    %1090 = vmatprep.subr.bf16.mxu0 0
    %1091 = vmatpush1.bf16.msra.mxu0 0
    %1092 = vmatprep.subr.bf16.mxu0 0
    %1093 = vmatpush1.bf16.msra.mxu0 0
    %1094 = vmatprep.subr.bf16.mxu0 0
    %1095 = vmatpush1.bf16.msra.mxu0 0
    %1096 = vmatprep.subr.bf16.mxu0 0
    %1097 = vmatpush1.bf16.msra.mxu0 0
    %1098 = vmatprep.mubr.bf16.mxu0 0
    %1099 = vmatmul.mubr.bf16.gmra.mrb[0].mxu0 %v1064
    %v1100 = vpop.f32.mrb[0].mxu0
    %v1101 = vadd.f32 %v1049, %v1100
    %v1102 = vpop.f32.mrb[0].mxu0
    %v1103 = vpop.f32.mrb[0].mxu0
    %v1104 = vadd.f32 %v1049, %v1103
    %v1105 = vpop.f32.mrb[0].mxu0
    %1106 = vdwg.mxu0
    %v1107 = vmax.f32 %v1101, 0.0
    %v1108 = vmax.f32 %v1104, 0.0
    %s1109 = scalar_lea.vmem [#allocation17], 32
    %v1110 = vld [vmem:[%s1109] sm:$0xf]
    %v1111 = vld [vmem:[%s1109 + $0x4] sm:$0xf]
    %v1112 = vld [vmem:[%s1109 + $0x8] sm:$0xf]
    %v1113 = vld [vmem:[%s1109 + $0xc] sm:$0xf]
    %v1114 = vpack.c.bf16 %v1108, %v1107
    %s1115 = scalar_lea.vmem [#allocation19], 2
    %v1116 = vld [vmem:[%s1115] sm:$0x1]
    %v1118 = vlaneseq
    %v1119 = vshrl.u32 %v1118, 7
    %v1120 = vsub.s32 0, %v1119
    %v1121 = vrot.slane %v1116, %v1120
    %v1127 = vunpack.c.l.b16 %v1110
    %v1128 = vunpack.c.l.b16 %v1111
    %v1129 = vunpack.c.l.b16 %v1112
    %v1130 = vunpack.c.l.b16 %v1113
    %v1131 = vpack.c.b16 %v1128, %v1127
    %v1132 = vpack.c.b16 %v1130, %v1129
    %v1136 = vsel %vm704, %v1114, 0
    %1138 = vmatprep.subr.bf16.mxu0 0
    %1139 = vmatpush1.bf16.msra.mxu0 %v1131
    %1140 = vmatprep.subr.bf16.mxu0 0
    %1141 = vmatpush1.bf16.msra.mxu0 %v1132
    %1142 = vmatprep.subr.bf16.mxu0 0
    %1143 = vmatpush1.bf16.msra.mxu0 0
    %1144 = vmatprep.subr.bf16.mxu0 0
    %1145 = vmatpush1.bf16.msra.mxu0 0
    %1146 = vmatprep.subr.bf16.mxu0 0
    %1147 = vmatpush1.bf16.msra.mxu0 0
    %1148 = vmatprep.subr.bf16.mxu0 0
    %1149 = vmatpush1.bf16.msra.mxu0 0
    %1150 = vmatprep.subr.bf16.mxu0 0
    %1151 = vmatpush1.bf16.msra.mxu0 0
    %1152 = vmatprep.subr.bf16.mxu0 0
    %1153 = vmatpush1.bf16.msra.mxu0 0
    %1154 = vmatprep.subr.bf16.mxu0 0
    %1155 = vmatpush1.bf16.msra.mxu0 0
    %1156 = vmatprep.subr.bf16.mxu0 0
    %1157 = vmatpush1.bf16.msra.mxu0 0
    %1158 = vmatprep.subr.bf16.mxu0 0
    %1159 = vmatpush1.bf16.msra.mxu0 0
    %1160 = vmatprep.subr.bf16.mxu0 0
    %1161 = vmatpush1.bf16.msra.mxu0 0
    %1162 = vmatprep.subr.bf16.mxu0 0
    %1163 = vmatpush1.bf16.msra.mxu0 0
    %1164 = vmatprep.subr.bf16.mxu0 0
    %1165 = vmatpush1.bf16.msra.mxu0 0
    %1166 = vmatprep.subr.bf16.mxu0 0
    %1167 = vmatpush1.bf16.msra.mxu0 0
    %1168 = vmatprep.subr.bf16.mxu0 0
    %1169 = vmatpush1.bf16.msra.mxu0 0
    %1170 = vmatprep.mubr.bf16.mxu0 0
    %1171 = vmatmul.mubr.bf16.gmra.mrb[0].mxu0 %v1136
    %v1172 = vpop.f32.mrb[0].mxu0
    %v1173 = vadd.f32 %v1121, %v1172
    %v1174 = vpop.f32.mrb[0].mxu0
    %v1175 = vpop.f32.mrb[0].mxu0
    %v1176 = vadd.f32 %v1121, %v1175
    %v1177 = vpop.f32.mrb[0].mxu0
    %1178 = vdwg.mxu0
    %v1179 = vmax.f32 %v1173, 0.0
    %v1180 = vmax.f32 %v1176, 0.0
    %v1181 = vadd.f32 %v1035, %v1179
    %v1182 = vadd.f32 %v1036, %v1180
    %v1183 = vld [vmem:[#allocation5] sm:$0xff]
    %v1184 = vld [vmem:[#allocation5 + $0x8] sm:$0x3]
    %v1185 = vld [vmem:[#allocation20] sm:$0xf]
    %v1186 = vld [vmem:[#allocation20 + $0x4] sm:$0xf]
    %v1187 = vld [vmem:[#allocation20 + $0x8] sm:$0xf]
    %v1188 = vld [vmem:[#allocation20 + $0xc] sm:$0xf]
    %v1189 = vpack.c.bf16 %v1184, %v1183
    %v1190 = vld [vmem:[#allocation22] sm:$0x1]
    %v1192 = vlaneseq
    %v1193 = vshrl.u32 %v1192, 7
    %v1194 = vsub.s32 0, %v1193
    %v1195 = vrot.slane %v1190, %v1194
    %v1201 = vunpack.c.l.b16 %v1185
    %v1202 = vunpack.c.l.b16 %v1186
    %v1203 = vunpack.c.l.b16 %v1187
    %v1204 = vunpack.c.l.b16 %v1188
    %v1205 = vpack.c.b16 %v1202, %v1201
    %v1206 = vpack.c.b16 %v1204, %v1203
    %v1210 = vsel %vm704, %v1189, 0
    %1212 = vmatprep.subr.bf16.mxu0 0
    %1213 = vmatpush1.bf16.msra.mxu0 %v1205
    %1214 = vmatprep.subr.bf16.mxu0 0
    %1215 = vmatpush1.bf16.msra.mxu0 %v1206
    %1216 = vmatprep.subr.bf16.mxu0 0
    %1217 = vmatpush1.bf16.msra.mxu0 0
    %1218 = vmatprep.subr.bf16.mxu0 0
    %1219 = vmatpush1.bf16.msra.mxu0 0
    %1220 = vmatprep.subr.bf16.mxu0 0
    %1221 = vmatpush1.bf16.msra.mxu0 0
    %1222 = vmatprep.subr.bf16.mxu0 0
    %1223 = vmatpush1.bf16.msra.mxu0 0
    %1224 = vmatprep.subr.bf16.mxu0 0
    %1225 = vmatpush1.bf16.msra.mxu0 0
    %1226 = vmatprep.subr.bf16.mxu0 0
    %1227 = vmatpush1.bf16.msra.mxu0 0
    %1228 = vmatprep.subr.bf16.mxu0 0
    %1229 = vmatpush1.bf16.msra.mxu0 0
    %1230 = vmatprep.subr.bf16.mxu0 0
    %1231 = vmatpush1.bf16.msra.mxu0 0
    %1232 = vmatprep.subr.bf16.mxu0 0
    %1233 = vmatpush1.bf16.msra.mxu0 0
    %1234 = vmatprep.subr.bf16.mxu0 0
    %1235 = vmatpush1.bf16.msra.mxu0 0
    %1236 = vmatprep.subr.bf16.mxu0 0
    %1237 = vmatpush1.bf16.msra.mxu0 0
    %1238 = vmatprep.subr.bf16.mxu0 0
    %1239 = vmatpush1.bf16.msra.mxu0 0
    %1240 = vmatprep.subr.bf16.mxu0 0
    %1241 = vmatpush1.bf16.msra.mxu0 0
    %1242 = vmatprep.subr.bf16.mxu0 0
    %1243 = vmatpush1.bf16.msra.mxu0 0
    %1244 = vmatprep.mubr.bf16.mxu0 0
    %1245 = vmatmul.mubr.bf16.gmra.mrb[0].mxu0 %v1210
    %v1246 = vpop.f32.mrb[0].mxu0
    %v1247 = vadd.f32 %v1195, %v1246
    %v1248 = vpop.f32.mrb[0].mxu0
    %v1249 = vpop.f32.mrb[0].mxu0
    %v1250 = vadd.f32 %v1195, %v1249
    %v1251 = vpop.f32.mrb[0].mxu0
    %1252 = vdwg.mxu0
    %v1253 = vld [vmem:[%s27] sm:$0xf]
    %v1254 = vld [vmem:[%s27 + $0x4] sm:$0xf]
    %v1255 = vld [vmem:[%s27 + $0x8] sm:$0xf]
    %v1256 = vld [vmem:[%s27 + $0xc] sm:$0xf]
    %v1257 = vpack.c.bf16 %v1250, %v1247
    %v1258 = vld [vmem:[#allocation23] sm:$0x1]
    %v1260 = vlaneseq
    %v1261 = vshrl.u32 %v1260, 7
    %v1262 = vsub.s32 0, %v1261
    %v1263 = vrot.slane %v1258, %v1262
    %v1269 = vunpack.c.l.b16 %v1253
    %v1270 = vunpack.c.l.b16 %v1254
    %v1271 = vunpack.c.l.b16 %v1255
    %v1272 = vunpack.c.l.b16 %v1256
    %v1273 = vpack.c.b16 %v1270, %v1269
    %v1274 = vpack.c.b16 %v1272, %v1271
    %v1278 = vsel %vm704, %v1257, 0
    %1280 = vmatprep.subr.bf16.mxu0 0
    %1281 = vmatpush1.bf16.msra.mxu0 %v1273
    %1282 = vmatprep.subr.bf16.mxu0 0
    %1283 = vmatpush1.bf16.msra.mxu0 %v1274
    %1284 = vmatprep.subr.bf16.mxu0 0
    %1285 = vmatpush1.bf16.msra.mxu0 0
    %1286 = vmatprep.subr.bf16.mxu0 0
    %1287 = vmatpush1.bf16.msra.mxu0 0
    %1288 = vmatprep.subr.bf16.mxu0 0
    %1289 = vmatpush1.bf16.msra.mxu0 0
    %1290 = vmatprep.subr.bf16.mxu0 0
    %1291 = vmatpush1.bf16.msra.mxu0 0
    %1292 = vmatprep.subr.bf16.mxu0 0
    %1293 = vmatpush1.bf16.msra.mxu0 0
    %1294 = vmatprep.subr.bf16.mxu0 0
    %1295 = vmatpush1.bf16.msra.mxu0 0
    %1296 = vmatprep.subr.bf16.mxu0 0
    %1297 = vmatpush1.bf16.msra.mxu0 0
    %1298 = vmatprep.subr.bf16.mxu0 0
    %1299 = vmatpush1.bf16.msra.mxu0 0
    %1300 = vmatprep.subr.bf16.mxu0 0
    %1301 = vmatpush1.bf16.msra.mxu0 0
    %1302 = vmatprep.subr.bf16.mxu0 0
    %1303 = vmatpush1.bf16.msra.mxu0 0
    %1304 = vmatprep.subr.bf16.mxu0 0
    %1305 = vmatpush1.bf16.msra.mxu0 0
    %1306 = vmatprep.subr.bf16.mxu0 0
    %1307 = vmatpush1.bf16.msra.mxu0 0
    %1308 = vmatprep.subr.bf16.mxu0 0
    %1309 = vmatpush1.bf16.msra.mxu0 0
    %1310 = vmatprep.subr.bf16.mxu0 0
    %1311 = vmatpush1.bf16.msra.mxu0 0
    %1312 = vmatprep.mubr.bf16.mxu0 0
    %1313 = vmatmul.mubr.bf16.gmra.mrb[0].mxu0 %v1278
    %v1314 = vpop.f32.mrb[0].mxu0
    %v1315 = vadd.f32 %v1263, %v1314
    %v1316 = vpop.f32.mrb[0].mxu0
    %v1317 = vpop.f32.mrb[0].mxu0
    %v1318 = vadd.f32 %v1263, %v1317
    %v1319 = vpop.f32.mrb[0].mxu0
    %1320 = vdwg.mxu0
    %v1321 = vmax.f32 %v1315, 0.0
    %v1322 = vmax.f32 %v1318, 0.0
    %v1323 = vld [vmem:[#allocation25] sm:$0xf]
    %v1324 = vld [vmem:[#allocation25 + $0x4] sm:$0xf]
    %v1325 = vld [vmem:[#allocation25 + $0x8] sm:$0xf]
    %v1326 = vld [vmem:[#allocation25 + $0xc] sm:$0xf]
    %v1327 = vpack.c.bf16 %v1322, %v1321
    %v1328 = vld [vmem:[#allocation26] sm:$0x1]
    %v1330 = vlaneseq
    %v1331 = vshrl.u32 %v1330, 7
    %v1332 = vsub.s32 0, %v1331
    %v1333 = vrot.slane %v1328, %v1332
    %v1339 = vunpack.c.l.b16 %v1323
    %v1340 = vunpack.c.l.b16 %v1324
    %v1341 = vunpack.c.l.b16 %v1325
    %v1342 = vunpack.c.l.b16 %v1326
    %v1343 = vpack.c.b16 %v1340, %v1339
    %v1344 = vpack.c.b16 %v1342, %v1341
    %v1348 = vsel %vm704, %v1327, 0
    %1350 = vmatprep.subr.bf16.mxu0 0
    %1351 = vmatpush1.bf16.msra.mxu0 %v1343
    %1352 = vmatprep.subr.bf16.mxu0 0
    %1353 = vmatpush1.bf16.msra.mxu0 %v1344
    %1354 = vmatprep.subr.bf16.mxu0 0
    %1355 = vmatpush1.bf16.msra.mxu0 0
    %1356 = vmatprep.subr.bf16.mxu0 0
    %1357 = vmatpush1.bf16.msra.mxu0 0
    %1358 = vmatprep.subr.bf16.mxu0 0
    %1359 = vmatpush1.bf16.msra.mxu0 0
    %1360 = vmatprep.subr.bf16.mxu0 0
    %1361 = vmatpush1.bf16.msra.mxu0 0
    %1362 = vmatprep.subr.bf16.mxu0 0
    %1363 = vmatpush1.bf16.msra.mxu0 0
    %1364 = vmatprep.subr.bf16.mxu0 0
    %1365 = vmatpush1.bf16.msra.mxu0 0
    %1366 = vmatprep.subr.bf16.mxu0 0
    %1367 = vmatpush1.bf16.msra.mxu0 0
    %1368 = vmatprep.subr.bf16.mxu0 0
    %1369 = vmatpush1.bf16.msra.mxu0 0
    %1370 = vmatprep.subr.bf16.mxu0 0
    %1371 = vmatpush1.bf16.msra.mxu0 0
    %1372 = vmatprep.subr.bf16.mxu0 0
    %1373 = vmatpush1.bf16.msra.mxu0 0
    %1374 = vmatprep.subr.bf16.mxu0 0
    %1375 = vmatpush1.bf16.msra.mxu0 0
    %1376 = vmatprep.subr.bf16.mxu0 0
    %1377 = vmatpush1.bf16.msra.mxu0 0
    %1378 = vmatprep.subr.bf16.mxu0 0
    %1379 = vmatpush1.bf16.msra.mxu0 0
    %1380 = vmatprep.subr.bf16.mxu0 0
    %1381 = vmatpush1.bf16.msra.mxu0 0
    %1382 = vmatprep.mubr.bf16.mxu0 0
    %1383 = vmatmul.mubr.bf16.gmra.mrb[0].mxu0 %v1348
    %v1384 = vpop.f32.mrb[0].mxu0
    %v1385 = vadd.f32 %v1333, %v1384
    %v1386 = vpop.f32.mrb[0].mxu0
    %v1387 = vpop.f32.mrb[0].mxu0
    %v1388 = vadd.f32 %v1333, %v1387
    %v1389 = vpop.f32.mrb[0].mxu0
    %1390 = vdwg.mxu0
    %v1391 = vmax.f32 %v1385, 0.0
    %v1392 = vmax.f32 %v1388, 0.0
    %v1393 = vadd.f32 %v1247, %v1391
    %v1394 = vadd.f32 %v1250, %v1392
    %s1395 = scalar_lea.vmem %s27, 16
    %v1396 = vld [vmem:[%s1395] sm:$0xf]
    %v1397 = vld [vmem:[%s1395 + $0x4] sm:$0xf]
    %v1398 = vld [vmem:[%s1395 + $0x8] sm:$0xf]
    %v1399 = vld [vmem:[%s1395 + $0xc] sm:$0xf]
    %v1400 = vpack.c.bf16 %v1394, %v1393
    %s1401 = scalar_lea.vmem [#allocation23], 1
    %v1402 = vld [vmem:[%s1401] sm:$0x1]
    %v1404 = vlaneseq
    %v1405 = vshrl.u32 %v1404, 7
    %v1406 = vsub.s32 0, %v1405
    %v1407 = vrot.slane %v1402, %v1406
    %v1413 = vunpack.c.l.b16 %v1396
    %v1414 = vunpack.c.l.b16 %v1397
    %v1415 = vunpack.c.l.b16 %v1398
    %v1416 = vunpack.c.l.b16 %v1399
    %v1417 = vpack.c.b16 %v1414, %v1413
    %v1418 = vpack.c.b16 %v1416, %v1415
    %v1422 = vsel %vm704, %v1400, 0
    %1424 = vmatprep.subr.bf16.mxu0 0
    %1425 = vmatpush1.bf16.msra.mxu0 %v1417
    %1426 = vmatprep.subr.bf16.mxu0 0
    %1427 = vmatpush1.bf16.msra.mxu0 %v1418
    %1428 = vmatprep.subr.bf16.mxu0 0
    %1429 = vmatpush1.bf16.msra.mxu0 0
    %1430 = vmatprep.subr.bf16.mxu0 0
    %1431 = vmatpush1.bf16.msra.mxu0 0
    %1432 = vmatprep.subr.bf16.mxu0 0
    %1433 = vmatpush1.bf16.msra.mxu0 0
    %1434 = vmatprep.subr.bf16.mxu0 0
    %1435 = vmatpush1.bf16.msra.mxu0 0
    %1436 = vmatprep.subr.bf16.mxu0 0
    %1437 = vmatpush1.bf16.msra.mxu0 0
    %1438 = vmatprep.subr.bf16.mxu0 0
    %1439 = vmatpush1.bf16.msra.mxu0 0
    %1440 = vmatprep.subr.bf16.mxu0 0
    %1441 = vmatpush1.bf16.msra.mxu0 0
    %1442 = vmatprep.subr.bf16.mxu0 0
    %1443 = vmatpush1.bf16.msra.mxu0 0
    %1444 = vmatprep.subr.bf16.mxu0 0
    %1445 = vmatpush1.bf16.msra.mxu0 0
    %1446 = vmatprep.subr.bf16.mxu0 0
    %1447 = vmatpush1.bf16.msra.mxu0 0
    %1448 = vmatprep.subr.bf16.mxu0 0
    %1449 = vmatpush1.bf16.msra.mxu0 0
    %1450 = vmatprep.subr.bf16.mxu0 0
    %1451 = vmatpush1.bf16.msra.mxu0 0
    %1452 = vmatprep.subr.bf16.mxu0 0
    %1453 = vmatpush1.bf16.msra.mxu0 0
    %1454 = vmatprep.subr.bf16.mxu0 0
    %1455 = vmatpush1.bf16.msra.mxu0 0
    %1456 = vmatprep.mubr.bf16.mxu0 0
    %1457 = vmatmul.mubr.bf16.gmra.mrb[0].mxu0 %v1422
    %v1458 = vpop.f32.mrb[0].mxu0
    %v1459 = vadd.f32 %v1407, %v1458
    %v1460 = vpop.f32.mrb[0].mxu0
    %v1461 = vpop.f32.mrb[0].mxu0
    %v1462 = vadd.f32 %v1407, %v1461
    %v1463 = vpop.f32.mrb[0].mxu0
    %1464 = vdwg.mxu0
    %v1465 = vmax.f32 %v1459, 0.0
    %v1466 = vmax.f32 %v1462, 0.0
    %s1467 = scalar_lea.vmem [#allocation25], 16
    %v1468 = vld [vmem:[%s1467] sm:$0xf]
    %v1469 = vld [vmem:[%s1467 + $0x4] sm:$0xf]
    %v1470 = vld [vmem:[%s1467 + $0x8] sm:$0xf]
    %v1471 = vld [vmem:[%s1467 + $0xc] sm:$0xf]
    %v1472 = vpack.c.bf16 %v1466, %v1465
    %s1473 = scalar_lea.vmem [#allocation26], 1
    %v1474 = vld [vmem:[%s1473] sm:$0x1]
    %v1476 = vlaneseq
    %v1477 = vshrl.u32 %v1476, 7
    %v1478 = vsub.s32 0, %v1477
    %v1479 = vrot.slane %v1474, %v1478
    %v1485 = vunpack.c.l.b16 %v1468
    %v1486 = vunpack.c.l.b16 %v1469
    %v1487 = vunpack.c.l.b16 %v1470
    %v1488 = vunpack.c.l.b16 %v1471
    %v1489 = vpack.c.b16 %v1486, %v1485
    %v1490 = vpack.c.b16 %v1488, %v1487
    %v1494 = vsel %vm704, %v1472, 0
    %1496 = vmatprep.subr.bf16.mxu0 0
    %1497 = vmatpush1.bf16.msra.mxu0 %v1489
    %1498 = vmatprep.subr.bf16.mxu0 0
    %1499 = vmatpush1.bf16.msra.mxu0 %v1490
    %1500 = vmatprep.subr.bf16.mxu0 0
    %1501 = vmatpush1.bf16.msra.mxu0 0
    %1502 = vmatprep.subr.bf16.mxu0 0
    %1503 = vmatpush1.bf16.msra.mxu0 0
    %1504 = vmatprep.subr.bf16.mxu0 0
    %1505 = vmatpush1.bf16.msra.mxu0 0
    %1506 = vmatprep.subr.bf16.mxu0 0
    %1507 = vmatpush1.bf16.msra.mxu0 0
    %1508 = vmatprep.subr.bf16.mxu0 0
    %1509 = vmatpush1.bf16.msra.mxu0 0
    %1510 = vmatprep.subr.bf16.mxu0 0
    %1511 = vmatpush1.bf16.msra.mxu0 0
    %1512 = vmatprep.subr.bf16.mxu0 0
    %1513 = vmatpush1.bf16.msra.mxu0 0
    %1514 = vmatprep.subr.bf16.mxu0 0
    %1515 = vmatpush1.bf16.msra.mxu0 0
    %1516 = vmatprep.subr.bf16.mxu0 0
    %1517 = vmatpush1.bf16.msra.mxu0 0
    %1518 = vmatprep.subr.bf16.mxu0 0
    %1519 = vmatpush1.bf16.msra.mxu0 0
    %1520 = vmatprep.subr.bf16.mxu0 0
    %1521 = vmatpush1.bf16.msra.mxu0 0
    %1522 = vmatprep.subr.bf16.mxu0 0
    %1523 = vmatpush1.bf16.msra.mxu0 0
    %1524 = vmatprep.subr.bf16.mxu0 0
    %1525 = vmatpush1.bf16.msra.mxu0 0
    %1526 = vmatprep.subr.bf16.mxu0 0
    %1527 = vmatpush1.bf16.msra.mxu0 0
    %1528 = vmatprep.mubr.bf16.mxu0 0
    %1529 = vmatmul.mubr.bf16.gmra.mrb[0].mxu0 %v1494
    %v1530 = vpop.f32.mrb[0].mxu0
    %v1531 = vadd.f32 %v1479, %v1530
    %v1532 = vpop.f32.mrb[0].mxu0
    %v1533 = vpop.f32.mrb[0].mxu0
    %v1534 = vadd.f32 %v1479, %v1533
    %v1535 = vpop.f32.mrb[0].mxu0
    %1536 = vdwg.mxu0
    %v1537 = vmax.f32 %v1531, 0.0
    %v1538 = vmax.f32 %v1534, 0.0
    %v1539 = vadd.f32 %v1393, %v1537
    %v1540 = vadd.f32 %v1394, %v1538
    %s1541 = scalar_lea.vmem %s27, 32
    %v1542 = vld [vmem:[%s1541] sm:$0xf]
    %v1543 = vld [vmem:[%s1541 + $0x4] sm:$0xf]
    %v1544 = vld [vmem:[%s1541 + $0x8] sm:$0xf]
    %v1545 = vld [vmem:[%s1541 + $0xc] sm:$0xf]
    %v1546 = vpack.c.bf16 %v1540, %v1539
    %s1547 = scalar_lea.vmem [#allocation23], 2
    %v1548 = vld [vmem:[%s1547] sm:$0x1]
    %v1550 = vlaneseq
    %v1551 = vshrl.u32 %v1550, 7
    %v1552 = vsub.s32 0, %v1551
    %v1553 = vrot.slane %v1548, %v1552
    %v1559 = vunpack.c.l.b16 %v1542
    %v1560 = vunpack.c.l.b16 %v1543
    %v1561 = vunpack.c.l.b16 %v1544
    %v1562 = vunpack.c.l.b16 %v1545
    %v1563 = vpack.c.b16 %v1560, %v1559
    %v1564 = vpack.c.b16 %v1562, %v1561
    %v1568 = vsel %vm704, %v1546, 0
    %1570 = vmatprep.subr.bf16.mxu0 0
    %1571 = vmatpush1.bf16.msra.mxu0 %v1563
    %1572 = vmatprep.subr.bf16.mxu0 0
    %1573 = vmatpush1.bf16.msra.mxu0 %v1564
    %1574 = vmatprep.subr.bf16.mxu0 0
    %1575 = vmatpush1.bf16.msra.mxu0 0
    %1576 = vmatprep.subr.bf16.mxu0 0
    %1577 = vmatpush1.bf16.msra.mxu0 0
    %1578 = vmatprep.subr.bf16.mxu0 0
    %1579 = vmatpush1.bf16.msra.mxu0 0
    %1580 = vmatprep.subr.bf16.mxu0 0
    %1581 = vmatpush1.bf16.msra.mxu0 0
    %1582 = vmatprep.subr.bf16.mxu0 0
    %1583 = vmatpush1.bf16.msra.mxu0 0
    %1584 = vmatprep.subr.bf16.mxu0 0
    %1585 = vmatpush1.bf16.msra.mxu0 0
    %1586 = vmatprep.subr.bf16.mxu0 0
    %1587 = vmatpush1.bf16.msra.mxu0 0
    %1588 = vmatprep.subr.bf16.mxu0 0
    %1589 = vmatpush1.bf16.msra.mxu0 0
    %1590 = vmatprep.subr.bf16.mxu0 0
    %1591 = vmatpush1.bf16.msra.mxu0 0
    %1592 = vmatprep.subr.bf16.mxu0 0
    %1593 = vmatpush1.bf16.msra.mxu0 0
    %1594 = vmatprep.subr.bf16.mxu0 0
    %1595 = vmatpush1.bf16.msra.mxu0 0
    %1596 = vmatprep.subr.bf16.mxu0 0
    %1597 = vmatpush1.bf16.msra.mxu0 0
    %1598 = vmatprep.subr.bf16.mxu0 0
    %1599 = vmatpush1.bf16.msra.mxu0 0
    %1600 = vmatprep.subr.bf16.mxu0 0
    %1601 = vmatpush1.bf16.msra.mxu0 0
    %1602 = vmatprep.mubr.bf16.mxu0 0
    %1603 = vmatmul.mubr.bf16.gmra.mrb[0].mxu0 %v1568
    %v1604 = vpop.f32.mrb[0].mxu0
    %v1605 = vadd.f32 %v1553, %v1604
    %v1606 = vpop.f32.mrb[0].mxu0
    %v1607 = vpop.f32.mrb[0].mxu0
    %v1608 = vadd.f32 %v1553, %v1607
    %v1609 = vpop.f32.mrb[0].mxu0
    %1610 = vdwg.mxu0
    %v1611 = vmax.f32 %v1605, 0.0
    %v1612 = vmax.f32 %v1608, 0.0
    %s1613 = scalar_lea.vmem [#allocation25], 32
    %v1614 = vld [vmem:[%s1613] sm:$0xf]
    %v1615 = vld [vmem:[%s1613 + $0x4] sm:$0xf]
    %v1616 = vld [vmem:[%s1613 + $0x8] sm:$0xf]
    %v1617 = vld [vmem:[%s1613 + $0xc] sm:$0xf]
    %v1618 = vpack.c.bf16 %v1612, %v1611
    %s1619 = scalar_lea.vmem [#allocation26], 2
    %v1620 = vld [vmem:[%s1619] sm:$0x1]
    %v1622 = vlaneseq
    %v1623 = vshrl.u32 %v1622, 7
    %v1624 = vsub.s32 0, %v1623
    %v1625 = vrot.slane %v1620, %v1624
    %v1631 = vunpack.c.l.b16 %v1614
    %v1632 = vunpack.c.l.b16 %v1615
    %v1633 = vunpack.c.l.b16 %v1616
    %v1634 = vunpack.c.l.b16 %v1617
    %v1635 = vpack.c.b16 %v1632, %v1631
    %v1636 = vpack.c.b16 %v1634, %v1633
    %v1640 = vsel %vm704, %v1618, 0
    %1642 = vmatprep.subr.bf16.mxu0 0
    %1643 = vmatpush1.bf16.msra.mxu0 %v1635
    %1644 = vmatprep.subr.bf16.mxu0 0
    %1645 = vmatpush1.bf16.msra.mxu0 %v1636
    %1646 = vmatprep.subr.bf16.mxu0 0
    %1647 = vmatpush1.bf16.msra.mxu0 0
    %1648 = vmatprep.subr.bf16.mxu0 0
    %1649 = vmatpush1.bf16.msra.mxu0 0
    %1650 = vmatprep.subr.bf16.mxu0 0
    %1651 = vmatpush1.bf16.msra.mxu0 0
    %1652 = vmatprep.subr.bf16.mxu0 0
    %1653 = vmatpush1.bf16.msra.mxu0 0
    %1654 = vmatprep.subr.bf16.mxu0 0
    %1655 = vmatpush1.bf16.msra.mxu0 0
    %1656 = vmatprep.subr.bf16.mxu0 0
    %1657 = vmatpush1.bf16.msra.mxu0 0
    %1658 = vmatprep.subr.bf16.mxu0 0
    %1659 = vmatpush1.bf16.msra.mxu0 0
    %1660 = vmatprep.subr.bf16.mxu0 0
    %1661 = vmatpush1.bf16.msra.mxu0 0
    %1662 = vmatprep.subr.bf16.mxu0 0
    %1663 = vmatpush1.bf16.msra.mxu0 0
    %1664 = vmatprep.subr.bf16.mxu0 0
    %1665 = vmatpush1.bf16.msra.mxu0 0
    %1666 = vmatprep.subr.bf16.mxu0 0
    %1667 = vmatpush1.bf16.msra.mxu0 0
    %1668 = vmatprep.subr.bf16.mxu0 0
    %1669 = vmatpush1.bf16.msra.mxu0 0
    %1670 = vmatprep.subr.bf16.mxu0 0
    %1671 = vmatpush1.bf16.msra.mxu0 0
    %1672 = vmatprep.subr.bf16.mxu0 0
    %1673 = vmatpush1.bf16.msra.mxu0 0
    %1674 = vmatprep.mubr.bf16.mxu0 0
    %1675 = vmatmul.mubr.bf16.gmra.mrb[0].mxu0 %v1640
    %v1676 = vpop.f32.mrb[0].mxu0
    %v1677 = vadd.f32 %v1625, %v1676
    %v1678 = vpop.f32.mrb[0].mxu0
    %v1679 = vpop.f32.mrb[0].mxu0
    %v1680 = vadd.f32 %v1625, %v1679
    %v1681 = vpop.f32.mrb[0].mxu0
    %1682 = vdwg.mxu0
    %v1683 = vmax.f32 %v1677, 0.0
    %v1684 = vmax.f32 %v1680, 0.0
    %v1685 = vadd.f32 %v1539, %v1683
    %v1686 = vadd.f32 %v1540, %v1684
    %vm1689 = vcmask 1041408
    %v1690 = vrot.slane %v1181, 6
    %v1691 = vrot.slane %v1182, 6
    %v1692 = vsel %vm1689, %v1690, %v1691
    %v1695 = vsel %vm1689, %v1182, %v1690
    %v1696 = vld [vmem:[#allocation7] sm:$0xff]
    %v1697 = vld [vmem:[#allocation7 + $0x8] sm:$0xff]
    %v1698 = vld [vmem:[#allocation7 + $0x10] sm:$0xf]
    %v1699 = vadd.f32 %v1181, %v1696
    %v1700 = vadd.f32 %v1695, %v1697
    %v1701 = vadd.f32 %v1692, %v1698
    %v1704 = vrot.slane %v1685, 6
    %v1705 = vrot.slane %v1686, 6
    %v1706 = vsel %vm1689, %v1704, %v1705
    %v1709 = vsel %vm1689, %v1686, %v1704
    %v1710 = vld [vmem:[#allocation8] sm:$0xff]
    %v1711 = vld [vmem:[#allocation8 + $0x8] sm:$0xff]
    %v1712 = vld [vmem:[#allocation8 + $0x10] sm:$0xf]
    %v1713 = vadd.f32 %v1685, %v1710
    %v1714 = vadd.f32 %v1709, %v1711
    %v1715 = vadd.f32 %v1706, %v1712
    %vm1719 = vcmask 1043456
    %v1720 = vrot.slane %v1713, 4
    %v1721 = vrot.slane %v1714, 4
    %v1722 = vsel %vm1719, %v1720, %v1721
    %v1723 = vrot.slane %v1715, 4
    %v1724 = vsel %vm1719, %v1721, %v1723
    %v1728 = vsel %vm1719, %v1701, %v1720
    %v1729 = vld [vmem:[#allocation10] sm:$0x1]
    %v1731 = vlaneseq
    %v1732 = vshrl.u32 %v1731, 7
    %v1733 = vsub.s32 0, %v1732
    %v1734 = vrot.slane %v1729, %v1733
    %v1736 = vmul.f32 %v1699, %v1734
    %v1737 = vmul.f32 %v1700, %v1734
    %v1738 = vmul.f32 %v1701, %v1734
    %v1739 = vsel %vm704, %v1736, 0.0
    %1740 = vadd.xlane.f32.xlu0 %v1739
    %v1741 = vpop.xlane.xlu0 %1740
    %v1742 = vsel %vm704, %v1737, 0.0
    %1743 = vadd.xlane.f32.xlu0 %v1742
    %v1744 = vpop.xlane.xlu0 %1743
    %vm1745 = vcmask 257024
    %v1746 = vsel %vm1745, %v1738, 0.0
    %1747 = vadd.xlane.f32.xlu0 %v1746
    %v1748 = vpop.xlane.xlu0 %1747
    %vm1749 = vcmask 7168
    %1750 = vst.msk [vmem:[%s93] sm:$0xff] %vm1749, %v1741
    %1751 = vst.msk [vmem:[%s93 + $0x8] sm:$0xff] %vm1749, %v1744
    %vm1752 = vcmask 3072
    %1753 = vst.msk [vmem:[%s93 + $0x10] sm:$0xf] %vm1752, %v1748
    %v1754 = vld [vmem:[#allocation28] sm:$0xf]
    %v1755 = vld [vmem:[#allocation28 + $0x4] sm:$0xf]
    %v1756 = vld [vmem:[#allocation28 + $0x8] sm:$0xf]
    %v1757 = vld [vmem:[#allocation28 + $0xc] sm:$0xf]
    %v1758 = vpack.c.bf16 %v1700, %v1699
    %v1759 = vpack.c.bf16 %v1701, %v1701
    %v1760 = vld [vmem:[#allocation29] sm:$0x1]
    %v1762 = vlaneseq
    %v1763 = vshrl.u32 %v1762, 7
    %v1764 = vsub.s32 0, %v1763
    %v1765 = vrot.slane %v1760, %v1764
    %v1771 = vunpack.c.l.b16 %v1754
    %v1772 = vunpack.c.l.b16 %v1755
    %v1773 = vunpack.c.l.b16 %v1756
    %v1774 = vunpack.c.l.b16 %v1757
    %v1775 = vpack.c.b16 %v1772, %v1771
    %v1776 = vpack.c.b16 %v1774, %v1773
    %v1780 = vsel %vm704, %v1758, 0
    %v1783 = vsel %vm704, %v1759, 0
    %1785 = vmatprep.subr.bf16.mxu0 0
    %1786 = vmatpush1.bf16.msra.mxu0 %v1775
    %1787 = vmatprep.subr.bf16.mxu0 0
    %1788 = vmatpush1.bf16.msra.mxu0 %v1776
    %1789 = vmatprep.subr.bf16.mxu0 0
    %1790 = vmatpush1.bf16.msra.mxu0 0
    %1791 = vmatprep.subr.bf16.mxu0 0
    %1792 = vmatpush1.bf16.msra.mxu0 0
    %1793 = vmatprep.subr.bf16.mxu0 0
    %1794 = vmatpush1.bf16.msra.mxu0 0
    %1795 = vmatprep.subr.bf16.mxu0 0
    %1796 = vmatpush1.bf16.msra.mxu0 0
    %1797 = vmatprep.subr.bf16.mxu0 0
    %1798 = vmatpush1.bf16.msra.mxu0 0
    %1799 = vmatprep.subr.bf16.mxu0 0
    %1800 = vmatpush1.bf16.msra.mxu0 0
    %1801 = vmatprep.subr.bf16.mxu0 0
    %1802 = vmatpush1.bf16.msra.mxu0 0
    %1803 = vmatprep.subr.bf16.mxu0 0
    %1804 = vmatpush1.bf16.msra.mxu0 0
    %1805 = vmatprep.subr.bf16.mxu0 0
    %1806 = vmatpush1.bf16.msra.mxu0 0
    %1807 = vmatprep.subr.bf16.mxu0 0
    %1808 = vmatpush1.bf16.msra.mxu0 0
    %1809 = vmatprep.subr.bf16.mxu0 0
    %1810 = vmatpush1.bf16.msra.mxu0 0
    %1811 = vmatprep.subr.bf16.mxu0 0
    %1812 = vmatpush1.bf16.msra.mxu0 0
    %1813 = vmatprep.subr.bf16.mxu0 0
    %1814 = vmatpush1.bf16.msra.mxu0 0
    %1815 = vmatprep.subr.bf16.mxu0 0
    %1816 = vmatpush1.bf16.msra.mxu0 0
    %1817 = vmatprep.mubr.bf16.mxu0 0
    %1818 = vmatmul.mubr.bf16.gmra.mrb[0].mxu0 %v1780
    %v1819 = vpop.f32.mrb[0].mxu0
    %v1820 = vadd.f32 %v1765, %v1819
    %v1821 = vpop.f32.mrb[0].mxu0
    %v1822 = vpop.f32.mrb[0].mxu0
    %v1823 = vadd.f32 %v1765, %v1822
    %v1824 = vpop.f32.mrb[0].mxu0
    %1825 = vmatprep.mubr.bf16.mxu0 0
    %1826 = vmatmul.mubr.bf16.gmra.mrb[0].mxu0 %v1783
    %v1827 = vpop.f32.mrb[0].mxu0
    %v1828 = vadd.f32 %v1765, %v1827
    %v1829 = vpop.f32.mrb[0].mxu0
    %v1830 = vpop.f32.mrb[0].mxu0
    %v1831 = vpop.f32.mrb[0].mxu0
    %1832 = vdwg.mxu0
    %v1833 = vld [vmem:[#allocation31] sm:$0xf]
    %v1834 = vld [vmem:[#allocation31 + $0x4] sm:$0xf]
    %v1835 = vld [vmem:[#allocation31 + $0x8] sm:$0xf]
    %v1836 = vld [vmem:[#allocation31 + $0xc] sm:$0xf]
    %v1837 = vpack.c.bf16 %v1823, %v1820
    %v1838 = vpack.c.bf16 %v1828, %v1828
    %v1839 = vld [vmem:[#allocation32] sm:$0x1]
    %v1841 = vlaneseq
    %v1842 = vshrl.u32 %v1841, 7
    %v1843 = vsub.s32 0, %v1842
    %v1844 = vrot.slane %v1839, %v1843
    %v1850 = vunpack.c.l.b16 %v1833
    %v1851 = vunpack.c.l.b16 %v1834
    %v1852 = vunpack.c.l.b16 %v1835
    %v1853 = vunpack.c.l.b16 %v1836
    %v1854 = vpack.c.b16 %v1851, %v1850
    %v1855 = vpack.c.b16 %v1853, %v1852
    %v1859 = vsel %vm704, %v1837, 0
    %v1862 = vsel %vm704, %v1838, 0
    %1864 = vmatprep.subr.bf16.mxu0 0
    %1865 = vmatpush1.bf16.msra.mxu0 %v1854
    %1866 = vmatprep.subr.bf16.mxu0 0
    %1867 = vmatpush1.bf16.msra.mxu0 %v1855
    %1868 = vmatprep.subr.bf16.mxu0 0
    %1869 = vmatpush1.bf16.msra.mxu0 0
    %1870 = vmatprep.subr.bf16.mxu0 0
    %1871 = vmatpush1.bf16.msra.mxu0 0
    %1872 = vmatprep.subr.bf16.mxu0 0
    %1873 = vmatpush1.bf16.msra.mxu0 0
    %1874 = vmatprep.subr.bf16.mxu0 0
    %1875 = vmatpush1.bf16.msra.mxu0 0
    %1876 = vmatprep.subr.bf16.mxu0 0
    %1877 = vmatpush1.bf16.msra.mxu0 0
    %1878 = vmatprep.subr.bf16.mxu0 0
    %1879 = vmatpush1.bf16.msra.mxu0 0
    %1880 = vmatprep.subr.bf16.mxu0 0
    %1881 = vmatpush1.bf16.msra.mxu0 0
    %1882 = vmatprep.subr.bf16.mxu0 0
    %1883 = vmatpush1.bf16.msra.mxu0 0
    %1884 = vmatprep.subr.bf16.mxu0 0
    %1885 = vmatpush1.bf16.msra.mxu0 0
    %1886 = vmatprep.subr.bf16.mxu0 0
    %1887 = vmatpush1.bf16.msra.mxu0 0
    %1888 = vmatprep.subr.bf16.mxu0 0
    %1889 = vmatpush1.bf16.msra.mxu0 0
    %1890 = vmatprep.subr.bf16.mxu0 0
    %1891 = vmatpush1.bf16.msra.mxu0 0
    %1892 = vmatprep.subr.bf16.mxu0 0
    %1893 = vmatpush1.bf16.msra.mxu0 0
    %1894 = vmatprep.subr.bf16.mxu0 0
    %1895 = vmatpush1.bf16.msra.mxu0 0
    %1896 = vmatprep.mubr.bf16.mxu0 0
    %1897 = vmatmul.mubr.bf16.gmra.mrb[0].mxu0 %v1859
    %v1898 = vpop.f32.mrb[0].mxu0
    %v1899 = vadd.f32 %v1844, %v1898
    %v1900 = vpop.f32.mrb[0].mxu0
    %v1901 = vpop.f32.mrb[0].mxu0
    %v1902 = vadd.f32 %v1844, %v1901
    %v1903 = vpop.f32.mrb[0].mxu0
    %1904 = vmatprep.mubr.bf16.mxu0 0
    %1905 = vmatmul.mubr.bf16.gmra.mrb[0].mxu0 %v1862
    %v1906 = vpop.f32.mrb[0].mxu0
    %v1907 = vadd.f32 %v1844, %v1906
    %v1908 = vpop.f32.mrb[0].mxu0
    %v1909 = vpop.f32.mrb[0].mxu0
    %v1910 = vpop.f32.mrb[0].mxu0
    %1911 = vdwg.mxu0
    %v1912 = vmax.f32 %v1899, 0.0
    %v1913 = vmax.f32 %v1902, 0.0
    %v1914 = vmax.f32 %v1907, 0.0
    %v1915 = vld [vmem:[#allocation34] sm:$0xf]
    %v1916 = vld [vmem:[#allocation34 + $0x4] sm:$0xf]
    %v1917 = vld [vmem:[#allocation34 + $0x8] sm:$0xf]
    %v1918 = vld [vmem:[#allocation34 + $0xc] sm:$0xf]
    %v1919 = vpack.c.bf16 %v1913, %v1912
    %v1920 = vpack.c.bf16 %v1914, %v1914
    %v1921 = vld [vmem:[#allocation35] sm:$0x1]
    %v1923 = vlaneseq
    %v1924 = vshrl.u32 %v1923, 7
    %v1925 = vsub.s32 0, %v1924
    %v1926 = vrot.slane %v1921, %v1925
    %v1932 = vunpack.c.l.b16 %v1915
    %v1933 = vunpack.c.l.b16 %v1916
    %v1934 = vunpack.c.l.b16 %v1917
    %v1935 = vunpack.c.l.b16 %v1918
    %v1936 = vpack.c.b16 %v1933, %v1932
    %v1937 = vpack.c.b16 %v1935, %v1934
    %v1941 = vsel %vm704, %v1919, 0
    %v1944 = vsel %vm704, %v1920, 0
    %1946 = vmatprep.subr.bf16.mxu0 0
    %1947 = vmatpush1.bf16.msra.mxu0 %v1936
    %1948 = vmatprep.subr.bf16.mxu0 0
    %1949 = vmatpush1.bf16.msra.mxu0 %v1937
    %1950 = vmatprep.subr.bf16.mxu0 0
    %1951 = vmatpush1.bf16.msra.mxu0 0
    %1952 = vmatprep.subr.bf16.mxu0 0
    %1953 = vmatpush1.bf16.msra.mxu0 0
    %1954 = vmatprep.subr.bf16.mxu0 0
    %1955 = vmatpush1.bf16.msra.mxu0 0
    %1956 = vmatprep.subr.bf16.mxu0 0
    %1957 = vmatpush1.bf16.msra.mxu0 0
    %1958 = vmatprep.subr.bf16.mxu0 0
    %1959 = vmatpush1.bf16.msra.mxu0 0
    %1960 = vmatprep.subr.bf16.mxu0 0
    %1961 = vmatpush1.bf16.msra.mxu0 0
    %1962 = vmatprep.subr.bf16.mxu0 0
    %1963 = vmatpush1.bf16.msra.mxu0 0
    %1964 = vmatprep.subr.bf16.mxu0 0
    %1965 = vmatpush1.bf16.msra.mxu0 0
    %1966 = vmatprep.subr.bf16.mxu0 0
    %1967 = vmatpush1.bf16.msra.mxu0 0
    %1968 = vmatprep.subr.bf16.mxu0 0
    %1969 = vmatpush1.bf16.msra.mxu0 0
    %1970 = vmatprep.subr.bf16.mxu0 0
    %1971 = vmatpush1.bf16.msra.mxu0 0
    %1972 = vmatprep.subr.bf16.mxu0 0
    %1973 = vmatpush1.bf16.msra.mxu0 0
    %1974 = vmatprep.subr.bf16.mxu0 0
    %1975 = vmatpush1.bf16.msra.mxu0 0
    %1976 = vmatprep.subr.bf16.mxu0 0
    %1977 = vmatpush1.bf16.msra.mxu0 0
    %1978 = vmatprep.mubr.bf16.mxu0 0
    %1979 = vmatmul.mubr.bf16.gmra.mrb[0].mxu0 %v1941
    %v1980 = vpop.f32.mrb[0].mxu0
    %v1981 = vadd.f32 %v1926, %v1980
    %v1982 = vpop.f32.mrb[0].mxu0
    %v1983 = vpop.f32.mrb[0].mxu0
    %v1984 = vadd.f32 %v1926, %v1983
    %v1985 = vpop.f32.mrb[0].mxu0
    %1986 = vmatprep.mubr.bf16.mxu0 0
    %1987 = vmatmul.mubr.bf16.gmra.mrb[0].mxu0 %v1944
    %v1988 = vpop.f32.mrb[0].mxu0
    %v1989 = vadd.f32 %v1926, %v1988
    %v1990 = vpop.f32.mrb[0].mxu0
    %v1991 = vpop.f32.mrb[0].mxu0
    %v1992 = vpop.f32.mrb[0].mxu0
    %1993 = vdwg.mxu0
    %v1994 = vmax.f32 %v1981, 0.0
    %v1995 = vmax.f32 %v1984, 0.0
    %v1996 = vmax.f32 %v1989, 0.0
    %v1997 = vadd.f32 %v1820, %v1994
    %v1998 = vadd.f32 %v1823, %v1995
    %v1999 = vadd.f32 %v1828, %v1996
    %s2000 = scalar_lea.vmem [#allocation31], 16
    %v2001 = vld [vmem:[%s2000] sm:$0xf]
    %v2002 = vld [vmem:[%s2000 + $0x4] sm:$0xf]
    %v2003 = vld [vmem:[%s2000 + $0x8] sm:$0xf]
    %v2004 = vld [vmem:[%s2000 + $0xc] sm:$0xf]
    %v2005 = vpack.c.bf16 %v1998, %v1997
    %v2006 = vpack.c.bf16 %v1999, %v1999
    %s2007 = scalar_lea.vmem [#allocation32], 1
    %v2008 = vld [vmem:[%s2007] sm:$0x1]
    %v2010 = vlaneseq
    %v2011 = vshrl.u32 %v2010, 7
    %v2012 = vsub.s32 0, %v2011
    %v2013 = vrot.slane %v2008, %v2012
    %v2019 = vunpack.c.l.b16 %v2001
    %v2020 = vunpack.c.l.b16 %v2002
    %v2021 = vunpack.c.l.b16 %v2003
    %v2022 = vunpack.c.l.b16 %v2004
    %v2023 = vpack.c.b16 %v2020, %v2019
    %v2024 = vpack.c.b16 %v2022, %v2021
    %v2028 = vsel %vm704, %v2005, 0
    %v2031 = vsel %vm704, %v2006, 0
    %2033 = vmatprep.subr.bf16.mxu0 0
    %2034 = vmatpush1.bf16.msra.mxu0 %v2023
    %2035 = vmatprep.subr.bf16.mxu0 0
    %2036 = vmatpush1.bf16.msra.mxu0 %v2024
    %2037 = vmatprep.subr.bf16.mxu0 0
    %2038 = vmatpush1.bf16.msra.mxu0 0
    %2039 = vmatprep.subr.bf16.mxu0 0
    %2040 = vmatpush1.bf16.msra.mxu0 0
    %2041 = vmatprep.subr.bf16.mxu0 0
    %2042 = vmatpush1.bf16.msra.mxu0 0
    %2043 = vmatprep.subr.bf16.mxu0 0
    %2044 = vmatpush1.bf16.msra.mxu0 0
    %2045 = vmatprep.subr.bf16.mxu0 0
    %2046 = vmatpush1.bf16.msra.mxu0 0
    %2047 = vmatprep.subr.bf16.mxu0 0
    %2048 = vmatpush1.bf16.msra.mxu0 0
    %2049 = vmatprep.subr.bf16.mxu0 0
    %2050 = vmatpush1.bf16.msra.mxu0 0
    %2051 = vmatprep.subr.bf16.mxu0 0
    %2052 = vmatpush1.bf16.msra.mxu0 0
    %2053 = vmatprep.subr.bf16.mxu0 0
    %2054 = vmatpush1.bf16.msra.mxu0 0
    %2055 = vmatprep.subr.bf16.mxu0 0
    %2056 = vmatpush1.bf16.msra.mxu0 0
    %2057 = vmatprep.subr.bf16.mxu0 0
    %2058 = vmatpush1.bf16.msra.mxu0 0
    %2059 = vmatprep.subr.bf16.mxu0 0
    %2060 = vmatpush1.bf16.msra.mxu0 0
    %2061 = vmatprep.subr.bf16.mxu0 0
    %2062 = vmatpush1.bf16.msra.mxu0 0
    %2063 = vmatprep.subr.bf16.mxu0 0
    %2064 = vmatpush1.bf16.msra.mxu0 0
    %2065 = vmatprep.mubr.bf16.mxu0 0
    %2066 = vmatmul.mubr.bf16.gmra.mrb[0].mxu0 %v2028
    %v2067 = vpop.f32.mrb[0].mxu0
    %v2068 = vadd.f32 %v2013, %v2067
    %v2069 = vpop.f32.mrb[0].mxu0
    %v2070 = vpop.f32.mrb[0].mxu0
    %v2071 = vadd.f32 %v2013, %v2070
    %v2072 = vpop.f32.mrb[0].mxu0
    %2073 = vmatprep.mubr.bf16.mxu0 0
    %2074 = vmatmul.mubr.bf16.gmra.mrb[0].mxu0 %v2031
    %v2075 = vpop.f32.mrb[0].mxu0
    %v2076 = vadd.f32 %v2013, %v2075
    %v2077 = vpop.f32.mrb[0].mxu0
    %v2078 = vpop.f32.mrb[0].mxu0
    %v2079 = vpop.f32.mrb[0].mxu0
    %2080 = vdwg.mxu0
    %v2081 = vmax.f32 %v2068, 0.0
    %v2082 = vmax.f32 %v2071, 0.0
    %v2083 = vmax.f32 %v2076, 0.0
    %s2084 = scalar_lea.vmem [#allocation34], 16
    %v2085 = vld [vmem:[%s2084] sm:$0xf]
    %v2086 = vld [vmem:[%s2084 + $0x4] sm:$0xf]
    %v2087 = vld [vmem:[%s2084 + $0x8] sm:$0xf]
    %v2088 = vld [vmem:[%s2084 + $0xc] sm:$0xf]
    %v2089 = vpack.c.bf16 %v2082, %v2081
    %v2090 = vpack.c.bf16 %v2083, %v2083
    %s2091 = scalar_lea.vmem [#allocation35], 1
    %v2092 = vld [vmem:[%s2091] sm:$0x1]
    %v2094 = vlaneseq
    %v2095 = vshrl.u32 %v2094, 7
    %v2096 = vsub.s32 0, %v2095
    %v2097 = vrot.slane %v2092, %v2096
    %v2103 = vunpack.c.l.b16 %v2085
    %v2104 = vunpack.c.l.b16 %v2086
    %v2105 = vunpack.c.l.b16 %v2087
    %v2106 = vunpack.c.l.b16 %v2088
    %v2107 = vpack.c.b16 %v2104, %v2103
    %v2108 = vpack.c.b16 %v2106, %v2105
    %v2112 = vsel %vm704, %v2089, 0
    %v2115 = vsel %vm704, %v2090, 0
    %2117 = vmatprep.subr.bf16.mxu0 0
    %2118 = vmatpush1.bf16.msra.mxu0 %v2107
    %2119 = vmatprep.subr.bf16.mxu0 0
    %2120 = vmatpush1.bf16.msra.mxu0 %v2108
    %2121 = vmatprep.subr.bf16.mxu0 0
    %2122 = vmatpush1.bf16.msra.mxu0 0
    %2123 = vmatprep.subr.bf16.mxu0 0
    %2124 = vmatpush1.bf16.msra.mxu0 0
    %2125 = vmatprep.subr.bf16.mxu0 0
    %2126 = vmatpush1.bf16.msra.mxu0 0
    %2127 = vmatprep.subr.bf16.mxu0 0
    %2128 = vmatpush1.bf16.msra.mxu0 0
    %2129 = vmatprep.subr.bf16.mxu0 0
    %2130 = vmatpush1.bf16.msra.mxu0 0
    %2131 = vmatprep.subr.bf16.mxu0 0
    %2132 = vmatpush1.bf16.msra.mxu0 0
    %2133 = vmatprep.subr.bf16.mxu0 0
    %2134 = vmatpush1.bf16.msra.mxu0 0
    %2135 = vmatprep.subr.bf16.mxu0 0
    %2136 = vmatpush1.bf16.msra.mxu0 0
    %2137 = vmatprep.subr.bf16.mxu0 0
    %2138 = vmatpush1.bf16.msra.mxu0 0
    %2139 = vmatprep.subr.bf16.mxu0 0
    %2140 = vmatpush1.bf16.msra.mxu0 0
    %2141 = vmatprep.subr.bf16.mxu0 0
    %2142 = vmatpush1.bf16.msra.mxu0 0
    %2143 = vmatprep.subr.bf16.mxu0 0
    %2144 = vmatpush1.bf16.msra.mxu0 0
    %2145 = vmatprep.subr.bf16.mxu0 0
    %2146 = vmatpush1.bf16.msra.mxu0 0
    %2147 = vmatprep.subr.bf16.mxu0 0
    %2148 = vmatpush1.bf16.msra.mxu0 0
    %2149 = vmatprep.mubr.bf16.mxu0 0
    %2150 = vmatmul.mubr.bf16.gmra.mrb[0].mxu0 %v2112
    %v2151 = vpop.f32.mrb[0].mxu0
    %v2152 = vadd.f32 %v2097, %v2151
    %v2153 = vpop.f32.mrb[0].mxu0
    %v2154 = vpop.f32.mrb[0].mxu0
    %v2155 = vadd.f32 %v2097, %v2154
    %v2156 = vpop.f32.mrb[0].mxu0
    %2157 = vmatprep.mubr.bf16.mxu0 0
    %2158 = vmatmul.mubr.bf16.gmra.mrb[0].mxu0 %v2115
    %v2159 = vpop.f32.mrb[0].mxu0
    %v2160 = vadd.f32 %v2097, %v2159
    %v2161 = vpop.f32.mrb[0].mxu0
    %v2162 = vpop.f32.mrb[0].mxu0
    %v2163 = vpop.f32.mrb[0].mxu0
    %2164 = vdwg.mxu0
    %v2165 = vmax.f32 %v2152, 0.0
    %v2166 = vmax.f32 %v2155, 0.0
    %v2167 = vmax.f32 %v2160, 0.0
    %v2168 = vadd.f32 %v1997, %v2165
    %v2169 = vadd.f32 %v1998, %v2166
    %v2170 = vadd.f32 %v1999, %v2167
    %s2171 = scalar_lea.vmem [#allocation31], 32
    %v2172 = vld [vmem:[%s2171] sm:$0xf]
    %v2173 = vld [vmem:[%s2171 + $0x4] sm:$0xf]
    %v2174 = vld [vmem:[%s2171 + $0x8] sm:$0xf]
    %v2175 = vld [vmem:[%s2171 + $0xc] sm:$0xf]
    %v2176 = vpack.c.bf16 %v2169, %v2168
    %v2177 = vpack.c.bf16 %v2170, %v2170
    %s2178 = scalar_lea.vmem [#allocation32], 2
    %v2179 = vld [vmem:[%s2178] sm:$0x1]
    %v2181 = vlaneseq
    %v2182 = vshrl.u32 %v2181, 7
    %v2183 = vsub.s32 0, %v2182
    %v2184 = vrot.slane %v2179, %v2183
    %v2190 = vunpack.c.l.b16 %v2172
    %v2191 = vunpack.c.l.b16 %v2173
    %v2192 = vunpack.c.l.b16 %v2174
    %v2193 = vunpack.c.l.b16 %v2175
    %v2194 = vpack.c.b16 %v2191, %v2190
    %v2195 = vpack.c.b16 %v2193, %v2192
    %v2199 = vsel %vm704, %v2176, 0
    %v2202 = vsel %vm704, %v2177, 0
    %2204 = vmatprep.subr.bf16.mxu0 0
    %2205 = vmatpush1.bf16.msra.mxu0 %v2194
    %2206 = vmatprep.subr.bf16.mxu0 0
    %2207 = vmatpush1.bf16.msra.mxu0 %v2195
    %2208 = vmatprep.subr.bf16.mxu0 0
    %2209 = vmatpush1.bf16.msra.mxu0 0
    %2210 = vmatprep.subr.bf16.mxu0 0
    %2211 = vmatpush1.bf16.msra.mxu0 0
    %2212 = vmatprep.subr.bf16.mxu0 0
    %2213 = vmatpush1.bf16.msra.mxu0 0
    %2214 = vmatprep.subr.bf16.mxu0 0
    %2215 = vmatpush1.bf16.msra.mxu0 0
    %2216 = vmatprep.subr.bf16.mxu0 0
    %2217 = vmatpush1.bf16.msra.mxu0 0
    %2218 = vmatprep.subr.bf16.mxu0 0
    %2219 = vmatpush1.bf16.msra.mxu0 0
    %2220 = vmatprep.subr.bf16.mxu0 0
    %2221 = vmatpush1.bf16.msra.mxu0 0
    %2222 = vmatprep.subr.bf16.mxu0 0
    %2223 = vmatpush1.bf16.msra.mxu0 0
    %2224 = vmatprep.subr.bf16.mxu0 0
    %2225 = vmatpush1.bf16.msra.mxu0 0
    %2226 = vmatprep.subr.bf16.mxu0 0
    %2227 = vmatpush1.bf16.msra.mxu0 0
    %2228 = vmatprep.subr.bf16.mxu0 0
    %2229 = vmatpush1.bf16.msra.mxu0 0
    %2230 = vmatprep.subr.bf16.mxu0 0
    %2231 = vmatpush1.bf16.msra.mxu0 0
    %2232 = vmatprep.subr.bf16.mxu0 0
    %2233 = vmatpush1.bf16.msra.mxu0 0
    %2234 = vmatprep.subr.bf16.mxu0 0
    %2235 = vmatpush1.bf16.msra.mxu0 0
    %2236 = vmatprep.mubr.bf16.mxu0 0
    %2237 = vmatmul.mubr.bf16.gmra.mrb[0].mxu0 %v2199
    %v2238 = vpop.f32.mrb[0].mxu0
    %v2239 = vadd.f32 %v2184, %v2238
    %v2240 = vpop.f32.mrb[0].mxu0
    %v2241 = vpop.f32.mrb[0].mxu0
    %v2242 = vadd.f32 %v2184, %v2241
    %v2243 = vpop.f32.mrb[0].mxu0
    %2244 = vmatprep.mubr.bf16.mxu0 0
    %2245 = vmatmul.mubr.bf16.gmra.mrb[0].mxu0 %v2202
    %v2246 = vpop.f32.mrb[0].mxu0
    %v2247 = vadd.f32 %v2184, %v2246
    %v2248 = vpop.f32.mrb[0].mxu0
    %v2249 = vpop.f32.mrb[0].mxu0
    %v2250 = vpop.f32.mrb[0].mxu0
    %2251 = vdwg.mxu0
    %v2252 = vmax.f32 %v2239, 0.0
    %v2253 = vmax.f32 %v2242, 0.0
    %v2254 = vmax.f32 %v2247, 0.0
    %s2255 = scalar_lea.vmem [#allocation34], 32
    %v2256 = vld [vmem:[%s2255] sm:$0xf]
    %v2257 = vld [vmem:[%s2255 + $0x4] sm:$0xf]
    %v2258 = vld [vmem:[%s2255 + $0x8] sm:$0xf]
    %v2259 = vld [vmem:[%s2255 + $0xc] sm:$0xf]
    %v2260 = vpack.c.bf16 %v2253, %v2252
    %v2261 = vpack.c.bf16 %v2254, %v2254
    %s2262 = scalar_lea.vmem [#allocation35], 2
    %v2263 = vld [vmem:[%s2262] sm:$0x1]
    %v2265 = vlaneseq
    %v2266 = vshrl.u32 %v2265, 7
    %v2267 = vsub.s32 0, %v2266
    %v2268 = vrot.slane %v2263, %v2267
    %v2274 = vunpack.c.l.b16 %v2256
    %v2275 = vunpack.c.l.b16 %v2257
    %v2276 = vunpack.c.l.b16 %v2258
    %v2277 = vunpack.c.l.b16 %v2259
    %v2278 = vpack.c.b16 %v2275, %v2274
    %v2279 = vpack.c.b16 %v2277, %v2276
    %v2283 = vsel %vm704, %v2260, 0
    %v2286 = vsel %vm704, %v2261, 0
    %2288 = vmatprep.subr.bf16.mxu0 0
    %2289 = vmatpush1.bf16.msra.mxu0 %v2278
    %2290 = vmatprep.subr.bf16.mxu0 0
    %2291 = vmatpush1.bf16.msra.mxu0 %v2279
    %2292 = vmatprep.subr.bf16.mxu0 0
    %2293 = vmatpush1.bf16.msra.mxu0 0
    %2294 = vmatprep.subr.bf16.mxu0 0
    %2295 = vmatpush1.bf16.msra.mxu0 0
    %2296 = vmatprep.subr.bf16.mxu0 0
    %2297 = vmatpush1.bf16.msra.mxu0 0
    %2298 = vmatprep.subr.bf16.mxu0 0
    %2299 = vmatpush1.bf16.msra.mxu0 0
    %2300 = vmatprep.subr.bf16.mxu0 0
    %2301 = vmatpush1.bf16.msra.mxu0 0
    %2302 = vmatprep.subr.bf16.mxu0 0
    %2303 = vmatpush1.bf16.msra.mxu0 0
    %2304 = vmatprep.subr.bf16.mxu0 0
    %2305 = vmatpush1.bf16.msra.mxu0 0
    %2306 = vmatprep.subr.bf16.mxu0 0
    %2307 = vmatpush1.bf16.msra.mxu0 0
    %2308 = vmatprep.subr.bf16.mxu0 0
    %2309 = vmatpush1.bf16.msra.mxu0 0
    %2310 = vmatprep.subr.bf16.mxu0 0
    %2311 = vmatpush1.bf16.msra.mxu0 0
    %2312 = vmatprep.subr.bf16.mxu0 0
    %2313 = vmatpush1.bf16.msra.mxu0 0
    %2314 = vmatprep.subr.bf16.mxu0 0
    %2315 = vmatpush1.bf16.msra.mxu0 0
    %2316 = vmatprep.subr.bf16.mxu0 0
    %2317 = vmatpush1.bf16.msra.mxu0 0
    %2318 = vmatprep.subr.bf16.mxu0 0
    %2319 = vmatpush1.bf16.msra.mxu0 0
    %2320 = vmatprep.mubr.bf16.mxu0 0
    %2321 = vmatmul.mubr.bf16.gmra.mrb[0].mxu0 %v2283
    %v2322 = vpop.f32.mrb[0].mxu0
    %v2323 = vadd.f32 %v2268, %v2322
    %v2324 = vpop.f32.mrb[0].mxu0
    %v2325 = vpop.f32.mrb[0].mxu0
    %v2326 = vadd.f32 %v2268, %v2325
    %v2327 = vpop.f32.mrb[0].mxu0
    %2328 = vmatprep.mubr.bf16.mxu0 0
    %2329 = vmatmul.mubr.bf16.gmra.mrb[0].mxu0 %v2286
    %v2330 = vpop.f32.mrb[0].mxu0
    %v2331 = vadd.f32 %v2268, %v2330
    %v2332 = vpop.f32.mrb[0].mxu0
    %v2333 = vpop.f32.mrb[0].mxu0
    %v2334 = vpop.f32.mrb[0].mxu0
    %2335 = vdwg.mxu0
    %v2336 = vmax.f32 %v2323, 0.0
    %v2337 = vmax.f32 %v2326, 0.0
    %v2338 = vmax.f32 %v2331, 0.0
    %v2339 = vadd.f32 %v2168, %v2336
    %v2340 = vadd.f32 %v2169, %v2337
    %v2341 = vadd.f32 %v2170, %v2338
    %2342 = vst.msk [vmem:[#allocation59] sm:$0xff] %vm704, %v2339
    %2343 = vst.msk [vmem:[#allocation59 + $0x8] sm:$0xff] %vm704, %v2340
    %2344 = vst.msk [vmem:[#allocation59 + $0x10] sm:$0xf] %vm1745, %v2341
    %v2345 = vld [vmem:[#allocation37] sm:$0xf]
    %v2346 = vld [vmem:[#allocation37 + $0x4] sm:$0xf]
    %v2347 = vld [vmem:[#allocation37 + $0x8] sm:$0xf]
    %v2348 = vld [vmem:[#allocation37 + $0xc] sm:$0xf]
    %v2349 = vpack.c.bf16 %v1722, %v1728
    %v2350 = vpack.c.bf16 %v1724, %v1724
    %v2351 = vld [vmem:[#allocation38] sm:$0x1]
    %v2353 = vlaneseq
    %v2354 = vshrl.u32 %v2353, 7
    %v2355 = vsub.s32 0, %v2354
    %v2356 = vrot.slane %v2351, %v2355
    %v2362 = vunpack.c.l.b16 %v2345
    %v2363 = vunpack.c.l.b16 %v2346
    %v2364 = vunpack.c.l.b16 %v2347
    %v2365 = vunpack.c.l.b16 %v2348
    %v2366 = vpack.c.b16 %v2363, %v2362
    %v2367 = vpack.c.b16 %v2365, %v2364
    %v2371 = vsel %vm704, %v2349, 0
    %v2374 = vsel %vm704, %v2350, 0
    %2376 = vmatprep.subr.bf16.mxu0 0
    %2377 = vmatpush1.bf16.msra.mxu0 %v2366
    %2378 = vmatprep.subr.bf16.mxu0 0
    %2379 = vmatpush1.bf16.msra.mxu0 %v2367
    %2380 = vmatprep.subr.bf16.mxu0 0
    %2381 = vmatpush1.bf16.msra.mxu0 0
    %2382 = vmatprep.subr.bf16.mxu0 0
    %2383 = vmatpush1.bf16.msra.mxu0 0
    %2384 = vmatprep.subr.bf16.mxu0 0
    %2385 = vmatpush1.bf16.msra.mxu0 0
    %2386 = vmatprep.subr.bf16.mxu0 0
    %2387 = vmatpush1.bf16.msra.mxu0 0
    %2388 = vmatprep.subr.bf16.mxu0 0
    %2389 = vmatpush1.bf16.msra.mxu0 0
    %2390 = vmatprep.subr.bf16.mxu0 0
    %2391 = vmatpush1.bf16.msra.mxu0 0
    %2392 = vmatprep.subr.bf16.mxu0 0
    %2393 = vmatpush1.bf16.msra.mxu0 0
    %2394 = vmatprep.subr.bf16.mxu0 0
    %2395 = vmatpush1.bf16.msra.mxu0 0
    %2396 = vmatprep.subr.bf16.mxu0 0
    %2397 = vmatpush1.bf16.msra.mxu0 0
    %2398 = vmatprep.subr.bf16.mxu0 0
    %2399 = vmatpush1.bf16.msra.mxu0 0
    %2400 = vmatprep.subr.bf16.mxu0 0
    %2401 = vmatpush1.bf16.msra.mxu0 0
    %2402 = vmatprep.subr.bf16.mxu0 0
    %2403 = vmatpush1.bf16.msra.mxu0 0
    %2404 = vmatprep.subr.bf16.mxu0 0
    %2405 = vmatpush1.bf16.msra.mxu0 0
    %2406 = vmatprep.subr.bf16.mxu0 0
    %2407 = vmatpush1.bf16.msra.mxu0 0
    %2408 = vmatprep.mubr.bf16.mxu0 0
    %2409 = vmatmul.mubr.bf16.gmra.mrb[0].mxu0 %v1780
    %v2410 = vpop.f32.mrb[0].mxu0
    %v2411 = vadd.f32 %v2356, %v2410
    %v2412 = vpop.f32.mrb[0].mxu0
    %v2413 = vpop.f32.mrb[0].mxu0
    %v2414 = vadd.f32 %v2356, %v2413
    %v2415 = vpop.f32.mrb[0].mxu0
    %2416 = vmatprep.mubr.bf16.mxu0 0
    %2417 = vmatmul.mubr.bf16.gmra.mrb[0].mxu0 %v2371
    %v2418 = vpop.f32.mrb[0].mxu0
    %v2419 = vadd.f32 %v2356, %v2418
    %v2420 = vpop.f32.mrb[0].mxu0
    %v2421 = vpop.f32.mrb[0].mxu0
    %v2422 = vadd.f32 %v2356, %v2421
    %v2423 = vpop.f32.mrb[0].mxu0
    %2424 = vmatprep.mubr.bf16.mxu0 0
    %2425 = vmatmul.mubr.bf16.gmra.mrb[0].mxu0 %v2374
    %v2426 = vpop.f32.mrb[0].mxu0
    %v2427 = vadd.f32 %v2356, %v2426
    %v2428 = vpop.f32.mrb[0].mxu0
    %v2429 = vpop.f32.mrb[0].mxu0
    %v2430 = vpop.f32.mrb[0].mxu0
    %2431 = vdwg.mxu0
    %v2432 = vld [vmem:[#allocation40] sm:$0xf]
    %v2433 = vld [vmem:[#allocation40 + $0x4] sm:$0xf]
    %v2434 = vld [vmem:[#allocation40 + $0x8] sm:$0xf]
    %v2435 = vld [vmem:[#allocation40 + $0xc] sm:$0xf]
    %v2436 = vpack.c.bf16 %v2414, %v2411
    %v2437 = vpack.c.bf16 %v2422, %v2419
    %v2438 = vpack.c.bf16 %v2427, %v2427
    %v2439 = vld [vmem:[#allocation41] sm:$0x1]
    %v2441 = vlaneseq
    %v2442 = vshrl.u32 %v2441, 7
    %v2443 = vsub.s32 0, %v2442
    %v2444 = vrot.slane %v2439, %v2443
    %v2450 = vunpack.c.l.b16 %v2432
    %v2451 = vunpack.c.l.b16 %v2433
    %v2452 = vunpack.c.l.b16 %v2434
    %v2453 = vunpack.c.l.b16 %v2435
    %v2454 = vpack.c.b16 %v2451, %v2450
    %v2455 = vpack.c.b16 %v2453, %v2452
    %v2459 = vsel %vm704, %v2436, 0
    %v2462 = vsel %vm704, %v2437, 0
    %v2465 = vsel %vm704, %v2438, 0
    %2467 = vmatprep.subr.bf16.mxu0 0
    %2468 = vmatpush1.bf16.msra.mxu0 %v2454
    %2469 = vmatprep.subr.bf16.mxu0 0
    %2470 = vmatpush1.bf16.msra.mxu0 %v2455
    %2471 = vmatprep.subr.bf16.mxu0 0
    %2472 = vmatpush1.bf16.msra.mxu0 0
    %2473 = vmatprep.subr.bf16.mxu0 0
    %2474 = vmatpush1.bf16.msra.mxu0 0
    %2475 = vmatprep.subr.bf16.mxu0 0
    %2476 = vmatpush1.bf16.msra.mxu0 0
    %2477 = vmatprep.subr.bf16.mxu0 0
    %2478 = vmatpush1.bf16.msra.mxu0 0
    %2479 = vmatprep.subr.bf16.mxu0 0
    %2480 = vmatpush1.bf16.msra.mxu0 0
    %2481 = vmatprep.subr.bf16.mxu0 0
    %2482 = vmatpush1.bf16.msra.mxu0 0
    %2483 = vmatprep.subr.bf16.mxu0 0
    %2484 = vmatpush1.bf16.msra.mxu0 0
    %2485 = vmatprep.subr.bf16.mxu0 0
    %2486 = vmatpush1.bf16.msra.mxu0 0
    %2487 = vmatprep.subr.bf16.mxu0 0
    %2488 = vmatpush1.bf16.msra.mxu0 0
    %2489 = vmatprep.subr.bf16.mxu0 0
    %2490 = vmatpush1.bf16.msra.mxu0 0
    %2491 = vmatprep.subr.bf16.mxu0 0
    %2492 = vmatpush1.bf16.msra.mxu0 0
    %2493 = vmatprep.subr.bf16.mxu0 0
    %2494 = vmatpush1.bf16.msra.mxu0 0
    %2495 = vmatprep.subr.bf16.mxu0 0
    %2496 = vmatpush1.bf16.msra.mxu0 0
    %2497 = vmatprep.subr.bf16.mxu0 0
    %2498 = vmatpush1.bf16.msra.mxu0 0
    %2499 = vmatprep.mubr.bf16.mxu0 0
    %2500 = vmatmul.mubr.bf16.gmra.mrb[0].mxu0 %v2459
    %v2501 = vpop.f32.mrb[0].mxu0
    %v2502 = vadd.f32 %v2444, %v2501
    %v2503 = vpop.f32.mrb[0].mxu0
    %v2504 = vpop.f32.mrb[0].mxu0
    %v2505 = vadd.f32 %v2444, %v2504
    %v2506 = vpop.f32.mrb[0].mxu0
    %2507 = vmatprep.mubr.bf16.mxu0 0
    %2508 = vmatmul.mubr.bf16.gmra.mrb[0].mxu0 %v2462
    %v2509 = vpop.f32.mrb[0].mxu0
    %v2510 = vadd.f32 %v2444, %v2509
    %v2511 = vpop.f32.mrb[0].mxu0
    %v2512 = vpop.f32.mrb[0].mxu0
    %v2513 = vadd.f32 %v2444, %v2512
    %v2514 = vpop.f32.mrb[0].mxu0
    %2515 = vmatprep.mubr.bf16.mxu0 0
    %2516 = vmatmul.mubr.bf16.gmra.mrb[0].mxu0 %v2465
    %v2517 = vpop.f32.mrb[0].mxu0
    %v2518 = vadd.f32 %v2444, %v2517
    %v2519 = vpop.f32.mrb[0].mxu0
    %v2520 = vpop.f32.mrb[0].mxu0
    %v2521 = vpop.f32.mrb[0].mxu0
    %2522 = vdwg.mxu0
    %v2523 = vmax.f32 %v2502, 0.0
    %v2524 = vmax.f32 %v2505, 0.0
    %v2525 = vmax.f32 %v2510, 0.0
    %v2526 = vmax.f32 %v2513, 0.0
    %v2527 = vmax.f32 %v2518, 0.0
    %v2528 = vld [vmem:[%s55] sm:$0xf]
    %v2529 = vld [vmem:[%s55 + $0x4] sm:$0xf]
    %v2530 = vld [vmem:[%s55 + $0x8] sm:$0xf]
    %v2531 = vld [vmem:[%s55 + $0xc] sm:$0xf]
    %v2532 = vpack.c.bf16 %v2524, %v2523
    %v2533 = vpack.c.bf16 %v2526, %v2525
    %v2534 = vpack.c.bf16 %v2527, %v2527
    %v2535 = vld [vmem:[%s57] sm:$0x1]
    %v2537 = vlaneseq
    %v2538 = vshrl.u32 %v2537, 7
    %v2539 = vsub.s32 0, %v2538
    %v2540 = vrot.slane %v2535, %v2539
    %v2546 = vunpack.c.l.b16 %v2528
    %v2547 = vunpack.c.l.b16 %v2529
    %v2548 = vunpack.c.l.b16 %v2530
    %v2549 = vunpack.c.l.b16 %v2531
    %v2550 = vpack.c.b16 %v2547, %v2546
    %v2551 = vpack.c.b16 %v2549, %v2548
    %v2555 = vsel %vm704, %v2532, 0
    %v2558 = vsel %vm704, %v2533, 0
    %v2561 = vsel %vm704, %v2534, 0
    %2563 = vmatprep.subr.bf16.mxu0 0
    %2564 = vmatpush1.bf16.msra.mxu0 %v2550
    %2565 = vmatprep.subr.bf16.mxu0 0
    %2566 = vmatpush1.bf16.msra.mxu0 %v2551
    %2567 = vmatprep.subr.bf16.mxu0 0
    %2568 = vmatpush1.bf16.msra.mxu0 0
    %2569 = vmatprep.subr.bf16.mxu0 0
    %2570 = vmatpush1.bf16.msra.mxu0 0
    %2571 = vmatprep.subr.bf16.mxu0 0
    %2572 = vmatpush1.bf16.msra.mxu0 0
    %2573 = vmatprep.subr.bf16.mxu0 0
    %2574 = vmatpush1.bf16.msra.mxu0 0
    %2575 = vmatprep.subr.bf16.mxu0 0
    %2576 = vmatpush1.bf16.msra.mxu0 0
    %2577 = vmatprep.subr.bf16.mxu0 0
    %2578 = vmatpush1.bf16.msra.mxu0 0
    %2579 = vmatprep.subr.bf16.mxu0 0
    %2580 = vmatpush1.bf16.msra.mxu0 0
    %2581 = vmatprep.subr.bf16.mxu0 0
    %2582 = vmatpush1.bf16.msra.mxu0 0
    %2583 = vmatprep.subr.bf16.mxu0 0
    %2584 = vmatpush1.bf16.msra.mxu0 0
    %2585 = vmatprep.subr.bf16.mxu0 0
    %2586 = vmatpush1.bf16.msra.mxu0 0
    %2587 = vmatprep.subr.bf16.mxu0 0
    %2588 = vmatpush1.bf16.msra.mxu0 0
    %2589 = vmatprep.subr.bf16.mxu0 0
    %2590 = vmatpush1.bf16.msra.mxu0 0
    %2591 = vmatprep.subr.bf16.mxu0 0
    %2592 = vmatpush1.bf16.msra.mxu0 0
    %2593 = vmatprep.subr.bf16.mxu0 0
    %2594 = vmatpush1.bf16.msra.mxu0 0
    %2595 = vmatprep.mubr.bf16.mxu0 0
    %2596 = vmatmul.mubr.bf16.gmra.mrb[0].mxu0 %v2555
    %v2597 = vpop.f32.mrb[0].mxu0
    %v2598 = vadd.f32 %v2540, %v2597
    %v2599 = vpop.f32.mrb[0].mxu0
    %v2600 = vpop.f32.mrb[0].mxu0
    %v2601 = vadd.f32 %v2540, %v2600
    %v2602 = vpop.f32.mrb[0].mxu0
    %2603 = vmatprep.mubr.bf16.mxu0 0
    %2604 = vmatmul.mubr.bf16.gmra.mrb[0].mxu0 %v2558
    %v2605 = vpop.f32.mrb[0].mxu0
    %v2606 = vadd.f32 %v2540, %v2605
    %v2607 = vpop.f32.mrb[0].mxu0
    %v2608 = vpop.f32.mrb[0].mxu0
    %v2609 = vadd.f32 %v2540, %v2608
    %v2610 = vpop.f32.mrb[0].mxu0
    %2611 = vmatprep.mubr.bf16.mxu0 0
    %2612 = vmatmul.mubr.bf16.gmra.mrb[0].mxu0 %v2561
    %v2613 = vpop.f32.mrb[0].mxu0
    %v2614 = vadd.f32 %v2540, %v2613
    %v2615 = vpop.f32.mrb[0].mxu0
    %v2616 = vpop.f32.mrb[0].mxu0
    %v2617 = vpop.f32.mrb[0].mxu0
    %2618 = vdwg.mxu0
    %v2619 = vmax.f32 %v2598, 0.0
    %v2620 = vmax.f32 %v2601, 0.0
    %v2621 = vmax.f32 %v2606, 0.0
    %v2622 = vmax.f32 %v2609, 0.0
    %v2623 = vmax.f32 %v2614, 0.0
    %v2624 = vadd.f32 %v2411, %v2619
    %v2625 = vadd.f32 %v2414, %v2620
    %v2626 = vadd.f32 %v2419, %v2621
    %v2627 = vadd.f32 %v2422, %v2622
    %v2628 = vadd.f32 %v2427, %v2623
    %s2629 = scalar_lea.vmem [#allocation40], 16
    %v2630 = vld [vmem:[%s2629] sm:$0xf]
    %v2631 = vld [vmem:[%s2629 + $0x4] sm:$0xf]
    %v2632 = vld [vmem:[%s2629 + $0x8] sm:$0xf]
    %v2633 = vld [vmem:[%s2629 + $0xc] sm:$0xf]
    %v2634 = vpack.c.bf16 %v2625, %v2624
    %v2635 = vpack.c.bf16 %v2627, %v2626
    %v2636 = vpack.c.bf16 %v2628, %v2628
    %s2637 = scalar_lea.vmem [#allocation41], 1
    %v2638 = vld [vmem:[%s2637] sm:$0x1]
    %v2640 = vlaneseq
    %v2641 = vshrl.u32 %v2640, 7
    %v2642 = vsub.s32 0, %v2641
    %v2643 = vrot.slane %v2638, %v2642
    %v2649 = vunpack.c.l.b16 %v2630
    %v2650 = vunpack.c.l.b16 %v2631
    %v2651 = vunpack.c.l.b16 %v2632
    %v2652 = vunpack.c.l.b16 %v2633
    %v2653 = vpack.c.b16 %v2650, %v2649
    %v2654 = vpack.c.b16 %v2652, %v2651
    %v2658 = vsel %vm704, %v2634, 0
    %v2661 = vsel %vm704, %v2635, 0
    %v2664 = vsel %vm704, %v2636, 0
    %2666 = vmatprep.subr.bf16.mxu0 0
    %2667 = vmatpush1.bf16.msra.mxu0 %v2653
    %2668 = vmatprep.subr.bf16.mxu0 0
    %2669 = vmatpush1.bf16.msra.mxu0 %v2654
    %2670 = vmatprep.subr.bf16.mxu0 0
    %2671 = vmatpush1.bf16.msra.mxu0 0
    %2672 = vmatprep.subr.bf16.mxu0 0
    %2673 = vmatpush1.bf16.msra.mxu0 0
    %2674 = vmatprep.subr.bf16.mxu0 0
    %2675 = vmatpush1.bf16.msra.mxu0 0
    %2676 = vmatprep.subr.bf16.mxu0 0
    %2677 = vmatpush1.bf16.msra.mxu0 0
    %2678 = vmatprep.subr.bf16.mxu0 0
    %2679 = vmatpush1.bf16.msra.mxu0 0
    %2680 = vmatprep.subr.bf16.mxu0 0
    %2681 = vmatpush1.bf16.msra.mxu0 0
    %2682 = vmatprep.subr.bf16.mxu0 0
    %2683 = vmatpush1.bf16.msra.mxu0 0
    %2684 = vmatprep.subr.bf16.mxu0 0
    %2685 = vmatpush1.bf16.msra.mxu0 0
    %2686 = vmatprep.subr.bf16.mxu0 0
    %2687 = vmatpush1.bf16.msra.mxu0 0
    %2688 = vmatprep.subr.bf16.mxu0 0
    %2689 = vmatpush1.bf16.msra.mxu0 0
    %2690 = vmatprep.subr.bf16.mxu0 0
    %2691 = vmatpush1.bf16.msra.mxu0 0
    %2692 = vmatprep.subr.bf16.mxu0 0
    %2693 = vmatpush1.bf16.msra.mxu0 0
    %2694 = vmatprep.subr.bf16.mxu0 0
    %2695 = vmatpush1.bf16.msra.mxu0 0
    %2696 = vmatprep.subr.bf16.mxu0 0
    %2697 = vmatpush1.bf16.msra.mxu0 0
    %2698 = vmatprep.mubr.bf16.mxu0 0
    %2699 = vmatmul.mubr.bf16.gmra.mrb[0].mxu0 %v2658
    %v2700 = vpop.f32.mrb[0].mxu0
    %v2701 = vadd.f32 %v2643, %v2700
    %v2702 = vpop.f32.mrb[0].mxu0
    %v2703 = vpop.f32.mrb[0].mxu0
    %v2704 = vadd.f32 %v2643, %v2703
    %v2705 = vpop.f32.mrb[0].mxu0
    %2706 = vmatprep.mubr.bf16.mxu0 0
    %2707 = vmatmul.mubr.bf16.gmra.mrb[0].mxu0 %v2661
    %v2708 = vpop.f32.mrb[0].mxu0
    %v2709 = vadd.f32 %v2643, %v2708
    %v2710 = vpop.f32.mrb[0].mxu0
    %v2711 = vpop.f32.mrb[0].mxu0
    %v2712 = vadd.f32 %v2643, %v2711
    %v2713 = vpop.f32.mrb[0].mxu0
    %2714 = vmatprep.mubr.bf16.mxu0 0
    %2715 = vmatmul.mubr.bf16.gmra.mrb[0].mxu0 %v2664
    %v2716 = vpop.f32.mrb[0].mxu0
    %v2717 = vadd.f32 %v2643, %v2716
    %v2718 = vpop.f32.mrb[0].mxu0
    %v2719 = vpop.f32.mrb[0].mxu0
    %v2720 = vpop.f32.mrb[0].mxu0
    %2721 = vdwg.mxu0
    %v2722 = vmax.f32 %v2701, 0.0
    %v2723 = vmax.f32 %v2704, 0.0
    %v2724 = vmax.f32 %v2709, 0.0
    %v2725 = vmax.f32 %v2712, 0.0
    %v2726 = vmax.f32 %v2717, 0.0
    %s2727 = scalar_lea.vmem %s55, 16
    %v2728 = vld [vmem:[%s2727] sm:$0xf]
    %v2729 = vld [vmem:[%s2727 + $0x4] sm:$0xf]
    %v2730 = vld [vmem:[%s2727 + $0x8] sm:$0xf]
    %v2731 = vld [vmem:[%s2727 + $0xc] sm:$0xf]
    %v2732 = vpack.c.bf16 %v2723, %v2722
    %v2733 = vpack.c.bf16 %v2725, %v2724
    %v2734 = vpack.c.bf16 %v2726, %v2726
    %s2735 = scalar_lea.vmem %s57, 1
    %v2736 = vld [vmem:[%s2735] sm:$0x1]
    %v2738 = vlaneseq
    %v2739 = vshrl.u32 %v2738, 7
    %v2740 = vsub.s32 0, %v2739
    %v2741 = vrot.slane %v2736, %v2740
    %v2747 = vunpack.c.l.b16 %v2728
    %v2748 = vunpack.c.l.b16 %v2729
    %v2749 = vunpack.c.l.b16 %v2730
    %v2750 = vunpack.c.l.b16 %v2731
    %v2751 = vpack.c.b16 %v2748, %v2747
    %v2752 = vpack.c.b16 %v2750, %v2749
    %v2756 = vsel %vm704, %v2732, 0
    %v2759 = vsel %vm704, %v2733, 0
    %v2762 = vsel %vm704, %v2734, 0
    %2764 = vmatprep.subr.bf16.mxu0 0
    %2765 = vmatpush1.bf16.msra.mxu0 %v2751
    %2766 = vmatprep.subr.bf16.mxu0 0
    %2767 = vmatpush1.bf16.msra.mxu0 %v2752
    %2768 = vmatprep.subr.bf16.mxu0 0
    %2769 = vmatpush1.bf16.msra.mxu0 0
    %2770 = vmatprep.subr.bf16.mxu0 0
    %2771 = vmatpush1.bf16.msra.mxu0 0
    %2772 = vmatprep.subr.bf16.mxu0 0
    %2773 = vmatpush1.bf16.msra.mxu0 0
    %2774 = vmatprep.subr.bf16.mxu0 0
    %2775 = vmatpush1.bf16.msra.mxu0 0
    %2776 = vmatprep.subr.bf16.mxu0 0
    %2777 = vmatpush1.bf16.msra.mxu0 0
    %2778 = vmatprep.subr.bf16.mxu0 0
    %2779 = vmatpush1.bf16.msra.mxu0 0
    %2780 = vmatprep.subr.bf16.mxu0 0
    %2781 = vmatpush1.bf16.msra.mxu0 0
    %2782 = vmatprep.subr.bf16.mxu0 0
    %2783 = vmatpush1.bf16.msra.mxu0 0
    %2784 = vmatprep.subr.bf16.mxu0 0
    %2785 = vmatpush1.bf16.msra.mxu0 0
    %2786 = vmatprep.subr.bf16.mxu0 0
    %2787 = vmatpush1.bf16.msra.mxu0 0
    %2788 = vmatprep.subr.bf16.mxu0 0
    %2789 = vmatpush1.bf16.msra.mxu0 0
    %2790 = vmatprep.subr.bf16.mxu0 0
    %2791 = vmatpush1.bf16.msra.mxu0 0
    %2792 = vmatprep.subr.bf16.mxu0 0
    %2793 = vmatpush1.bf16.msra.mxu0 0
    %2794 = vmatprep.subr.bf16.mxu0 0
    %2795 = vmatpush1.bf16.msra.mxu0 0
    %2796 = vmatprep.mubr.bf16.mxu0 0
    %2797 = vmatmul.mubr.bf16.gmra.mrb[0].mxu0 %v2756
    %v2798 = vpop.f32.mrb[0].mxu0
    %v2799 = vadd.f32 %v2741, %v2798
    %v2800 = vpop.f32.mrb[0].mxu0
    %v2801 = vpop.f32.mrb[0].mxu0
    %v2802 = vadd.f32 %v2741, %v2801
    %v2803 = vpop.f32.mrb[0].mxu0
    %2804 = vmatprep.mubr.bf16.mxu0 0
    %2805 = vmatmul.mubr.bf16.gmra.mrb[0].mxu0 %v2759
    %v2806 = vpop.f32.mrb[0].mxu0
    %v2807 = vadd.f32 %v2741, %v2806
    %v2808 = vpop.f32.mrb[0].mxu0
    %v2809 = vpop.f32.mrb[0].mxu0
    %v2810 = vadd.f32 %v2741, %v2809
    %v2811 = vpop.f32.mrb[0].mxu0
    %2812 = vmatprep.mubr.bf16.mxu0 0
    %2813 = vmatmul.mubr.bf16.gmra.mrb[0].mxu0 %v2762
    %v2814 = vpop.f32.mrb[0].mxu0
    %v2815 = vadd.f32 %v2741, %v2814
    %v2816 = vpop.f32.mrb[0].mxu0
    %v2817 = vpop.f32.mrb[0].mxu0
    %v2818 = vpop.f32.mrb[0].mxu0
    %2819 = vdwg.mxu0
    %v2820 = vmax.f32 %v2799, 0.0
    %v2821 = vmax.f32 %v2802, 0.0
    %v2822 = vmax.f32 %v2807, 0.0
    %v2823 = vmax.f32 %v2810, 0.0
    %v2824 = vmax.f32 %v2815, 0.0
    %v2825 = vadd.f32 %v2624, %v2820
    %v2826 = vadd.f32 %v2625, %v2821
    %v2827 = vadd.f32 %v2626, %v2822
    %v2828 = vadd.f32 %v2627, %v2823
    %v2829 = vadd.f32 %v2628, %v2824
    %s2830 = scalar_lea.vmem [#allocation40], 32
    %v2831 = vld [vmem:[%s2830] sm:$0xf]
    %v2832 = vld [vmem:[%s2830 + $0x4] sm:$0xf]
    %v2833 = vld [vmem:[%s2830 + $0x8] sm:$0xf]
    %v2834 = vld [vmem:[%s2830 + $0xc] sm:$0xf]
    %v2835 = vpack.c.bf16 %v2826, %v2825
    %v2836 = vpack.c.bf16 %v2828, %v2827
    %v2837 = vpack.c.bf16 %v2829, %v2829
    %s2838 = scalar_lea.vmem [#allocation41], 2
    %v2839 = vld [vmem:[%s2838] sm:$0x1]
    %v2841 = vlaneseq
    %v2842 = vshrl.u32 %v2841, 7
    %v2843 = vsub.s32 0, %v2842
    %v2844 = vrot.slane %v2839, %v2843
    %v2850 = vunpack.c.l.b16 %v2831
    %v2851 = vunpack.c.l.b16 %v2832
    %v2852 = vunpack.c.l.b16 %v2833
    %v2853 = vunpack.c.l.b16 %v2834
    %v2854 = vpack.c.b16 %v2851, %v2850
    %v2855 = vpack.c.b16 %v2853, %v2852
    %v2859 = vsel %vm704, %v2835, 0
    %v2862 = vsel %vm704, %v2836, 0
    %v2865 = vsel %vm704, %v2837, 0
    %2867 = vmatprep.subr.bf16.mxu0 0
    %2868 = vmatpush1.bf16.msra.mxu0 %v2854
    %2869 = vmatprep.subr.bf16.mxu0 0
    %2870 = vmatpush1.bf16.msra.mxu0 %v2855
    %2871 = vmatprep.subr.bf16.mxu0 0
    %2872 = vmatpush1.bf16.msra.mxu0 0
    %2873 = vmatprep.subr.bf16.mxu0 0
    %2874 = vmatpush1.bf16.msra.mxu0 0
    %2875 = vmatprep.subr.bf16.mxu0 0
    %2876 = vmatpush1.bf16.msra.mxu0 0
    %2877 = vmatprep.subr.bf16.mxu0 0
    %2878 = vmatpush1.bf16.msra.mxu0 0
    %2879 = vmatprep.subr.bf16.mxu0 0
    %2880 = vmatpush1.bf16.msra.mxu0 0
    %2881 = vmatprep.subr.bf16.mxu0 0
    %2882 = vmatpush1.bf16.msra.mxu0 0
    %2883 = vmatprep.subr.bf16.mxu0 0
    %2884 = vmatpush1.bf16.msra.mxu0 0
    %2885 = vmatprep.subr.bf16.mxu0 0
    %2886 = vmatpush1.bf16.msra.mxu0 0
    %2887 = vmatprep.subr.bf16.mxu0 0
    %2888 = vmatpush1.bf16.msra.mxu0 0
    %2889 = vmatprep.subr.bf16.mxu0 0
    %2890 = vmatpush1.bf16.msra.mxu0 0
    %2891 = vmatprep.subr.bf16.mxu0 0
    %2892 = vmatpush1.bf16.msra.mxu0 0
    %2893 = vmatprep.subr.bf16.mxu0 0
    %2894 = vmatpush1.bf16.msra.mxu0 0
    %2895 = vmatprep.subr.bf16.mxu0 0
    %2896 = vmatpush1.bf16.msra.mxu0 0
    %2897 = vmatprep.subr.bf16.mxu0 0
    %2898 = vmatpush1.bf16.msra.mxu0 0
    %2899 = vmatprep.mubr.bf16.mxu0 0
    %2900 = vmatmul.mubr.bf16.gmra.mrb[0].mxu0 %v2859
    %v2901 = vpop.f32.mrb[0].mxu0
    %v2902 = vadd.f32 %v2844, %v2901
    %v2903 = vpop.f32.mrb[0].mxu0
    %v2904 = vpop.f32.mrb[0].mxu0
    %v2905 = vadd.f32 %v2844, %v2904
    %v2906 = vpop.f32.mrb[0].mxu0
    %2907 = vmatprep.mubr.bf16.mxu0 0
    %2908 = vmatmul.mubr.bf16.gmra.mrb[0].mxu0 %v2862
    %v2909 = vpop.f32.mrb[0].mxu0
    %v2910 = vadd.f32 %v2844, %v2909
    %v2911 = vpop.f32.mrb[0].mxu0
    %v2912 = vpop.f32.mrb[0].mxu0
    %v2913 = vadd.f32 %v2844, %v2912
    %v2914 = vpop.f32.mrb[0].mxu0
    %2915 = vmatprep.mubr.bf16.mxu0 0
    %2916 = vmatmul.mubr.bf16.gmra.mrb[0].mxu0 %v2865
    %v2917 = vpop.f32.mrb[0].mxu0
    %v2918 = vadd.f32 %v2844, %v2917
    %v2919 = vpop.f32.mrb[0].mxu0
    %v2920 = vpop.f32.mrb[0].mxu0
    %v2921 = vpop.f32.mrb[0].mxu0
    %2922 = vdwg.mxu0
    %v2923 = vmax.f32 %v2902, 0.0
    %v2924 = vmax.f32 %v2905, 0.0
    %v2925 = vmax.f32 %v2910, 0.0
    %v2926 = vmax.f32 %v2913, 0.0
    %v2927 = vmax.f32 %v2918, 0.0
    %s2928 = scalar_lea.vmem %s55, 32
    %v2929 = vld [vmem:[%s2928] sm:$0xf]
    %v2930 = vld [vmem:[%s2928 + $0x4] sm:$0xf]
    %v2931 = vld [vmem:[%s2928 + $0x8] sm:$0xf]
    %v2932 = vld [vmem:[%s2928 + $0xc] sm:$0xf]
    %v2933 = vpack.c.bf16 %v2924, %v2923
    %v2934 = vpack.c.bf16 %v2926, %v2925
    %v2935 = vpack.c.bf16 %v2927, %v2927
    %s2936 = scalar_lea.vmem %s57, 2
    %v2937 = vld [vmem:[%s2936] sm:$0x1]
    %v2939 = vlaneseq
    %v2940 = vshrl.u32 %v2939, 7
    %v2941 = vsub.s32 0, %v2940
    %v2942 = vrot.slane %v2937, %v2941
    %v2948 = vunpack.c.l.b16 %v2929
    %v2949 = vunpack.c.l.b16 %v2930
    %v2950 = vunpack.c.l.b16 %v2931
    %v2951 = vunpack.c.l.b16 %v2932
    %v2952 = vpack.c.b16 %v2949, %v2948
    %v2953 = vpack.c.b16 %v2951, %v2950
    %v2957 = vsel %vm704, %v2933, 0
    %v2960 = vsel %vm704, %v2934, 0
    %v2963 = vsel %vm704, %v2935, 0
    %2965 = vmatprep.subr.bf16.mxu0 0
    %2966 = vmatpush1.bf16.msra.mxu0 %v2952
    %2967 = vmatprep.subr.bf16.mxu0 0
    %2968 = vmatpush1.bf16.msra.mxu0 %v2953
    %2969 = vmatprep.subr.bf16.mxu0 0
    %2970 = vmatpush1.bf16.msra.mxu0 0
    %2971 = vmatprep.subr.bf16.mxu0 0
    %2972 = vmatpush1.bf16.msra.mxu0 0
    %2973 = vmatprep.subr.bf16.mxu0 0
    %2974 = vmatpush1.bf16.msra.mxu0 0
    %2975 = vmatprep.subr.bf16.mxu0 0
    %2976 = vmatpush1.bf16.msra.mxu0 0
    %2977 = vmatprep.subr.bf16.mxu0 0
    %2978 = vmatpush1.bf16.msra.mxu0 0
    %2979 = vmatprep.subr.bf16.mxu0 0
    %2980 = vmatpush1.bf16.msra.mxu0 0
    %2981 = vmatprep.subr.bf16.mxu0 0
    %2982 = vmatpush1.bf16.msra.mxu0 0
    %2983 = vmatprep.subr.bf16.mxu0 0
    %2984 = vmatpush1.bf16.msra.mxu0 0
    %2985 = vmatprep.subr.bf16.mxu0 0
    %2986 = vmatpush1.bf16.msra.mxu0 0
    %2987 = vmatprep.subr.bf16.mxu0 0
    %2988 = vmatpush1.bf16.msra.mxu0 0
    %2989 = vmatprep.subr.bf16.mxu0 0
    %2990 = vmatpush1.bf16.msra.mxu0 0
    %2991 = vmatprep.subr.bf16.mxu0 0
    %2992 = vmatpush1.bf16.msra.mxu0 0
    %2993 = vmatprep.subr.bf16.mxu0 0
    %2994 = vmatpush1.bf16.msra.mxu0 0
    %2995 = vmatprep.subr.bf16.mxu0 0
    %2996 = vmatpush1.bf16.msra.mxu0 0
    %2997 = vmatprep.mubr.bf16.mxu0 0
    %2998 = vmatmul.mubr.bf16.gmra.mrb[0].mxu0 %v2957
    %v2999 = vpop.f32.mrb[0].mxu0
    %v3000 = vadd.f32 %v2942, %v2999
    %v3001 = vpop.f32.mrb[0].mxu0
    %v3002 = vpop.f32.mrb[0].mxu0
    %v3003 = vadd.f32 %v2942, %v3002
    %v3004 = vpop.f32.mrb[0].mxu0
    %3005 = vmatprep.mubr.bf16.mxu0 0
    %3006 = vmatmul.mubr.bf16.gmra.mrb[0].mxu0 %v2960
    %v3007 = vpop.f32.mrb[0].mxu0
    %v3008 = vadd.f32 %v2942, %v3007
    %v3009 = vpop.f32.mrb[0].mxu0
    %v3010 = vpop.f32.mrb[0].mxu0
    %v3011 = vadd.f32 %v2942, %v3010
    %v3012 = vpop.f32.mrb[0].mxu0
    %3013 = vmatprep.mubr.bf16.mxu0 0
    %3014 = vmatmul.mubr.bf16.gmra.mrb[0].mxu0 %v2963
    %v3015 = vpop.f32.mrb[0].mxu0
    %v3016 = vadd.f32 %v2942, %v3015
    %v3017 = vpop.f32.mrb[0].mxu0
    %v3018 = vpop.f32.mrb[0].mxu0
    %v3019 = vpop.f32.mrb[0].mxu0
    %3020 = vdwg.mxu0
    %v3021 = vmax.f32 %v3000, 0.0
    %v3022 = vmax.f32 %v3003, 0.0
    %v3023 = vmax.f32 %v3008, 0.0
    %v3024 = vmax.f32 %v3011, 0.0
    %v3025 = vmax.f32 %v3016, 0.0
    %v3026 = vadd.f32 %v2825, %v3021
    %v3027 = vadd.f32 %v2826, %v3022
    %v3028 = vadd.f32 %v2827, %v3023
    %v3029 = vadd.f32 %v2828, %v3024
    %v3030 = vadd.f32 %v2829, %v3025
    %3031 = vst.msk [vmem:[%s89] sm:$0xff] %vm704, %v3026
    %3032 = vst.msk [vmem:[%s89 + $0x8] sm:$0xff] %vm704, %v3027
    %3033 = vst.msk [vmem:[%s89 + $0x10] sm:$0xff] %vm704, %v3028
    %3034 = vst.msk [vmem:[%s89 + $0x18] sm:$0xff] %vm704, %v3029
    %3035 = vst.msk [vmem:[%s89 + $0x20] sm:$0xff] %vm704, %v3030
    %v3036 = vld [vmem:[#allocation43] sm:$0xf]
    %v3037 = vld [vmem:[#allocation43 + $0x4] sm:$0xf]
    %v3038 = vld [vmem:[#allocation43 + $0x8] sm:$0xf]
    %v3039 = vld [vmem:[#allocation43 + $0xc] sm:$0xf]
    %v3040 = vld [vmem:[#allocation44] sm:$0x1]
    %v3042 = vlaneseq
    %v3043 = vshrl.u32 %v3042, 7
    %v3044 = vsub.s32 0, %v3043
    %v3045 = vrot.slane %v3040, %v3044
    %v3051 = vunpack.c.l.b16 %v3036
    %v3052 = vunpack.c.l.b16 %v3037
    %v3053 = vunpack.c.l.b16 %v3038
    %v3054 = vunpack.c.l.b16 %v3039
    %v3055 = vpack.c.b16 %v3052, %v3051
    %v3056 = vpack.c.b16 %v3054, %v3053
    %3059 = vmatprep.subr.bf16.mxu0 0
    %3060 = vmatpush1.bf16.msra.mxu0 %v3055
    %3061 = vmatprep.subr.bf16.mxu0 0
    %3062 = vmatpush1.bf16.msra.mxu0 %v3056
    %3063 = vmatprep.subr.bf16.mxu0 0
    %3064 = vmatpush1.bf16.msra.mxu0 0
    %3065 = vmatprep.subr.bf16.mxu0 0
    %3066 = vmatpush1.bf16.msra.mxu0 0
    %3067 = vmatprep.subr.bf16.mxu0 0
    %3068 = vmatpush1.bf16.msra.mxu0 0
    %3069 = vmatprep.subr.bf16.mxu0 0
    %3070 = vmatpush1.bf16.msra.mxu0 0
    %3071 = vmatprep.subr.bf16.mxu0 0
    %3072 = vmatpush1.bf16.msra.mxu0 0
    %3073 = vmatprep.subr.bf16.mxu0 0
    %3074 = vmatpush1.bf16.msra.mxu0 0
    %3075 = vmatprep.subr.bf16.mxu0 0
    %3076 = vmatpush1.bf16.msra.mxu0 0
    %3077 = vmatprep.subr.bf16.mxu0 0
    %3078 = vmatpush1.bf16.msra.mxu0 0
    %3079 = vmatprep.subr.bf16.mxu0 0
    %3080 = vmatpush1.bf16.msra.mxu0 0
    %3081 = vmatprep.subr.bf16.mxu0 0
    %3082 = vmatpush1.bf16.msra.mxu0 0
    %3083 = vmatprep.subr.bf16.mxu0 0
    %3084 = vmatpush1.bf16.msra.mxu0 0
    %3085 = vmatprep.subr.bf16.mxu0 0
    %3086 = vmatpush1.bf16.msra.mxu0 0
    %3087 = vmatprep.subr.bf16.mxu0 0
    %3088 = vmatpush1.bf16.msra.mxu0 0
    %3089 = vmatprep.subr.bf16.mxu0 0
    %3090 = vmatpush1.bf16.msra.mxu0 0
    %3091 = vmatprep.mubr.bf16.mxu0 0
    %3092 = vmatmul.mubr.bf16.gmra.mrb[0].mxu0 %v1780
    %v3093 = vpop.f32.mrb[0].mxu0
    %v3094 = vadd.f32 %v3045, %v3093
    %v3095 = vpop.f32.mrb[0].mxu0
    %v3096 = vpop.f32.mrb[0].mxu0
    %v3097 = vadd.f32 %v3045, %v3096
    %v3098 = vpop.f32.mrb[0].mxu0
    %3099 = vmatprep.mubr.bf16.mxu0 0
    %3100 = vmatmul.mubr.bf16.gmra.mrb[0].mxu0 %v2371
    %v3101 = vpop.f32.mrb[0].mxu0
    %v3102 = vadd.f32 %v3045, %v3101
    %v3103 = vpop.f32.mrb[0].mxu0
    %v3104 = vpop.f32.mrb[0].mxu0
    %v3105 = vadd.f32 %v3045, %v3104
    %v3106 = vpop.f32.mrb[0].mxu0
    %3107 = vmatprep.mubr.bf16.mxu0 0
    %3108 = vmatmul.mubr.bf16.gmra.mrb[0].mxu0 %v2374
    %v3109 = vpop.f32.mrb[0].mxu0
    %v3110 = vadd.f32 %v3045, %v3109
    %v3111 = vpop.f32.mrb[0].mxu0
    %v3112 = vpop.f32.mrb[0].mxu0
    %v3113 = vpop.f32.mrb[0].mxu0
    %3114 = vdwg.mxu0
    %v3115 = vld [vmem:[#allocation46] sm:$0xf]
    %v3116 = vld [vmem:[#allocation46 + $0x4] sm:$0xf]
    %v3117 = vld [vmem:[#allocation46 + $0x8] sm:$0xf]
    %v3118 = vld [vmem:[#allocation46 + $0xc] sm:$0xf]
    %v3119 = vpack.c.bf16 %v3097, %v3094
    %v3120 = vpack.c.bf16 %v3105, %v3102
    %v3121 = vpack.c.bf16 %v3110, %v3110
    %v3122 = vld [vmem:[#allocation47] sm:$0x1]
    %v3124 = vlaneseq
    %v3125 = vshrl.u32 %v3124, 7
    %v3126 = vsub.s32 0, %v3125
    %v3127 = vrot.slane %v3122, %v3126
    %v3133 = vunpack.c.l.b16 %v3115
    %v3134 = vunpack.c.l.b16 %v3116
    %v3135 = vunpack.c.l.b16 %v3117
    %v3136 = vunpack.c.l.b16 %v3118
    %v3137 = vpack.c.b16 %v3134, %v3133
    %v3138 = vpack.c.b16 %v3136, %v3135
    %v3142 = vsel %vm704, %v3119, 0
    %v3145 = vsel %vm704, %v3120, 0
    %v3148 = vsel %vm704, %v3121, 0
    %3150 = vmatprep.subr.bf16.mxu0 0
    %3151 = vmatpush1.bf16.msra.mxu0 %v3137
    %3152 = vmatprep.subr.bf16.mxu0 0
    %3153 = vmatpush1.bf16.msra.mxu0 %v3138
    %3154 = vmatprep.subr.bf16.mxu0 0
    %3155 = vmatpush1.bf16.msra.mxu0 0
    %3156 = vmatprep.subr.bf16.mxu0 0
    %3157 = vmatpush1.bf16.msra.mxu0 0
    %3158 = vmatprep.subr.bf16.mxu0 0
    %3159 = vmatpush1.bf16.msra.mxu0 0
    %3160 = vmatprep.subr.bf16.mxu0 0
    %3161 = vmatpush1.bf16.msra.mxu0 0
    %3162 = vmatprep.subr.bf16.mxu0 0
    %3163 = vmatpush1.bf16.msra.mxu0 0
    %3164 = vmatprep.subr.bf16.mxu0 0
    %3165 = vmatpush1.bf16.msra.mxu0 0
    %3166 = vmatprep.subr.bf16.mxu0 0
    %3167 = vmatpush1.bf16.msra.mxu0 0
    %3168 = vmatprep.subr.bf16.mxu0 0
    %3169 = vmatpush1.bf16.msra.mxu0 0
    %3170 = vmatprep.subr.bf16.mxu0 0
    %3171 = vmatpush1.bf16.msra.mxu0 0
    %3172 = vmatprep.subr.bf16.mxu0 0
    %3173 = vmatpush1.bf16.msra.mxu0 0
    %3174 = vmatprep.subr.bf16.mxu0 0
    %3175 = vmatpush1.bf16.msra.mxu0 0
    %3176 = vmatprep.subr.bf16.mxu0 0
    %3177 = vmatpush1.bf16.msra.mxu0 0
    %3178 = vmatprep.subr.bf16.mxu0 0
    %3179 = vmatpush1.bf16.msra.mxu0 0
    %3180 = vmatprep.subr.bf16.mxu0 0
    %3181 = vmatpush1.bf16.msra.mxu0 0
    %3182 = vmatprep.mubr.bf16.mxu0 0
    %3183 = vmatmul.mubr.bf16.gmra.mrb[0].mxu0 %v3142
    %v3184 = vpop.f32.mrb[0].mxu0
    %v3185 = vadd.f32 %v3127, %v3184
    %v3186 = vpop.f32.mrb[0].mxu0
    %v3187 = vpop.f32.mrb[0].mxu0
    %v3188 = vadd.f32 %v3127, %v3187
    %v3189 = vpop.f32.mrb[0].mxu0
    %3190 = vmatprep.mubr.bf16.mxu0 0
    %3191 = vmatmul.mubr.bf16.gmra.mrb[0].mxu0 %v3145
    %v3192 = vpop.f32.mrb[0].mxu0
    %v3193 = vadd.f32 %v3127, %v3192
    %v3194 = vpop.f32.mrb[0].mxu0
    %v3195 = vpop.f32.mrb[0].mxu0
    %v3196 = vadd.f32 %v3127, %v3195
    %v3197 = vpop.f32.mrb[0].mxu0
    %3198 = vmatprep.mubr.bf16.mxu0 0
    %3199 = vmatmul.mubr.bf16.gmra.mrb[0].mxu0 %v3148
    %v3200 = vpop.f32.mrb[0].mxu0
    %v3201 = vadd.f32 %v3127, %v3200
    %v3202 = vpop.f32.mrb[0].mxu0
    %v3203 = vpop.f32.mrb[0].mxu0
    %v3204 = vpop.f32.mrb[0].mxu0
    %3205 = vdwg.mxu0
    %v3206 = vmax.f32 %v3185, 0.0
    %v3207 = vmax.f32 %v3188, 0.0
    %v3208 = vmax.f32 %v3193, 0.0
    %v3209 = vmax.f32 %v3196, 0.0
    %v3210 = vmax.f32 %v3201, 0.0
    %v3211 = vld [vmem:[#allocation49] sm:$0xf]
    %v3212 = vld [vmem:[#allocation49 + $0x4] sm:$0xf]
    %v3213 = vld [vmem:[#allocation49 + $0x8] sm:$0xf]
    %v3214 = vld [vmem:[#allocation49 + $0xc] sm:$0xf]
    %v3215 = vpack.c.bf16 %v3207, %v3206
    %v3216 = vpack.c.bf16 %v3209, %v3208
    %v3217 = vpack.c.bf16 %v3210, %v3210
    %v3218 = vld [vmem:[#allocation50] sm:$0x1]
    %v3220 = vlaneseq
    %v3221 = vshrl.u32 %v3220, 7
    %v3222 = vsub.s32 0, %v3221
    %v3223 = vrot.slane %v3218, %v3222
    %v3229 = vunpack.c.l.b16 %v3211
    %v3230 = vunpack.c.l.b16 %v3212
    %v3231 = vunpack.c.l.b16 %v3213
    %v3232 = vunpack.c.l.b16 %v3214
    %v3233 = vpack.c.b16 %v3230, %v3229
    %v3234 = vpack.c.b16 %v3232, %v3231
    %v3238 = vsel %vm704, %v3215, 0
    %v3241 = vsel %vm704, %v3216, 0
    %v3244 = vsel %vm704, %v3217, 0
    %3246 = vmatprep.subr.bf16.mxu0 0
    %3247 = vmatpush1.bf16.msra.mxu0 %v3233
    %3248 = vmatprep.subr.bf16.mxu0 0
    %3249 = vmatpush1.bf16.msra.mxu0 %v3234
    %3250 = vmatprep.subr.bf16.mxu0 0
    %3251 = vmatpush1.bf16.msra.mxu0 0
    %3252 = vmatprep.subr.bf16.mxu0 0
    %3253 = vmatpush1.bf16.msra.mxu0 0
    %3254 = vmatprep.subr.bf16.mxu0 0
    %3255 = vmatpush1.bf16.msra.mxu0 0
    %3256 = vmatprep.subr.bf16.mxu0 0
    %3257 = vmatpush1.bf16.msra.mxu0 0
    %3258 = vmatprep.subr.bf16.mxu0 0
    %3259 = vmatpush1.bf16.msra.mxu0 0
    %3260 = vmatprep.subr.bf16.mxu0 0
    %3261 = vmatpush1.bf16.msra.mxu0 0
    %3262 = vmatprep.subr.bf16.mxu0 0
    %3263 = vmatpush1.bf16.msra.mxu0 0
    %3264 = vmatprep.subr.bf16.mxu0 0
    %3265 = vmatpush1.bf16.msra.mxu0 0
    %3266 = vmatprep.subr.bf16.mxu0 0
    %3267 = vmatpush1.bf16.msra.mxu0 0
    %3268 = vmatprep.subr.bf16.mxu0 0
    %3269 = vmatpush1.bf16.msra.mxu0 0
    %3270 = vmatprep.subr.bf16.mxu0 0
    %3271 = vmatpush1.bf16.msra.mxu0 0
    %3272 = vmatprep.subr.bf16.mxu0 0
    %3273 = vmatpush1.bf16.msra.mxu0 0
    %3274 = vmatprep.subr.bf16.mxu0 0
    %3275 = vmatpush1.bf16.msra.mxu0 0
    %3276 = vmatprep.subr.bf16.mxu0 0
    %3277 = vmatpush1.bf16.msra.mxu0 0
    %3278 = vmatprep.mubr.bf16.mxu0 0
    %3279 = vmatmul.mubr.bf16.gmra.mrb[0].mxu0 %v3238
    %v3280 = vpop.f32.mrb[0].mxu0
    %v3281 = vadd.f32 %v3223, %v3280
    %v3282 = vpop.f32.mrb[0].mxu0
    %v3283 = vpop.f32.mrb[0].mxu0
    %v3284 = vadd.f32 %v3223, %v3283
    %v3285 = vpop.f32.mrb[0].mxu0
    %3286 = vmatprep.mubr.bf16.mxu0 0
    %3287 = vmatmul.mubr.bf16.gmra.mrb[0].mxu0 %v3241
    %v3288 = vpop.f32.mrb[0].mxu0
    %v3289 = vadd.f32 %v3223, %v3288
    %v3290 = vpop.f32.mrb[0].mxu0
    %v3291 = vpop.f32.mrb[0].mxu0
    %v3292 = vadd.f32 %v3223, %v3291
    %v3293 = vpop.f32.mrb[0].mxu0
    %3294 = vmatprep.mubr.bf16.mxu0 0
    %3295 = vmatmul.mubr.bf16.gmra.mrb[0].mxu0 %v3244
    %v3296 = vpop.f32.mrb[0].mxu0
    %v3297 = vadd.f32 %v3223, %v3296
    %v3298 = vpop.f32.mrb[0].mxu0
    %v3299 = vpop.f32.mrb[0].mxu0
    %v3300 = vpop.f32.mrb[0].mxu0
    %3301 = vdwg.mxu0
    %v3302 = vmax.f32 %v3281, 0.0
    %v3303 = vmax.f32 %v3284, 0.0
    %v3304 = vmax.f32 %v3289, 0.0
    %v3305 = vmax.f32 %v3292, 0.0
    %v3306 = vmax.f32 %v3297, 0.0
    %v3307 = vadd.f32 %v3094, %v3302
    %v3308 = vadd.f32 %v3097, %v3303
    %v3309 = vadd.f32 %v3102, %v3304
    %v3310 = vadd.f32 %v3105, %v3305
    %v3311 = vadd.f32 %v3110, %v3306
    %s3312 = scalar_lea.vmem [#allocation46], 16
    %v3313 = vld [vmem:[%s3312] sm:$0xf]
    %v3314 = vld [vmem:[%s3312 + $0x4] sm:$0xf]
    %v3315 = vld [vmem:[%s3312 + $0x8] sm:$0xf]
    %v3316 = vld [vmem:[%s3312 + $0xc] sm:$0xf]
    %v3317 = vpack.c.bf16 %v3308, %v3307
    %v3318 = vpack.c.bf16 %v3310, %v3309
    %v3319 = vpack.c.bf16 %v3311, %v3311
    %s3320 = scalar_lea.vmem [#allocation47], 1
    %v3321 = vld [vmem:[%s3320] sm:$0x1]
    %v3323 = vlaneseq
    %v3324 = vshrl.u32 %v3323, 7
    %v3325 = vsub.s32 0, %v3324
    %v3326 = vrot.slane %v3321, %v3325
    %v3332 = vunpack.c.l.b16 %v3313
    %v3333 = vunpack.c.l.b16 %v3314
    %v3334 = vunpack.c.l.b16 %v3315
    %v3335 = vunpack.c.l.b16 %v3316
    %v3336 = vpack.c.b16 %v3333, %v3332
    %v3337 = vpack.c.b16 %v3335, %v3334
    %v3341 = vsel %vm704, %v3317, 0
    %v3344 = vsel %vm704, %v3318, 0
    %v3347 = vsel %vm704, %v3319, 0
    %3349 = vmatprep.subr.bf16.mxu0 0
    %3350 = vmatpush1.bf16.msra.mxu0 %v3336
    %3351 = vmatprep.subr.bf16.mxu0 0
    %3352 = vmatpush1.bf16.msra.mxu0 %v3337
    %3353 = vmatprep.subr.bf16.mxu0 0
    %3354 = vmatpush1.bf16.msra.mxu0 0
    %3355 = vmatprep.subr.bf16.mxu0 0
    %3356 = vmatpush1.bf16.msra.mxu0 0
    %3357 = vmatprep.subr.bf16.mxu0 0
    %3358 = vmatpush1.bf16.msra.mxu0 0
    %3359 = vmatprep.subr.bf16.mxu0 0
    %3360 = vmatpush1.bf16.msra.mxu0 0
    %3361 = vmatprep.subr.bf16.mxu0 0
    %3362 = vmatpush1.bf16.msra.mxu0 0
    %3363 = vmatprep.subr.bf16.mxu0 0
    %3364 = vmatpush1.bf16.msra.mxu0 0
    %3365 = vmatprep.subr.bf16.mxu0 0
    %3366 = vmatpush1.bf16.msra.mxu0 0
    %3367 = vmatprep.subr.bf16.mxu0 0
    %3368 = vmatpush1.bf16.msra.mxu0 0
    %3369 = vmatprep.subr.bf16.mxu0 0
    %3370 = vmatpush1.bf16.msra.mxu0 0
    %3371 = vmatprep.subr.bf16.mxu0 0
    %3372 = vmatpush1.bf16.msra.mxu0 0
    %3373 = vmatprep.subr.bf16.mxu0 0
    %3374 = vmatpush1.bf16.msra.mxu0 0
    %3375 = vmatprep.subr.bf16.mxu0 0
    %3376 = vmatpush1.bf16.msra.mxu0 0
    %3377 = vmatprep.subr.bf16.mxu0 0
    %3378 = vmatpush1.bf16.msra.mxu0 0
    %3379 = vmatprep.subr.bf16.mxu0 0
    %3380 = vmatpush1.bf16.msra.mxu0 0
    %3381 = vmatprep.mubr.bf16.mxu0 0
    %3382 = vmatmul.mubr.bf16.gmra.mrb[0].mxu0 %v3341
    %v3383 = vpop.f32.mrb[0].mxu0
    %v3384 = vadd.f32 %v3326, %v3383
    %v3385 = vpop.f32.mrb[0].mxu0
    %v3386 = vpop.f32.mrb[0].mxu0
    %v3387 = vadd.f32 %v3326, %v3386
    %v3388 = vpop.f32.mrb[0].mxu0
    %3389 = vmatprep.mubr.bf16.mxu0 0
    %3390 = vmatmul.mubr.bf16.gmra.mrb[0].mxu0 %v3344
    %v3391 = vpop.f32.mrb[0].mxu0
    %v3392 = vadd.f32 %v3326, %v3391
    %v3393 = vpop.f32.mrb[0].mxu0
    %v3394 = vpop.f32.mrb[0].mxu0
    %v3395 = vadd.f32 %v3326, %v3394
    %v3396 = vpop.f32.mrb[0].mxu0
    %3397 = vmatprep.mubr.bf16.mxu0 0
    %3398 = vmatmul.mubr.bf16.gmra.mrb[0].mxu0 %v3347
    %v3399 = vpop.f32.mrb[0].mxu0
    %v3400 = vadd.f32 %v3326, %v3399
    %v3401 = vpop.f32.mrb[0].mxu0
    %v3402 = vpop.f32.mrb[0].mxu0
    %v3403 = vpop.f32.mrb[0].mxu0
    %3404 = vdwg.mxu0
    %v3405 = vmax.f32 %v3384, 0.0
    %v3406 = vmax.f32 %v3387, 0.0
    %v3407 = vmax.f32 %v3392, 0.0
    %v3408 = vmax.f32 %v3395, 0.0
    %v3409 = vmax.f32 %v3400, 0.0
    %s3410 = scalar_lea.vmem [#allocation49], 16
    %v3411 = vld [vmem:[%s3410] sm:$0xf]
    %v3412 = vld [vmem:[%s3410 + $0x4] sm:$0xf]
    %v3413 = vld [vmem:[%s3410 + $0x8] sm:$0xf]
    %v3414 = vld [vmem:[%s3410 + $0xc] sm:$0xf]
    %v3415 = vpack.c.bf16 %v3406, %v3405
    %v3416 = vpack.c.bf16 %v3408, %v3407
    %v3417 = vpack.c.bf16 %v3409, %v3409
    %s3418 = scalar_lea.vmem [#allocation50], 1
    %v3419 = vld [vmem:[%s3418] sm:$0x1]
    %v3421 = vlaneseq
    %v3422 = vshrl.u32 %v3421, 7
    %v3423 = vsub.s32 0, %v3422
    %v3424 = vrot.slane %v3419, %v3423
    %v3430 = vunpack.c.l.b16 %v3411
    %v3431 = vunpack.c.l.b16 %v3412
    %v3432 = vunpack.c.l.b16 %v3413
    %v3433 = vunpack.c.l.b16 %v3414
    %v3434 = vpack.c.b16 %v3431, %v3430
    %v3435 = vpack.c.b16 %v3433, %v3432
    %v3439 = vsel %vm704, %v3415, 0
    %v3442 = vsel %vm704, %v3416, 0
    %v3445 = vsel %vm704, %v3417, 0
    %3447 = vmatprep.subr.bf16.mxu0 0
    %3448 = vmatpush1.bf16.msra.mxu0 %v3434
    %3449 = vmatprep.subr.bf16.mxu0 0
    %3450 = vmatpush1.bf16.msra.mxu0 %v3435
    %3451 = vmatprep.subr.bf16.mxu0 0
    %3452 = vmatpush1.bf16.msra.mxu0 0
    %3453 = vmatprep.subr.bf16.mxu0 0
    %3454 = vmatpush1.bf16.msra.mxu0 0
    %3455 = vmatprep.subr.bf16.mxu0 0
    %3456 = vmatpush1.bf16.msra.mxu0 0
    %3457 = vmatprep.subr.bf16.mxu0 0
    %3458 = vmatpush1.bf16.msra.mxu0 0
    %3459 = vmatprep.subr.bf16.mxu0 0
    %3460 = vmatpush1.bf16.msra.mxu0 0
    %3461 = vmatprep.subr.bf16.mxu0 0
    %3462 = vmatpush1.bf16.msra.mxu0 0
    %3463 = vmatprep.subr.bf16.mxu0 0
    %3464 = vmatpush1.bf16.msra.mxu0 0
    %3465 = vmatprep.subr.bf16.mxu0 0
    %3466 = vmatpush1.bf16.msra.mxu0 0
    %3467 = vmatprep.subr.bf16.mxu0 0
    %3468 = vmatpush1.bf16.msra.mxu0 0
    %3469 = vmatprep.subr.bf16.mxu0 0
    %3470 = vmatpush1.bf16.msra.mxu0 0
    %3471 = vmatprep.subr.bf16.mxu0 0
    %3472 = vmatpush1.bf16.msra.mxu0 0
    %3473 = vmatprep.subr.bf16.mxu0 0
    %3474 = vmatpush1.bf16.msra.mxu0 0
    %3475 = vmatprep.subr.bf16.mxu0 0
    %3476 = vmatpush1.bf16.msra.mxu0 0
    %3477 = vmatprep.subr.bf16.mxu0 0
    %3478 = vmatpush1.bf16.msra.mxu0 0
    %3479 = vmatprep.mubr.bf16.mxu0 0
    %3480 = vmatmul.mubr.bf16.gmra.mrb[0].mxu0 %v3439
    %v3481 = vpop.f32.mrb[0].mxu0
    %v3482 = vadd.f32 %v3424, %v3481
    %v3483 = vpop.f32.mrb[0].mxu0
    %v3484 = vpop.f32.mrb[0].mxu0
    %v3485 = vadd.f32 %v3424, %v3484
    %v3486 = vpop.f32.mrb[0].mxu0
    %3487 = vmatprep.mubr.bf16.mxu0 0
    %3488 = vmatmul.mubr.bf16.gmra.mrb[0].mxu0 %v3442
    %v3489 = vpop.f32.mrb[0].mxu0
    %v3490 = vadd.f32 %v3424, %v3489
    %v3491 = vpop.f32.mrb[0].mxu0
    %v3492 = vpop.f32.mrb[0].mxu0
    %v3493 = vadd.f32 %v3424, %v3492
    %v3494 = vpop.f32.mrb[0].mxu0
    %3495 = vmatprep.mubr.bf16.mxu0 0
    %3496 = vmatmul.mubr.bf16.gmra.mrb[0].mxu0 %v3445
    %v3497 = vpop.f32.mrb[0].mxu0
    %v3498 = vadd.f32 %v3424, %v3497
    %v3499 = vpop.f32.mrb[0].mxu0
    %v3500 = vpop.f32.mrb[0].mxu0
    %v3501 = vpop.f32.mrb[0].mxu0
    %3502 = vdwg.mxu0
    %v3503 = vmax.f32 %v3482, 0.0
    %v3504 = vmax.f32 %v3485, 0.0
    %v3505 = vmax.f32 %v3490, 0.0
    %v3506 = vmax.f32 %v3493, 0.0
    %v3507 = vmax.f32 %v3498, 0.0
    %v3508 = vadd.f32 %v3307, %v3503
    %v3509 = vadd.f32 %v3308, %v3504
    %v3510 = vadd.f32 %v3309, %v3505
    %v3511 = vadd.f32 %v3310, %v3506
    %v3512 = vadd.f32 %v3311, %v3507
    %s3513 = scalar_lea.vmem [#allocation46], 32
    %v3514 = vld [vmem:[%s3513] sm:$0xf]
    %v3515 = vld [vmem:[%s3513 + $0x4] sm:$0xf]
    %v3516 = vld [vmem:[%s3513 + $0x8] sm:$0xf]
    %v3517 = vld [vmem:[%s3513 + $0xc] sm:$0xf]
    %v3518 = vpack.c.bf16 %v3509, %v3508
    %v3519 = vpack.c.bf16 %v3511, %v3510
    %v3520 = vpack.c.bf16 %v3512, %v3512
    %s3521 = scalar_lea.vmem [#allocation47], 2
    %v3522 = vld [vmem:[%s3521] sm:$0x1]
    %v3524 = vlaneseq
    %v3525 = vshrl.u32 %v3524, 7
    %v3526 = vsub.s32 0, %v3525
    %v3527 = vrot.slane %v3522, %v3526
    %v3533 = vunpack.c.l.b16 %v3514
    %v3534 = vunpack.c.l.b16 %v3515
    %v3535 = vunpack.c.l.b16 %v3516
    %v3536 = vunpack.c.l.b16 %v3517
    %v3537 = vpack.c.b16 %v3534, %v3533
    %v3538 = vpack.c.b16 %v3536, %v3535
    %v3542 = vsel %vm704, %v3518, 0
    %v3545 = vsel %vm704, %v3519, 0
    %v3548 = vsel %vm704, %v3520, 0
    %3550 = vmatprep.subr.bf16.mxu0 0
    %3551 = vmatpush1.bf16.msra.mxu0 %v3537
    %3552 = vmatprep.subr.bf16.mxu0 0
    %3553 = vmatpush1.bf16.msra.mxu0 %v3538
    %3554 = vmatprep.subr.bf16.mxu0 0
    %3555 = vmatpush1.bf16.msra.mxu0 0
    %3556 = vmatprep.subr.bf16.mxu0 0
    %3557 = vmatpush1.bf16.msra.mxu0 0
    %3558 = vmatprep.subr.bf16.mxu0 0
    %3559 = vmatpush1.bf16.msra.mxu0 0
    %3560 = vmatprep.subr.bf16.mxu0 0
    %3561 = vmatpush1.bf16.msra.mxu0 0
    %3562 = vmatprep.subr.bf16.mxu0 0
    %3563 = vmatpush1.bf16.msra.mxu0 0
    %3564 = vmatprep.subr.bf16.mxu0 0
    %3565 = vmatpush1.bf16.msra.mxu0 0
    %3566 = vmatprep.subr.bf16.mxu0 0
    %3567 = vmatpush1.bf16.msra.mxu0 0
    %3568 = vmatprep.subr.bf16.mxu0 0
    %3569 = vmatpush1.bf16.msra.mxu0 0
    %3570 = vmatprep.subr.bf16.mxu0 0
    %3571 = vmatpush1.bf16.msra.mxu0 0
    %3572 = vmatprep.subr.bf16.mxu0 0
    %3573 = vmatpush1.bf16.msra.mxu0 0
    %3574 = vmatprep.subr.bf16.mxu0 0
    %3575 = vmatpush1.bf16.msra.mxu0 0
    %3576 = vmatprep.subr.bf16.mxu0 0
    %3577 = vmatpush1.bf16.msra.mxu0 0
    %3578 = vmatprep.subr.bf16.mxu0 0
    %3579 = vmatpush1.bf16.msra.mxu0 0
    %3580 = vmatprep.subr.bf16.mxu0 0
    %3581 = vmatpush1.bf16.msra.mxu0 0
    %3582 = vmatprep.mubr.bf16.mxu0 0
    %3583 = vmatmul.mubr.bf16.gmra.mrb[0].mxu0 %v3542
    %v3584 = vpop.f32.mrb[0].mxu0
    %v3585 = vadd.f32 %v3527, %v3584
    %v3586 = vpop.f32.mrb[0].mxu0
    %v3587 = vpop.f32.mrb[0].mxu0
    %v3588 = vadd.f32 %v3527, %v3587
    %v3589 = vpop.f32.mrb[0].mxu0
    %3590 = vmatprep.mubr.bf16.mxu0 0
    %3591 = vmatmul.mubr.bf16.gmra.mrb[0].mxu0 %v3545
    %v3592 = vpop.f32.mrb[0].mxu0
    %v3593 = vadd.f32 %v3527, %v3592
    %v3594 = vpop.f32.mrb[0].mxu0
    %v3595 = vpop.f32.mrb[0].mxu0
    %v3596 = vadd.f32 %v3527, %v3595
    %v3597 = vpop.f32.mrb[0].mxu0
    %3598 = vmatprep.mubr.bf16.mxu0 0
    %3599 = vmatmul.mubr.bf16.gmra.mrb[0].mxu0 %v3548
    %v3600 = vpop.f32.mrb[0].mxu0
    %v3601 = vadd.f32 %v3527, %v3600
    %v3602 = vpop.f32.mrb[0].mxu0
    %v3603 = vpop.f32.mrb[0].mxu0
    %v3604 = vpop.f32.mrb[0].mxu0
    %3605 = vdwg.mxu0
    %v3606 = vmax.f32 %v3585, 0.0
    %v3607 = vmax.f32 %v3588, 0.0
    %v3608 = vmax.f32 %v3593, 0.0
    %v3609 = vmax.f32 %v3596, 0.0
    %v3610 = vmax.f32 %v3601, 0.0
    %s3611 = scalar_lea.vmem [#allocation49], 32
    %v3612 = vld [vmem:[%s3611] sm:$0xf]
    %v3613 = vld [vmem:[%s3611 + $0x4] sm:$0xf]
    %v3614 = vld [vmem:[%s3611 + $0x8] sm:$0xf]
    %v3615 = vld [vmem:[%s3611 + $0xc] sm:$0xf]
    %v3616 = vpack.c.bf16 %v3607, %v3606
    %v3617 = vpack.c.bf16 %v3609, %v3608
    %v3618 = vpack.c.bf16 %v3610, %v3610
    %s3619 = scalar_lea.vmem [#allocation50], 2
    %v3620 = vld [vmem:[%s3619] sm:$0x1]
    %v3622 = vlaneseq
    %v3623 = vshrl.u32 %v3622, 7
    %v3624 = vsub.s32 0, %v3623
    %v3625 = vrot.slane %v3620, %v3624
    %v3631 = vunpack.c.l.b16 %v3612
    %v3632 = vunpack.c.l.b16 %v3613
    %v3633 = vunpack.c.l.b16 %v3614
    %v3634 = vunpack.c.l.b16 %v3615
    %v3635 = vpack.c.b16 %v3632, %v3631
    %v3636 = vpack.c.b16 %v3634, %v3633
    %v3640 = vsel %vm704, %v3616, 0
    %v3643 = vsel %vm704, %v3617, 0
    %v3646 = vsel %vm704, %v3618, 0
    %3648 = vmatprep.subr.bf16.mxu0 0
    %3649 = vmatpush1.bf16.msra.mxu0 %v3635
    %3650 = vmatprep.subr.bf16.mxu0 0
    %3651 = vmatpush1.bf16.msra.mxu0 %v3636
    %3652 = vmatprep.subr.bf16.mxu0 0
    %3653 = vmatpush1.bf16.msra.mxu0 0
    %3654 = vmatprep.subr.bf16.mxu0 0
    %3655 = vmatpush1.bf16.msra.mxu0 0
    %3656 = vmatprep.subr.bf16.mxu0 0
    %3657 = vmatpush1.bf16.msra.mxu0 0
    %3658 = vmatprep.subr.bf16.mxu0 0
    %3659 = vmatpush1.bf16.msra.mxu0 0
    %3660 = vmatprep.subr.bf16.mxu0 0
    %3661 = vmatpush1.bf16.msra.mxu0 0
    %3662 = vmatprep.subr.bf16.mxu0 0
    %3663 = vmatpush1.bf16.msra.mxu0 0
    %3664 = vmatprep.subr.bf16.mxu0 0
    %3665 = vmatpush1.bf16.msra.mxu0 0
    %3666 = vmatprep.subr.bf16.mxu0 0
    %3667 = vmatpush1.bf16.msra.mxu0 0
    %3668 = vmatprep.subr.bf16.mxu0 0
    %3669 = vmatpush1.bf16.msra.mxu0 0
    %3670 = vmatprep.subr.bf16.mxu0 0
    %3671 = vmatpush1.bf16.msra.mxu0 0
    %3672 = vmatprep.subr.bf16.mxu0 0
    %3673 = vmatpush1.bf16.msra.mxu0 0
    %3674 = vmatprep.subr.bf16.mxu0 0
    %3675 = vmatpush1.bf16.msra.mxu0 0
    %3676 = vmatprep.subr.bf16.mxu0 0
    %3677 = vmatpush1.bf16.msra.mxu0 0
    %3678 = vmatprep.subr.bf16.mxu0 0
    %3679 = vmatpush1.bf16.msra.mxu0 0
    %3680 = vmatprep.mubr.bf16.mxu0 0
    %3681 = vmatmul.mubr.bf16.gmra.mrb[0].mxu0 %v3640
    %v3682 = vpop.f32.mrb[0].mxu0
    %v3683 = vadd.f32 %v3625, %v3682
    %v3684 = vpop.f32.mrb[0].mxu0
    %v3685 = vpop.f32.mrb[0].mxu0
    %v3686 = vadd.f32 %v3625, %v3685
    %v3687 = vpop.f32.mrb[0].mxu0
    %3688 = vmatprep.mubr.bf16.mxu0 0
    %3689 = vmatmul.mubr.bf16.gmra.mrb[0].mxu0 %v3643
    %v3690 = vpop.f32.mrb[0].mxu0
    %v3691 = vadd.f32 %v3625, %v3690
    %v3692 = vpop.f32.mrb[0].mxu0
    %v3693 = vpop.f32.mrb[0].mxu0
    %v3694 = vadd.f32 %v3625, %v3693
    %v3695 = vpop.f32.mrb[0].mxu0
    %3696 = vmatprep.mubr.bf16.mxu0 0
    %3697 = vmatmul.mubr.bf16.gmra.mrb[0].mxu0 %v3646
    %v3698 = vpop.f32.mrb[0].mxu0
    %v3699 = vadd.f32 %v3625, %v3698
    %v3700 = vpop.f32.mrb[0].mxu0
    %v3701 = vpop.f32.mrb[0].mxu0
    %v3702 = vpop.f32.mrb[0].mxu0
    %3703 = vdwg.mxu0
    %v3704 = vmax.f32 %v3683, 0.0
    %v3705 = vmax.f32 %v3686, 0.0
    %v3706 = vmax.f32 %v3691, 0.0
    %v3707 = vmax.f32 %v3694, 0.0
    %v3708 = vmax.f32 %v3699, 0.0
    %v3709 = vadd.f32 %v3508, %v3704
    %v3710 = vadd.f32 %v3509, %v3705
    %v3711 = vadd.f32 %v3510, %v3706
    %v3712 = vadd.f32 %v3511, %v3707
    %v3713 = vadd.f32 %v3512, %v3708
    %3714 = vst.msk [vmem:[%s91] sm:$0xff] %vm704, %v3709
    %3715 = vst.msk [vmem:[%s91 + $0x8] sm:$0xff] %vm704, %v3710
    %3716 = vst.msk [vmem:[%s91 + $0x10] sm:$0xff] %vm704, %v3711
    %3717 = vst.msk [vmem:[%s91 + $0x18] sm:$0xff] %vm704, %v3712
    %3718 = vst.msk [vmem:[%s91 + $0x20] sm:$0xff] %vm704, %v3713
    %v3719 = vld [vmem:[#allocation52] sm:$0xf]
    %v3720 = vld [vmem:[#allocation52 + $0x4] sm:$0xf]
    %v3721 = vld [vmem:[#allocation52 + $0x8] sm:$0xf]
    %v3722 = vld [vmem:[#allocation52 + $0xc] sm:$0xf]
    %v3723 = vpack.c.bf16 %v1714, %v1713
    %v3724 = vpack.c.bf16 %v1715, %v1715
    %v3725 = vld [vmem:[#allocation53] sm:$0x1]
    %v3727 = vlaneseq
    %v3728 = vshrl.u32 %v3727, 7
    %v3729 = vsub.s32 0, %v3728
    %v3730 = vrot.slane %v3725, %v3729
    %v3736 = vunpack.c.l.b16 %v3719
    %v3737 = vunpack.c.l.b16 %v3720
    %v3738 = vunpack.c.l.b16 %v3721
    %v3739 = vunpack.c.l.b16 %v3722
    %v3740 = vpack.c.b16 %v3737, %v3736
    %v3741 = vpack.c.b16 %v3739, %v3738
    %v3745 = vsel %vm704, %v3723, 0
    %v3748 = vsel %vm704, %v3724, 0
    %3750 = vmatprep.subr.bf16.mxu0 0
    %3751 = vmatpush1.bf16.msra.mxu0 %v3740
    %3752 = vmatprep.subr.bf16.mxu0 0
    %3753 = vmatpush1.bf16.msra.mxu0 %v3741
    %3754 = vmatprep.subr.bf16.mxu0 0
    %3755 = vmatpush1.bf16.msra.mxu0 0
    %3756 = vmatprep.subr.bf16.mxu0 0
    %3757 = vmatpush1.bf16.msra.mxu0 0
    %3758 = vmatprep.subr.bf16.mxu0 0
    %3759 = vmatpush1.bf16.msra.mxu0 0
    %3760 = vmatprep.subr.bf16.mxu0 0
    %3761 = vmatpush1.bf16.msra.mxu0 0
    %3762 = vmatprep.subr.bf16.mxu0 0
    %3763 = vmatpush1.bf16.msra.mxu0 0
    %3764 = vmatprep.subr.bf16.mxu0 0
    %3765 = vmatpush1.bf16.msra.mxu0 0
    %3766 = vmatprep.subr.bf16.mxu0 0
    %3767 = vmatpush1.bf16.msra.mxu0 0
    %3768 = vmatprep.subr.bf16.mxu0 0
    %3769 = vmatpush1.bf16.msra.mxu0 0
    %3770 = vmatprep.subr.bf16.mxu0 0
    %3771 = vmatpush1.bf16.msra.mxu0 0
    %3772 = vmatprep.subr.bf16.mxu0 0
    %3773 = vmatpush1.bf16.msra.mxu0 0
    %3774 = vmatprep.subr.bf16.mxu0 0
    %3775 = vmatpush1.bf16.msra.mxu0 0
    %3776 = vmatprep.subr.bf16.mxu0 0
    %3777 = vmatpush1.bf16.msra.mxu0 0
    %3778 = vmatprep.subr.bf16.mxu0 0
    %3779 = vmatpush1.bf16.msra.mxu0 0
    %3780 = vmatprep.subr.bf16.mxu0 0
    %3781 = vmatpush1.bf16.msra.mxu0 0
    %3782 = vmatprep.mubr.bf16.mxu0 0
    %3783 = vmatmul.mubr.bf16.gmra.mrb[0].mxu0 %v3745
    %v3784 = vpop.f32.mrb[0].mxu0
    %v3785 = vadd.f32 %v3730, %v3784
    %v3786 = vpop.f32.mrb[0].mxu0
    %v3787 = vpop.f32.mrb[0].mxu0
    %v3788 = vadd.f32 %v3730, %v3787
    %v3789 = vpop.f32.mrb[0].mxu0
    %3790 = vmatprep.mubr.bf16.mxu0 0
    %3791 = vmatmul.mubr.bf16.gmra.mrb[0].mxu0 %v3748
    %v3792 = vpop.f32.mrb[0].mxu0
    %v3793 = vadd.f32 %v3730, %v3792
    %v3794 = vpop.f32.mrb[0].mxu0
    %v3795 = vpop.f32.mrb[0].mxu0
    %v3796 = vpop.f32.mrb[0].mxu0
    %3797 = vdwg.mxu0
    %v3798 = vld [vmem:[#allocation55] sm:$0xf]
    %v3799 = vld [vmem:[#allocation55 + $0x4] sm:$0xf]
    %v3800 = vld [vmem:[#allocation55 + $0x8] sm:$0xf]
    %v3801 = vld [vmem:[#allocation55 + $0xc] sm:$0xf]
    %v3802 = vpack.c.bf16 %v3788, %v3785
    %v3803 = vpack.c.bf16 %v3793, %v3793
    %v3804 = vld [vmem:[#allocation56] sm:$0x1]
    %v3806 = vlaneseq
    %v3807 = vshrl.u32 %v3806, 7
    %v3808 = vsub.s32 0, %v3807
    %v3809 = vrot.slane %v3804, %v3808
    %v3815 = vunpack.c.l.b16 %v3798
    %v3816 = vunpack.c.l.b16 %v3799
    %v3817 = vunpack.c.l.b16 %v3800
    %v3818 = vunpack.c.l.b16 %v3801
    %v3819 = vpack.c.b16 %v3816, %v3815
    %v3820 = vpack.c.b16 %v3818, %v3817
    %v3824 = vsel %vm704, %v3802, 0
    %v3827 = vsel %vm704, %v3803, 0
    %3829 = vmatprep.subr.bf16.mxu0 0
    %3830 = vmatpush1.bf16.msra.mxu0 %v3819
    %3831 = vmatprep.subr.bf16.mxu0 0
    %3832 = vmatpush1.bf16.msra.mxu0 %v3820
    %3833 = vmatprep.subr.bf16.mxu0 0
    %3834 = vmatpush1.bf16.msra.mxu0 0
    %3835 = vmatprep.subr.bf16.mxu0 0
    %3836 = vmatpush1.bf16.msra.mxu0 0
    %3837 = vmatprep.subr.bf16.mxu0 0
    %3838 = vmatpush1.bf16.msra.mxu0 0
    %3839 = vmatprep.subr.bf16.mxu0 0
    %3840 = vmatpush1.bf16.msra.mxu0 0
    %3841 = vmatprep.subr.bf16.mxu0 0
    %3842 = vmatpush1.bf16.msra.mxu0 0
    %3843 = vmatprep.subr.bf16.mxu0 0
    %3844 = vmatpush1.bf16.msra.mxu0 0
    %3845 = vmatprep.subr.bf16.mxu0 0
    %3846 = vmatpush1.bf16.msra.mxu0 0
    %3847 = vmatprep.subr.bf16.mxu0 0
    %3848 = vmatpush1.bf16.msra.mxu0 0
    %3849 = vmatprep.subr.bf16.mxu0 0
    %3850 = vmatpush1.bf16.msra.mxu0 0
    %3851 = vmatprep.subr.bf16.mxu0 0
    %3852 = vmatpush1.bf16.msra.mxu0 0
    %3853 = vmatprep.subr.bf16.mxu0 0
    %3854 = vmatpush1.bf16.msra.mxu0 0
    %3855 = vmatprep.subr.bf16.mxu0 0
    %3856 = vmatpush1.bf16.msra.mxu0 0
    %3857 = vmatprep.subr.bf16.mxu0 0
    %3858 = vmatpush1.bf16.msra.mxu0 0
    %3859 = vmatprep.subr.bf16.mxu0 0
    %3860 = vmatpush1.bf16.msra.mxu0 0
    %3861 = vmatprep.mubr.bf16.mxu0 0
    %3862 = vmatmul.mubr.bf16.gmra.mrb[0].mxu0 %v3824
    %v3863 = vpop.f32.mrb[0].mxu0
    %v3864 = vadd.f32 %v3809, %v3863
    %v3865 = vpop.f32.mrb[0].mxu0
    %v3866 = vpop.f32.mrb[0].mxu0
    %v3867 = vadd.f32 %v3809, %v3866
    %v3868 = vpop.f32.mrb[0].mxu0
    %3869 = vmatprep.mubr.bf16.mxu0 0
    %3870 = vmatmul.mubr.bf16.gmra.mrb[0].mxu0 %v3827
    %v3871 = vpop.f32.mrb[0].mxu0
    %v3872 = vadd.f32 %v3809, %v3871
    %v3873 = vpop.f32.mrb[0].mxu0
    %v3874 = vpop.f32.mrb[0].mxu0
    %v3875 = vpop.f32.mrb[0].mxu0
    %3876 = vdwg.mxu0
    %v3877 = vmax.f32 %v3864, 0.0
    %v3878 = vmax.f32 %v3867, 0.0
    %v3879 = vmax.f32 %v3872, 0.0
    %v3880 = vld [vmem:[%s79] sm:$0xf]
    %v3881 = vld [vmem:[%s79 + $0x4] sm:$0xf]
    %v3882 = vld [vmem:[%s79 + $0x8] sm:$0xf]
    %v3883 = vld [vmem:[%s79 + $0xc] sm:$0xf]
    %v3884 = vpack.c.bf16 %v3878, %v3877
    %v3885 = vpack.c.bf16 %v3879, %v3879
    %v3886 = vld [vmem:[%s81] sm:$0x1]
    %v3888 = vlaneseq
    %v3889 = vshrl.u32 %v3888, 7
    %v3890 = vsub.s32 0, %v3889
    %v3891 = vrot.slane %v3886, %v3890
    %v3897 = vunpack.c.l.b16 %v3880
    %v3898 = vunpack.c.l.b16 %v3881
    %v3899 = vunpack.c.l.b16 %v3882
    %v3900 = vunpack.c.l.b16 %v3883
    %v3901 = vpack.c.b16 %v3898, %v3897
    %v3902 = vpack.c.b16 %v3900, %v3899
    %v3906 = vsel %vm704, %v3884, 0
    %v3909 = vsel %vm704, %v3885, 0
    %3911 = vmatprep.subr.bf16.mxu0 0
    %3912 = vmatpush1.bf16.msra.mxu0 %v3901
    %3913 = vmatprep.subr.bf16.mxu0 0
    %3914 = vmatpush1.bf16.msra.mxu0 %v3902
    %3915 = vmatprep.subr.bf16.mxu0 0
    %3916 = vmatpush1.bf16.msra.mxu0 0
    %3917 = vmatprep.subr.bf16.mxu0 0
    %3918 = vmatpush1.bf16.msra.mxu0 0
    %3919 = vmatprep.subr.bf16.mxu0 0
    %3920 = vmatpush1.bf16.msra.mxu0 0
    %3921 = vmatprep.subr.bf16.mxu0 0
    %3922 = vmatpush1.bf16.msra.mxu0 0
    %3923 = vmatprep.subr.bf16.mxu0 0
    %3924 = vmatpush1.bf16.msra.mxu0 0
    %3925 = vmatprep.subr.bf16.mxu0 0
    %3926 = vmatpush1.bf16.msra.mxu0 0
    %3927 = vmatprep.subr.bf16.mxu0 0
    %3928 = vmatpush1.bf16.msra.mxu0 0
    %3929 = vmatprep.subr.bf16.mxu0 0
    %3930 = vmatpush1.bf16.msra.mxu0 0
    %3931 = vmatprep.subr.bf16.mxu0 0
    %3932 = vmatpush1.bf16.msra.mxu0 0
    %3933 = vmatprep.subr.bf16.mxu0 0
    %3934 = vmatpush1.bf16.msra.mxu0 0
    %3935 = vmatprep.subr.bf16.mxu0 0
    %3936 = vmatpush1.bf16.msra.mxu0 0
    %3937 = vmatprep.subr.bf16.mxu0 0
    %3938 = vmatpush1.bf16.msra.mxu0 0
    %3939 = vmatprep.subr.bf16.mxu0 0
    %3940 = vmatpush1.bf16.msra.mxu0 0
    %3941 = vmatprep.subr.bf16.mxu0 0
    %3942 = vmatpush1.bf16.msra.mxu0 0
    %3943 = vmatprep.mubr.bf16.mxu0 0
    %3944 = vmatmul.mubr.bf16.gmra.mrb[0].mxu0 %v3906
    %v3945 = vpop.f32.mrb[0].mxu0
    %v3946 = vadd.f32 %v3891, %v3945
    %v3947 = vpop.f32.mrb[0].mxu0
    %v3948 = vpop.f32.mrb[0].mxu0
    %v3949 = vadd.f32 %v3891, %v3948
    %v3950 = vpop.f32.mrb[0].mxu0
    %3951 = vmatprep.mubr.bf16.mxu0 0
    %3952 = vmatmul.mubr.bf16.gmra.mrb[0].mxu0 %v3909
    %v3953 = vpop.f32.mrb[0].mxu0
    %v3954 = vadd.f32 %v3891, %v3953
    %v3955 = vpop.f32.mrb[0].mxu0
    %v3956 = vpop.f32.mrb[0].mxu0
    %v3957 = vpop.f32.mrb[0].mxu0
    %3958 = vdwg.mxu0
    %v3959 = vmax.f32 %v3946, 0.0
    %v3960 = vmax.f32 %v3949, 0.0
    %v3961 = vmax.f32 %v3954, 0.0
    %v3962 = vadd.f32 %v3785, %v3959
    %v3963 = vadd.f32 %v3788, %v3960
    %v3964 = vadd.f32 %v3793, %v3961
    %s3965 = scalar_lea.vmem [#allocation55], 16
    %v3966 = vld [vmem:[%s3965] sm:$0xf]
    %v3967 = vld [vmem:[%s3965 + $0x4] sm:$0xf]
    %v3968 = vld [vmem:[%s3965 + $0x8] sm:$0xf]
    %v3969 = vld [vmem:[%s3965 + $0xc] sm:$0xf]
    %v3970 = vpack.c.bf16 %v3963, %v3962
    %v3971 = vpack.c.bf16 %v3964, %v3964
    %s3972 = scalar_lea.vmem [#allocation56], 1
    %v3973 = vld [vmem:[%s3972] sm:$0x1]
    %v3975 = vlaneseq
    %v3976 = vshrl.u32 %v3975, 7
    %v3977 = vsub.s32 0, %v3976
    %v3978 = vrot.slane %v3973, %v3977
    %v3984 = vunpack.c.l.b16 %v3966
    %v3985 = vunpack.c.l.b16 %v3967
    %v3986 = vunpack.c.l.b16 %v3968
    %v3987 = vunpack.c.l.b16 %v3969
    %v3988 = vpack.c.b16 %v3985, %v3984
    %v3989 = vpack.c.b16 %v3987, %v3986
    %v3993 = vsel %vm704, %v3970, 0
    %v3996 = vsel %vm704, %v3971, 0
    %3998 = vmatprep.subr.bf16.mxu0 0
    %3999 = vmatpush1.bf16.msra.mxu0 %v3988
    %4000 = vmatprep.subr.bf16.mxu0 0
    %4001 = vmatpush1.bf16.msra.mxu0 %v3989
    %4002 = vmatprep.subr.bf16.mxu0 0
    %4003 = vmatpush1.bf16.msra.mxu0 0
    %4004 = vmatprep.subr.bf16.mxu0 0
    %4005 = vmatpush1.bf16.msra.mxu0 0
    %4006 = vmatprep.subr.bf16.mxu0 0
    %4007 = vmatpush1.bf16.msra.mxu0 0
    %4008 = vmatprep.subr.bf16.mxu0 0
    %4009 = vmatpush1.bf16.msra.mxu0 0
    %4010 = vmatprep.subr.bf16.mxu0 0
    %4011 = vmatpush1.bf16.msra.mxu0 0
    %4012 = vmatprep.subr.bf16.mxu0 0
    %4013 = vmatpush1.bf16.msra.mxu0 0
    %4014 = vmatprep.subr.bf16.mxu0 0
    %4015 = vmatpush1.bf16.msra.mxu0 0
    %4016 = vmatprep.subr.bf16.mxu0 0
    %4017 = vmatpush1.bf16.msra.mxu0 0
    %4018 = vmatprep.subr.bf16.mxu0 0
    %4019 = vmatpush1.bf16.msra.mxu0 0
    %4020 = vmatprep.subr.bf16.mxu0 0
    %4021 = vmatpush1.bf16.msra.mxu0 0
    %4022 = vmatprep.subr.bf16.mxu0 0
    %4023 = vmatpush1.bf16.msra.mxu0 0
    %4024 = vmatprep.subr.bf16.mxu0 0
    %4025 = vmatpush1.bf16.msra.mxu0 0
    %4026 = vmatprep.subr.bf16.mxu0 0
    %4027 = vmatpush1.bf16.msra.mxu0 0
    %4028 = vmatprep.subr.bf16.mxu0 0
    %4029 = vmatpush1.bf16.msra.mxu0 0
    %4030 = vmatprep.mubr.bf16.mxu0 0
    %4031 = vmatmul.mubr.bf16.gmra.mrb[0].mxu0 %v3993
    %v4032 = vpop.f32.mrb[0].mxu0
    %v4033 = vadd.f32 %v3978, %v4032
    %v4034 = vpop.f32.mrb[0].mxu0
    %v4035 = vpop.f32.mrb[0].mxu0
    %v4036 = vadd.f32 %v3978, %v4035
    %v4037 = vpop.f32.mrb[0].mxu0
    %4038 = vmatprep.mubr.bf16.mxu0 0
    %4039 = vmatmul.mubr.bf16.gmra.mrb[0].mxu0 %v3996
    %v4040 = vpop.f32.mrb[0].mxu0
    %v4041 = vadd.f32 %v3978, %v4040
    %v4042 = vpop.f32.mrb[0].mxu0
    %v4043 = vpop.f32.mrb[0].mxu0
    %v4044 = vpop.f32.mrb[0].mxu0
    %4045 = vdwg.mxu0
    %v4046 = vmax.f32 %v4033, 0.0
    %v4047 = vmax.f32 %v4036, 0.0
    %v4048 = vmax.f32 %v4041, 0.0
    %s4049 = scalar_lea.vmem %s79, 16
    %v4050 = vld [vmem:[%s4049] sm:$0xf]
    %v4051 = vld [vmem:[%s4049 + $0x4] sm:$0xf]
    %v4052 = vld [vmem:[%s4049 + $0x8] sm:$0xf]
    %v4053 = vld [vmem:[%s4049 + $0xc] sm:$0xf]
    %v4054 = vpack.c.bf16 %v4047, %v4046
    %v4055 = vpack.c.bf16 %v4048, %v4048
    %s4056 = scalar_lea.vmem %s81, 1
    %v4057 = vld [vmem:[%s4056] sm:$0x1]
    %v4059 = vlaneseq
    %v4060 = vshrl.u32 %v4059, 7
    %v4061 = vsub.s32 0, %v4060
    %v4062 = vrot.slane %v4057, %v4061
    %v4068 = vunpack.c.l.b16 %v4050
    %v4069 = vunpack.c.l.b16 %v4051
    %v4070 = vunpack.c.l.b16 %v4052
    %v4071 = vunpack.c.l.b16 %v4053
    %v4072 = vpack.c.b16 %v4069, %v4068
    %v4073 = vpack.c.b16 %v4071, %v4070
    %v4077 = vsel %vm704, %v4054, 0
    %v4080 = vsel %vm704, %v4055, 0
    %4082 = vmatprep.subr.bf16.mxu0 0
    %4083 = vmatpush1.bf16.msra.mxu0 %v4072
    %4084 = vmatprep.subr.bf16.mxu0 0
    %4085 = vmatpush1.bf16.msra.mxu0 %v4073
    %4086 = vmatprep.subr.bf16.mxu0 0
    %4087 = vmatpush1.bf16.msra.mxu0 0
    %4088 = vmatprep.subr.bf16.mxu0 0
    %4089 = vmatpush1.bf16.msra.mxu0 0
    %4090 = vmatprep.subr.bf16.mxu0 0
    %4091 = vmatpush1.bf16.msra.mxu0 0
    %4092 = vmatprep.subr.bf16.mxu0 0
    %4093 = vmatpush1.bf16.msra.mxu0 0
    %4094 = vmatprep.subr.bf16.mxu0 0
    %4095 = vmatpush1.bf16.msra.mxu0 0
    %4096 = vmatprep.subr.bf16.mxu0 0
    %4097 = vmatpush1.bf16.msra.mxu0 0
    %4098 = vmatprep.subr.bf16.mxu0 0
    %4099 = vmatpush1.bf16.msra.mxu0 0
    %4100 = vmatprep.subr.bf16.mxu0 0
    %4101 = vmatpush1.bf16.msra.mxu0 0
    %4102 = vmatprep.subr.bf16.mxu0 0
    %4103 = vmatpush1.bf16.msra.mxu0 0
    %4104 = vmatprep.subr.bf16.mxu0 0
    %4105 = vmatpush1.bf16.msra.mxu0 0
    %4106 = vmatprep.subr.bf16.mxu0 0
    %4107 = vmatpush1.bf16.msra.mxu0 0
    %4108 = vmatprep.subr.bf16.mxu0 0
    %4109 = vmatpush1.bf16.msra.mxu0 0
    %4110 = vmatprep.subr.bf16.mxu0 0
    %4111 = vmatpush1.bf16.msra.mxu0 0
    %4112 = vmatprep.subr.bf16.mxu0 0
    %4113 = vmatpush1.bf16.msra.mxu0 0
    %4114 = vmatprep.mubr.bf16.mxu0 0
    %4115 = vmatmul.mubr.bf16.gmra.mrb[0].mxu0 %v4077
    %v4116 = vpop.f32.mrb[0].mxu0
    %v4117 = vadd.f32 %v4062, %v4116
    %v4118 = vpop.f32.mrb[0].mxu0
    %v4119 = vpop.f32.mrb[0].mxu0
    %v4120 = vadd.f32 %v4062, %v4119
    %v4121 = vpop.f32.mrb[0].mxu0
    %4122 = vmatprep.mubr.bf16.mxu0 0
    %4123 = vmatmul.mubr.bf16.gmra.mrb[0].mxu0 %v4080
    %v4124 = vpop.f32.mrb[0].mxu0
    %v4125 = vadd.f32 %v4062, %v4124
    %v4126 = vpop.f32.mrb[0].mxu0
    %v4127 = vpop.f32.mrb[0].mxu0
    %v4128 = vpop.f32.mrb[0].mxu0
    %4129 = vdwg.mxu0
    %v4130 = vmax.f32 %v4117, 0.0
    %v4131 = vmax.f32 %v4120, 0.0
    %v4132 = vmax.f32 %v4125, 0.0
    %v4133 = vadd.f32 %v3962, %v4130
    %v4134 = vadd.f32 %v3963, %v4131
    %v4135 = vadd.f32 %v3964, %v4132
    %s4136 = scalar_lea.vmem [#allocation55], 32
    %v4137 = vld [vmem:[%s4136] sm:$0xf]
    %v4138 = vld [vmem:[%s4136 + $0x4] sm:$0xf]
    %v4139 = vld [vmem:[%s4136 + $0x8] sm:$0xf]
    %v4140 = vld [vmem:[%s4136 + $0xc] sm:$0xf]
    %v4141 = vpack.c.bf16 %v4134, %v4133
    %v4142 = vpack.c.bf16 %v4135, %v4135
    %s4143 = scalar_lea.vmem [#allocation56], 2
    %v4144 = vld [vmem:[%s4143] sm:$0x1]
    %v4146 = vlaneseq
    %v4147 = vshrl.u32 %v4146, 7
    %v4148 = vsub.s32 0, %v4147
    %v4149 = vrot.slane %v4144, %v4148
    %v4155 = vunpack.c.l.b16 %v4137
    %v4156 = vunpack.c.l.b16 %v4138
    %v4157 = vunpack.c.l.b16 %v4139
    %v4158 = vunpack.c.l.b16 %v4140
    %v4159 = vpack.c.b16 %v4156, %v4155
    %v4160 = vpack.c.b16 %v4158, %v4157
    %v4164 = vsel %vm704, %v4141, 0
    %v4167 = vsel %vm704, %v4142, 0
    %4169 = vmatprep.subr.bf16.mxu0 0
    %4170 = vmatpush1.bf16.msra.mxu0 %v4159
    %4171 = vmatprep.subr.bf16.mxu0 0
    %4172 = vmatpush1.bf16.msra.mxu0 %v4160
    %4173 = vmatprep.subr.bf16.mxu0 0
    %4174 = vmatpush1.bf16.msra.mxu0 0
    %4175 = vmatprep.subr.bf16.mxu0 0
    %4176 = vmatpush1.bf16.msra.mxu0 0
    %4177 = vmatprep.subr.bf16.mxu0 0
    %4178 = vmatpush1.bf16.msra.mxu0 0
    %4179 = vmatprep.subr.bf16.mxu0 0
    %4180 = vmatpush1.bf16.msra.mxu0 0
    %4181 = vmatprep.subr.bf16.mxu0 0
    %4182 = vmatpush1.bf16.msra.mxu0 0
    %4183 = vmatprep.subr.bf16.mxu0 0
    %4184 = vmatpush1.bf16.msra.mxu0 0
    %4185 = vmatprep.subr.bf16.mxu0 0
    %4186 = vmatpush1.bf16.msra.mxu0 0
    %4187 = vmatprep.subr.bf16.mxu0 0
    %4188 = vmatpush1.bf16.msra.mxu0 0
    %4189 = vmatprep.subr.bf16.mxu0 0
    %4190 = vmatpush1.bf16.msra.mxu0 0
    %4191 = vmatprep.subr.bf16.mxu0 0
    %4192 = vmatpush1.bf16.msra.mxu0 0
    %4193 = vmatprep.subr.bf16.mxu0 0
    %4194 = vmatpush1.bf16.msra.mxu0 0
    %4195 = vmatprep.subr.bf16.mxu0 0
    %4196 = vmatpush1.bf16.msra.mxu0 0
    %4197 = vmatprep.subr.bf16.mxu0 0
    %4198 = vmatpush1.bf16.msra.mxu0 0
    %4199 = vmatprep.subr.bf16.mxu0 0
    %4200 = vmatpush1.bf16.msra.mxu0 0
    %4201 = vmatprep.mubr.bf16.mxu0 0
    %4202 = vmatmul.mubr.bf16.gmra.mrb[0].mxu0 %v4164
    %v4203 = vpop.f32.mrb[0].mxu0
    %v4204 = vadd.f32 %v4149, %v4203
    %v4205 = vpop.f32.mrb[0].mxu0
    %v4206 = vpop.f32.mrb[0].mxu0
    %v4207 = vadd.f32 %v4149, %v4206
    %v4208 = vpop.f32.mrb[0].mxu0
    %4209 = vmatprep.mubr.bf16.mxu0 0
    %4210 = vmatmul.mubr.bf16.gmra.mrb[0].mxu0 %v4167
    %v4211 = vpop.f32.mrb[0].mxu0
    %v4212 = vadd.f32 %v4149, %v4211
    %v4213 = vpop.f32.mrb[0].mxu0
    %v4214 = vpop.f32.mrb[0].mxu0
    %v4215 = vpop.f32.mrb[0].mxu0
    %4216 = vdwg.mxu0
    %v4217 = vmax.f32 %v4204, 0.0
    %v4218 = vmax.f32 %v4207, 0.0
    %v4219 = vmax.f32 %v4212, 0.0
    %s4220 = scalar_lea.vmem %s79, 32
    %v4221 = vld [vmem:[%s4220] sm:$0xf]
    %v4222 = vld [vmem:[%s4220 + $0x4] sm:$0xf]
    %v4223 = vld [vmem:[%s4220 + $0x8] sm:$0xf]
    %v4224 = vld [vmem:[%s4220 + $0xc] sm:$0xf]
    %v4225 = vpack.c.bf16 %v4218, %v4217
    %v4226 = vpack.c.bf16 %v4219, %v4219
    %s4227 = scalar_lea.vmem %s81, 2
    %v4228 = vld [vmem:[%s4227] sm:$0x1]
    %v4230 = vlaneseq
    %v4231 = vshrl.u32 %v4230, 7
    %v4232 = vsub.s32 0, %v4231
    %v4233 = vrot.slane %v4228, %v4232
    %v4239 = vunpack.c.l.b16 %v4221
    %v4240 = vunpack.c.l.b16 %v4222
    %v4241 = vunpack.c.l.b16 %v4223
    %v4242 = vunpack.c.l.b16 %v4224
    %v4243 = vpack.c.b16 %v4240, %v4239
    %v4244 = vpack.c.b16 %v4242, %v4241
    %v4248 = vsel %vm704, %v4225, 0
    %v4251 = vsel %vm704, %v4226, 0
    %4253 = vmatprep.subr.bf16.mxu0 0
    %4254 = vmatpush1.bf16.msra.mxu0 %v4243
    %4255 = vmatprep.subr.bf16.mxu0 0
    %4256 = vmatpush1.bf16.msra.mxu0 %v4244
    %4257 = vmatprep.subr.bf16.mxu0 0
    %4258 = vmatpush1.bf16.msra.mxu0 0
    %4259 = vmatprep.subr.bf16.mxu0 0
    %4260 = vmatpush1.bf16.msra.mxu0 0
    %4261 = vmatprep.subr.bf16.mxu0 0
    %4262 = vmatpush1.bf16.msra.mxu0 0
    %4263 = vmatprep.subr.bf16.mxu0 0
    %4264 = vmatpush1.bf16.msra.mxu0 0
    %4265 = vmatprep.subr.bf16.mxu0 0
    %4266 = vmatpush1.bf16.msra.mxu0 0
    %4267 = vmatprep.subr.bf16.mxu0 0
    %4268 = vmatpush1.bf16.msra.mxu0 0
    %4269 = vmatprep.subr.bf16.mxu0 0
    %4270 = vmatpush1.bf16.msra.mxu0 0
    %4271 = vmatprep.subr.bf16.mxu0 0
    %4272 = vmatpush1.bf16.msra.mxu0 0
    %4273 = vmatprep.subr.bf16.mxu0 0
    %4274 = vmatpush1.bf16.msra.mxu0 0
    %4275 = vmatprep.subr.bf16.mxu0 0
    %4276 = vmatpush1.bf16.msra.mxu0 0
    %4277 = vmatprep.subr.bf16.mxu0 0
    %4278 = vmatpush1.bf16.msra.mxu0 0
    %4279 = vmatprep.subr.bf16.mxu0 0
    %4280 = vmatpush1.bf16.msra.mxu0 0
    %4281 = vmatprep.subr.bf16.mxu0 0
    %4282 = vmatpush1.bf16.msra.mxu0 0
    %4283 = vmatprep.subr.bf16.mxu0 0
    %4284 = vmatpush1.bf16.msra.mxu0 0
    %4285 = vmatprep.mubr.bf16.mxu0 0
    %4286 = vmatmul.mubr.bf16.gmra.mrb[0].mxu0 %v4248
    %v4287 = vpop.f32.mrb[0].mxu0
    %v4288 = vadd.f32 %v4233, %v4287
    %v4289 = vpop.f32.mrb[0].mxu0
    %v4290 = vpop.f32.mrb[0].mxu0
    %v4291 = vadd.f32 %v4233, %v4290
    %v4292 = vpop.f32.mrb[0].mxu0
    %4293 = vmatprep.mubr.bf16.mxu0 0
    %4294 = vmatmul.mubr.bf16.gmra.mrb[0].mxu0 %v4251
    %v4295 = vpop.f32.mrb[0].mxu0
    %v4296 = vadd.f32 %v4233, %v4295
    %v4297 = vpop.f32.mrb[0].mxu0
    %v4298 = vpop.f32.mrb[0].mxu0
    %v4299 = vpop.f32.mrb[0].mxu0
    %4300 = vdwg.mxu0
    %v4301 = vmax.f32 %v4288, 0.0
    %v4302 = vmax.f32 %v4291, 0.0
    %v4303 = vmax.f32 %v4296, 0.0
    %v4304 = vadd.f32 %v4133, %v4301
    %v4305 = vadd.f32 %v4134, %v4302
    %v4306 = vadd.f32 %v4135, %v4303
    %4307 = vst.msk [vmem:[#allocation60] sm:$0xff] %vm704, %v4304
    %4308 = vst.msk [vmem:[#allocation60 + $0x8] sm:$0xff] %vm704, %v4305
    %4309 = vst.msk [vmem:[#allocation60 + $0x10] sm:$0xf] %vm1745, %v4306
    %v4310 = vld [vmem:[#allocation58] sm:$0xff]
    %v4311 = vld [vmem:[#allocation58 + $0x8] sm:$0xff]
    %v4312 = vld [vmem:[#allocation58 + $0x10] sm:$0xff]
    %v4313 = vld [vmem:[#allocation58 + $0x18] sm:$0xff]
    %v4314 = vld [vmem:[%s85] sm:$0x1]
    %v4316 = vlaneseq
    %v4317 = vshrl.u32 %v4316, 7
    %v4318 = vsub.s32 0, %v4317
    %v4319 = vrot.slane %v4314, %v4318
    %v4322 = vsel %vm704, %v4304, 0
    %v4325 = vsel %vm704, %v4305, 0
    %v4328 = vsel %vm704, %v4306, 0
    %4330 = vmatprep.subr.mxu0 0.0
    %4331 = vmatpush1.msra.mxu0 %v4310
    %4332 = vmatprep.subr.mxu0 0.0
    %4333 = vmatpush1.msra.mxu0 %v4311
    %4334 = vmatprep.subr.mxu0 0.0
    %4335 = vmatpush1.msra.mxu0 %v4312
    %4336 = vmatprep.subr.mxu0 0.0
    %4337 = vmatpush1.msra.mxu0 %v4313
    %4338 = vmatprep.subr.mxu0 0.0
    %4339 = vmatpush1.msra.mxu0 0.0
    %4340 = vmatprep.subr.mxu0 0.0
    %4341 = vmatpush1.msra.mxu0 0.0
    %4342 = vmatprep.subr.mxu0 0.0
    %4343 = vmatpush1.msra.mxu0 0.0
    %4344 = vmatprep.subr.mxu0 0.0
    %4345 = vmatpush1.msra.mxu0 0.0
    %4346 = vmatprep.subr.mxu0 0.0
    %4347 = vmatpush1.msra.mxu0 0.0
    %4348 = vmatprep.subr.mxu0 0.0
    %4349 = vmatpush1.msra.mxu0 0.0
    %4350 = vmatprep.subr.mxu0 0.0
    %4351 = vmatpush1.msra.mxu0 0.0
    %4352 = vmatprep.subr.mxu0 0.0
    %4353 = vmatpush1.msra.mxu0 0.0
    %4354 = vmatprep.subr.mxu0 0.0
    %4355 = vmatpush1.msra.mxu0 0.0
    %4356 = vmatprep.subr.mxu0 0.0
    %4357 = vmatpush1.msra.mxu0 0.0
    %4358 = vmatprep.subr.mxu0 0.0
    %4359 = vmatpush1.msra.mxu0 0.0
    %4360 = vmatprep.subr.mxu0 0.0
    %4361 = vmatpush1.msra.mxu0 0.0
    %4362 = vmatprep.subr.mxu0 0.0
    %4363 = vmatpush1.msra.mxu0 0.0
    %4364 = vmatprep.subr.mxu0 0.0
    %4365 = vmatpush1.msra.mxu0 0.0
    %4366 = vmatprep.subr.mxu0 0.0
    %4367 = vmatpush1.msra.mxu0 0.0
    %4368 = vmatprep.subr.mxu0 0.0
    %4369 = vmatpush1.msra.mxu0 0.0
    %4370 = vmatprep.subr.mxu0 0.0
    %4371 = vmatpush1.msra.mxu0 0.0
    %4372 = vmatprep.subr.mxu0 0.0
    %4373 = vmatpush1.msra.mxu0 0.0
    %4374 = vmatprep.subr.mxu0 0.0
    %4375 = vmatpush1.msra.mxu0 0.0
    %4376 = vmatprep.subr.mxu0 0.0
    %4377 = vmatpush1.msra.mxu0 0.0
    %4378 = vmatprep.subr.mxu0 0.0
    %4379 = vmatpush1.msra.mxu0 0.0
    %4380 = vmatprep.subr.mxu0 0.0
    %4381 = vmatpush1.msra.mxu0 0.0
    %4382 = vmatprep.subr.mxu0 0.0
    %4383 = vmatpush1.msra.mxu0 0.0
    %4384 = vmatprep.subr.mxu0 0.0
    %4385 = vmatpush1.msra.mxu0 0.0
    %4386 = vmatprep.subr.mxu0 0.0
    %4387 = vmatpush1.msra.mxu0 0.0
    %4388 = vmatprep.subr.mxu0 0.0
    %4389 = vmatpush1.msra.mxu0 0.0
    %4390 = vmatprep.subr.mxu0 0.0
    %4391 = vmatpush1.msra.mxu0 0.0
    %4392 = vmatprep.subr.mxu0 0.0
    %4393 = vmatpush1.msra.mxu0 0.0
    %4394 = vmatprep.mubr.f32.mxu0 0.0
    %4395 = vmatmul.mubr.f32.gmra.mrb[0].mxu0 %v4322
    %v4396 = vpop.f32.mrb[0].mxu0
    %v4397 = vadd.f32 %v4319, %v4396
    %v4398 = vpop.f32.mrb[0].mxu0
    %4399 = vmatprep.mubr.f32.mxu0 0.0
    %4400 = vmatmul.mubr.f32.gmra.mrb[0].mxu0 %v4325
    %v4401 = vpop.f32.mrb[0].mxu0
    %v4402 = vadd.f32 %v4319, %v4401
    %v4403 = vpop.f32.mrb[0].mxu0
    %4404 = vmatprep.mubr.f32.mxu0 0.0
    %4405 = vmatmul.mubr.f32.gmra.mrb[0].mxu0 %v4328
    %v4406 = vpop.f32.mrb[0].mxu0
    %v4407 = vadd.f32 %v4319, %v4406
    %v4408 = vpop.f32.mrb[0].mxu0
    %4409 = vdwg.mxu0
    %vm4410 = vcmask 523264
    %v4411 = vsel %vm4410, %v4397, -inf
    %4412 = vmax.xlane.f32.xlu0 %v4411
    %v4413 = vpop.xlane.xlu0 %4412
    %v4414 = vsel %vm4410, %v4402, -inf
    %4415 = vmax.xlane.f32.xlu0 %v4414
    %v4416 = vpop.xlane.xlu0 %4415
    %vm4417 = vcmask 519168
    %v4418 = vsel %vm4417, %v4407, -inf
    %4419 = vmax.xlane.f32.xlu0 %v4418
    %v4420 = vpop.xlane.xlu0 %4419
    %v4421 = vsub.f32 %v4397, %v4413
    %v4422 = vsub.f32 %v4402, %v4416
    %v4423 = vsub.f32 %v4407, %v4420
    %v4424 = vmul.f32 %v4421, 1.442695
    %v4425 = vpow.pop %v4424
    %v4426 = vmul.f32 %v4422, 1.442695
    %v4427 = vpow.pop %v4426
    %v4428 = vmul.f32 %v4423, 1.442695
    %v4429 = vpow.pop %v4428
    %v4430 = vsel %vm4410, %v4425, 0.0
    %4431 = vadd.xlane.f32.xlu0 %v4430
    %v4432 = vpop.xlane.xlu0 %4431
    %v4433 = vsel %vm4410, %v4427, 0.0
    %4434 = vadd.xlane.f32.xlu0 %v4433
    %v4435 = vpop.xlane.xlu0 %4434
    %v4436 = vsel %vm4417, %v4429, 0.0
    %4437 = vadd.xlane.f32.xlu0 %v4436
    %v4438 = vpop.xlane.xlu0 %4437
    %v4439 = vlog2.pop %v4432
    %v4440 = vmul.f32 %v4439, 0.6931472
    %v4441 = vlog2.pop %v4435
    %v4442 = vmul.f32 %v4441, 0.6931472
    %v4443 = vlog2.pop %v4438
    %v4444 = vmul.f32 %v4443, 0.6931472
    %v4445 = vadd.f32 %v4413, %v4440
    %v4446 = vadd.f32 %v4416, %v4442
    %v4447 = vadd.f32 %v4420, %v4444
    %4448 = vst.msk [vmem:[%s97] sm:$0xff] %vm1749, %v4445
    %4449 = vst.msk [vmem:[%s97 + $0x8] sm:$0xff] %vm1749, %v4446
    %4450 = vst.msk [vmem:[%s97 + $0x10] sm:$0xf] %vm1752, %v4447
    // Predicated region
    $region322: #{tpu_custom_call.1} parent=1 // pred_check
      _
    $region323: #{tpu_custom_call.1} parent=1 // pred_check_branch
      %4452 = sbr.rel (0) target = $region325
    $region324: #{tpu_custom_call.1} parent=1 // pred_region
      %s4454 = ssub.s32 384, 384
      %4455 = vsyncadd [#allocation4], %s4454
      %s4456 = sshll.u32 [#allocation59], 4
      %s4457 = int_to_ptr.vmem [resolvable:$true] %s4456
      %4462 = dma.vmem_to_hbm [thread:$0]  %s4457, 384, %s87, [#allocation4], 128, 128, 8
    $region325: #{tpu_custom_call.1} parent=1 // pred_fallthru
      _
    // Predicated region
    $region326: #{tpu_custom_call.1} parent=1 // pred_check
      _
    $region327: #{tpu_custom_call.1} parent=1 // pred_check_branch
      %4464 = sbr.rel (0) target = $region329
    $region328: #{tpu_custom_call.1} parent=1 // pred_region
      _
    $region329: #{tpu_custom_call.1} parent=1 // pred_fallthru
      _
    // Predicated region
    $region330: #{tpu_custom_call.1} parent=1 // pred_check
      _
    $region331: #{tpu_custom_call.1} parent=1 // pred_check_branch
      %4466 = sbr.rel (0) target = $region333
    $region332: #{tpu_custom_call.1} parent=1 // pred_region
      _
    $region333: #{tpu_custom_call.1} parent=1 // pred_fallthru
      _
    // Predicated region
    $region334: #{tpu_custom_call.1} parent=1 // pred_check
      _
    $region335: #{tpu_custom_call.1} parent=1 // pred_check_branch
      %4468 = sbr.rel (0) target = $region337
    $region336: #{tpu_custom_call.1} parent=1 // pred_region
      _
    $region337: #{tpu_custom_call.1} parent=1 // pred_fallthru
      _
    // Predicated region
    $region338: #{tpu_custom_call.1} parent=1 // pred_check
      _
    $region339: #{tpu_custom_call.1} parent=1 // pred_check_branch
      %4470 = sbr.rel (0) target = $region341
    $region340: #{tpu_custom_call.1} parent=1 // pred_region
      %s4472 = ssub.s32 384, 384
      %4473 = vsyncadd [#allocation61], %s4472
      %s4474 = sshll.u32 [#allocation60], 4
      %s4475 = int_to_ptr.vmem [resolvable:$true] %s4474
      %4480 = dma.vmem_to_hbm [thread:$0]  %s4475, 384, %s95, [#allocation61], 128, 128, 8
    $region341: #{tpu_custom_call.1} parent=1 // pred_fallthru
      _
    // Predicated region
    $region342: #{tpu_custom_call.1} parent=1 // pred_check
      _
    $region343: #{tpu_custom_call.1} parent=1 // pred_check_branch
      %4482 = sbr.rel (0) target = $region345
    $region344: #{tpu_custom_call.1} parent=1 // pred_region
      _
    $region345: #{tpu_custom_call.1} parent=1 // pred_fallthru
      _
    // Predicated region
    $region346: #{tpu_custom_call.1} parent=1 // pred_check
      _
    $region347: #{tpu_custom_call.1} parent=1 // pred_check_branch
      %4484 = sbr.rel (0) target = $region349
    $region348: #{tpu_custom_call.1} parent=1 // pred_region
      %4485 = dma.done [#allocation4], 384
    $region349: #{tpu_custom_call.1} parent=1 // pred_fallthru
      _
    // Predicated region
    $region350: #{tpu_custom_call.1} parent=1 // pred_check
      _
    $region351: #{tpu_custom_call.1} parent=1 // pred_check_branch
      %4487 = sbr.rel (0) target = $region353
    $region352: #{tpu_custom_call.1} parent=1 // pred_region
      _
    $region353: #{tpu_custom_call.1} parent=1 // pred_fallthru
      _
    // Predicated region
    $region354: #{tpu_custom_call.1} parent=1 // pred_check
      _
    $region355: #{tpu_custom_call.1} parent=1 // pred_check_branch
      %4489 = sbr.rel (0) target = $region357
    $region356: #{tpu_custom_call.1} parent=1 // pred_region
      _
    $region357: #{tpu_custom_call.1} parent=1 // pred_fallthru
      _
    // Predicated region
    $region358: #{tpu_custom_call.1} parent=1 // pred_check
      _
    $region359: #{tpu_custom_call.1} parent=1 // pred_check_branch
      %4491 = sbr.rel (0) target = $region361
    $region360: #{tpu_custom_call.1} parent=1 // pred_region
      _
    $region361: #{tpu_custom_call.1} parent=1 // pred_fallthru
      _
    // Predicated region
    $region362: #{tpu_custom_call.1} parent=1 // pred_check
      _
    $region363: #{tpu_custom_call.1} parent=1 // pred_check_branch
      %4493 = sbr.rel (0) target = $region365
    $region364: #{tpu_custom_call.1} parent=1 // pred_region
      %4494 = dma.done [#allocation61], 384
    $region365: #{tpu_custom_call.1} parent=1 // pred_fallthru
      _
    // Predicated region
    $region366: #{tpu_custom_call.1} parent=1 // pred_check
      _
    $region367: #{tpu_custom_call.1} parent=1 // pred_check_branch
      %4496 = sbr.rel (0) target = $region369
    $region368: #{tpu_custom_call.1} parent=1 // pred_region
      _
    $region369: #{tpu_custom_call.1} parent=1 // pred_fallthru
      _
    %4497 = vsyncpa [#allocation3], 1
    %4498 = vsyncpa [#allocation6], 1
    %4499 = vsyncpa [#allocation9], 1
    %4500 = vsyncpa [#allocation12], 1
    %4501 = vsyncpa [#allocation15], 1
    %4502 = vsyncpa [#allocation18], 1
    %4503 = vsyncpa [#allocation21], 1
    %4504 = vsyncpa [#allocation24], 1
    %4505 = vsyncpa [#allocation27], 1
    %4506 = vsyncpa [#allocation30], 1
    %4507 = vsyncpa [#allocation33], 1
    %4508 = vsyncpa [#allocation36], 1
    %4509 = vsyncpa [#allocation39], 1
    %4510 = vsyncpa [#allocation42], 1
    %4511 = vsyncpa [#allocation45], 1
    %4512 = vsyncpa [#allocation48], 1
    %4513 = vsyncpa [#allocation51], 1
    %4514 = vsyncpa [#allocation54], 1
    %4515 = vsyncpa [#allocation57], 1
    %4516 = vsyncpa [#allocation4], 1
    %4517 = vsyncpa [#allocation61], 1

</llo_original>
